<compile_context>
chip_gen: v7x
topology: tpu7x:2x2x1
jax: 0.10.0
libtpu: 0.0.40
codegen_flags: <defaults>
</compile_context>

<pallas_src>
import math
import functools

import jax
import jax.numpy as jnp
from jax.experimental import pallas as pl
from jax.experimental.pallas import tpu as pltpu


_MASK_VALUE = -0.7 * 3.4028235e38     # large negative, avoids -inf NaN hazards


def _vmem_limit_bytes():
    # Generation-aware budget: ~3/4 of physical VMEM
    # (v5e/v6e: 128 MiB -> 96 MiB, v7x: 64 MiB -> 48 MiB), conservative fallback.
    try:
        cap = int(getattr(pltpu.get_tpu_info(), "vmem_capacity_bytes",
                          64 * 1024 * 1024))
    except Exception:
        cap = 64 * 1024 * 1024
    return max(32 * 1024 * 1024, min((cap * 3) // 4, 112 * 1024 * 1024))


def _choose_tile(T):
    # 256 keeps the (H, tq, tk) f32 score tile and scratches comfortable; for
    # v5e/v6e with 128 MiB VMEM larger tiles can be passed explicitly via tq=.
    for t in (256, 128, 64, 32, 16, 8):
        if T % t == 0:
            return t
    return T


def _choose_hidden_chunk(hidden):
    # Chunk of the 4C MLP hidden dim (kernel C "arbitrary" axis).  Must be a
    # multiple of 128 or equal to the full hidden dim (BlockSpec lane rule).
    if hidden <= 1024:
        return hidden
    for hc in (1024, 512, 256, 128):
        if hidden % hc == 0:
            return hc
    return hidden


def _layernorm(h, w, b, eps=1e-5):
    # h: (rows, C) f32;  w, b: (C,)
    mu = jnp.mean(h, axis=-1, keepdims=True)
    var = jnp.mean((h - mu) ** 2, axis=-1, keepdims=True)
    return (h - mu) * jax.lax.rsqrt(var + eps) * w.astype(jnp.float32) \
        + b.astype(jnp.float32)


def _erf(x):
    # Abramowitz & Stegun 7.1.26 (max abs err ~1.5e-7); exp/mul/add only so it
    # lowers on Mosaic without needing a native erf.
    a1, a2, a3, a4, a5 = (0.254829592, -0.284496736, 1.421413741,
                          -1.453152027, 1.061405429)
    p = 0.3275911
    ax = jnp.abs(x)
    t = 1.0 / (1.0 + p * ax)
    poly = ((((a5 * t + a4) * t + a3) * t + a2) * t + a1) * t
    y = 1.0 - poly * jnp.exp(-ax * ax)
    return jnp.where(x >= 0, y, -y)


def _gelu_exact(x):
    # nn.GELU() default (approximate='none'): 0.5*x*(1+erf(x/sqrt(2)))
    return 0.5 * x * (1.0 + _erf(x * 0.7071067811865476))


# --------------------------- Kernel A: ln_1 + c_attn ------------------------
# Emits head-separated q/k/v in one tensor: (B, 3H, T, hd); q is pre-scaled by
# 1/sqrt(hd) so the flash kernel's inner loop has no score scaling.
def ln_qkv_kernel(x_ref, ln1w_ref, ln1b_ref, wattn_ref, battn_ref, qkvh_ref,
                  *, n_head, sm_scale):
    x = x_ref[0].astype(jnp.float32)                     # (tq, C)
    h = _layernorm(x, ln1w_ref[0], ln1b_ref[0])
    w = wattn_ref[...]                                   # (C, 3C)
    qkv = jnp.dot(h.astype(w.dtype), w, preferred_element_type=jnp.float32)
    qkv = qkv + battn_ref[0].astype(jnp.float32)         # (tq, 3C)

    C = x_ref.shape[-1]
    hd = C // n_head
    parts = []
    for g in range(3 * n_head):                          # static head-group split
        p = qkv[:, g * hd:(g + 1) * hd]                  # (tq, hd) lane slice
        if g < n_head:                                   # fold sm_scale into q
            p = p * sm_scale
        parts.append(p)
    qkvh_ref[0] = jnp.stack(parts, axis=0).astype(qkvh_ref.dtype)  # (3H, tq, hd)


# ------------------- Kernel B: flash causal attention -----------------------
# Grid (B, P) where P enumerates only lower-triangular (i, j) q/kv tile pairs
# (scalar-prefetched imap/jmap).  Heads are batched in one dot_general per
# step; output is heads-merged, lane-dense (B, T, C).
def flash_attn_kernel(imap_ref, jmap_ref, q_ref, k_ref, v_ref, o_ref,
                      m_sc, l_sc, acc_sc):
    p_idx = pl.program_id(1)
    i = imap_ref[p_idx]                                  # q-tile index
    j = jmap_ref[p_idx]                                  # kv-tile index (j <= i)
    H, tq, hd = q_ref.shape[1], q_ref.shape[2], q_ref.shape[3]
    tk = k_ref.shape[2]                                  # == tq

    @pl.when(j == 0)
    def _():
        m_sc[...] = jnp.full_like(m_sc, _MASK_VALUE)
        l_sc[...] = jnp.zeros_like(l_sc)
        acc_sc[...] = jnp.zeros_like(acc_sc)

    q = q_ref[0]                                         # (H, tq, hd), pre-scaled
    k = k_ref[0]                                         # (H, tk, hd)
    v = v_ref[0]                                         # (H, tk, hd)
    s = jax.lax.dot_general(q, k, (((2,), (2,)), ((0,), (0,))),
                            preferred_element_type=jnp.float32)    # (H, tq, tk)

    def update(scores):
        m_prev = m_sc[...]                               # (H, tq, 1)
        m_new = jnp.maximum(m_prev, jnp.max(scores, axis=-1, keepdims=True))
        alpha = jnp.exp(m_prev - m_new)
        p = jnp.exp(scores - m_new)                      # (H, tq, tk)
        l_sc[...] = alpha * l_sc[...] + jnp.sum(p, axis=-1, keepdims=True)
        pv = jax.lax.dot_general(p.astype(v.dtype), v,
                                 (((2,), (1,)), ((0,), (0,))),
                                 preferred_element_type=jnp.float32)  # (H, tq, hd)
        acc_sc[...] = alpha * acc_sc[...] + pv
        m_sc[...] = m_new

    @pl.when(j < i)                 # strictly below the diagonal: no mask
    def _():
        update(s)

    @pl.when(j == i)                # diagonal tile: local (static) causal mask
    def _():
        row = jax.lax.broadcasted_iota(jnp.int32, (tq, tk), 0)
        col = jax.lax.broadcasted_iota(jnp.int32, (tq, tk), 1)
        update(jnp.where((row >= col)[None, :, :], s, _MASK_VALUE))

    @pl.when(j == i)                # last kv tile for this q tile: finalize
    def _():
        inv_l = pl.reciprocal(l_sc[...], approx=False)   # exact; tiny, off hot loop
        o = acc_sc[...] * inv_l                          # (H, tq, hd)
        # merge heads along lanes -> lane-dense (tq, C) store
        o_ref[0] = jnp.concatenate([o[h] for h in range(H)],
                                   axis=-1).astype(o_ref.dtype)


# ------------- Kernel C: c_proj + residual + ln_2 + MLP + residual ----------
# Grid (B, nq, nhc): the 4C hidden dim is tiled along an "arbitrary" axis to
# bound weight VMEM; x1 and ln_2(x1) are computed once (c == 0) and reused.
def proj_mlp_kernel(x_ref, y_ref, wproj_ref, bproj_ref,
                    ln2w_ref, ln2b_ref, wfc_ref, bfc_ref, wfc2_ref, bfc2_ref,
                    o_ref, x1_sc, h2_sc, acc_sc):
    c = pl.program_id(2)

    @pl.when(c == 0)
    def _():
        x = x_ref[0].astype(jnp.float32)                 # (tq, C)
        wp = wproj_ref[...]                              # (C, C) full-K matmul
        proj = jnp.dot(y_ref[0].astype(wp.dtype), wp,
                       preferred_element_type=jnp.float32)
        x1 = x + proj + bproj_ref[0].astype(jnp.float32)  # residual 1 (dropout=id)
        x1_sc[...] = x1
        h2_sc[...] = _layernorm(x1, ln2w_ref[0], ln2b_ref[0])
        acc_sc[...] = jnp.zeros_like(acc_sc)

    wfc = wfc_ref[...]                                   # (C, hc)
    m = jnp.dot(h2_sc[...].astype(wfc.dtype), wfc,
                preferred_element_type=jnp.float32)
    m = m + bfc_ref[0].astype(jnp.float32)
    m = _gelu_exact(m)                                   # exact-erf GELU
    wfc2 = wfc2_ref[...]                                 # (hc, C)
    acc_sc[...] += jnp.dot(m.astype(wfc2.dtype), wfc2,
                           preferred_element_type=jnp.float32)

    @pl.when(c == pl.num_programs(2) - 1)
    def _():
        o_ref[0] = (x1_sc[...] + acc_sc[...]
                    + bfc2_ref[0].astype(jnp.float32)).astype(o_ref.dtype)


# ------------------------------ wrapper --------------------------------------
def block_forward(x, params, n_head, *, tq=None):
    (ln1w, ln1b, wattn, battn, wproj, bproj,
     ln2w, ln2b, wfc, bfc, wfc2, bfc2) = params
    B, T, C = x.shape
    assert C % n_head == 0
    hd = C // n_head
    tq = _choose_tile(T) if tq is None else tq
    assert T % tq == 0
    nq = T // tq
    hidden = 4 * C
    hc = _choose_hidden_chunk(hidden)
    nhc = hidden // hc

    vmem = _vmem_limit_bytes()
    cp_a = pltpu.CompilerParams(dimension_semantics=("parallel", "parallel"),
                                vmem_limit_bytes=vmem)
    # Kernel B: batch stays a leading parallel axis for megacore; the
    # triangular schedule axis must be "arbitrary" (scratch carried across it).
    cp_b = pltpu.CompilerParams(dimension_semantics=("parallel", "arbitrary"),
                                vmem_limit_bytes=vmem)
    cp_c = pltpu.CompilerParams(
        dimension_semantics=("parallel", "parallel", "arbitrary"),
        vmem_limit_bytes=vmem)

    # ---- Kernel A: ln_1 + c_attn -> head-separated qkv (B, 3H, T, hd) ----
    kern_a = functools.partial(ln_qkv_kernel, n_head=n_head,
                               sm_scale=1.0 / math.sqrt(hd))
    qkvh = pl.pallas_call(
        kern_a,
        out_shape=jax.ShapeDtypeStruct((B, 3 * n_head, T, hd), x.dtype),
        grid_spec=pltpu.PrefetchScalarGridSpec(
            num_scalar_prefetch=0, grid=(B, nq),
            in_specs=[
                pl.BlockSpec((1, tq, C), lambda b, i: (b, i, 0)),
                pl.BlockSpec((1, C), lambda b, i: (0, 0)),
                pl.BlockSpec((1, C), lambda b, i: (0, 0)),
                pl.BlockSpec((C, 3 * C), lambda b, i: (0, 0)),
                pl.BlockSpec((1, 3 * C), lambda b, i: (0, 0)),
            ],
            out_specs=pl.BlockSpec((1, 3 * n_head, tq, hd),
                                   lambda b, i: (b, 0, i, 0)),
        ),
        compiler_params=cp_a,
    )(x, ln1w, ln1b, wattn, battn)

    # ---- triangular (i, j) schedule for the flash kv loop (tq == tk) ----
    pairs_i, pairs_j = [], []
    for i in range(nq):
        for j in range(i + 1):
            pairs_i.append(i)
            pairs_j.append(j)
    imap = jnp.asarray(pairs_i, dtype=jnp.int32)
    jmap = jnp.asarray(pairs_j, dtype=jnp.int32)
    P = len(pairs_i)

    # ---- Kernel B: flash attention -> heads-merged, lane-dense (B, T, C) ----
    y = pl.pallas_call(
        flash_attn_kernel,
        out_shape=jax.ShapeDtypeStruct((B, T, C), x.dtype),
        grid_spec=pltpu.PrefetchScalarGridSpec(
            num_scalar_prefetch=2, grid=(B, P),
            in_specs=[
                pl.BlockSpec((1, n_head, tq, hd),
                             lambda b, p, im, jm: (b, 0, im[p], 0)),  # q group
                pl.BlockSpec((1, n_head, tq, hd),
                             lambda b, p, im, jm: (b, 1, jm[p], 0)),  # k group
                pl.BlockSpec((1, n_head, tq, hd),
                             lambda b, p, im, jm: (b, 2, jm[p], 0)),  # v group
            ],
            out_specs=pl.BlockSpec((1, tq, C),
                                   lambda b, p, im, jm: (b, im[p], 0)),
            scratch_shapes=[
                pltpu.VMEM((n_head, tq, 1), jnp.float32),    # running max
                pltpu.VMEM((n_head, tq, 1), jnp.float32),    # running sum
                pltpu.VMEM((n_head, tq, hd), jnp.float32),   # accumulator
            ],
        ),
        compiler_params=cp_b,
    )(imap, jmap, qkvh, qkvh, qkvh)

    # ---- Kernel C: c_proj + residual + ln_2 + MLP + residual ----
    out = pl.pallas_call(
        proj_mlp_kernel,
        out_shape=jax.ShapeDtypeStruct((B, T, C), x.dtype),
        grid_spec=pltpu.PrefetchScalarGridSpec(
            num_scalar_prefetch=0, grid=(B, nq, nhc),
            in_specs=[
                pl.BlockSpec((1, tq, C), lambda b, i, c: (b, i, 0)),   # x
                pl.BlockSpec((1, tq, C), lambda b, i, c: (b, i, 0)),   # attn out
                pl.BlockSpec((C, C), lambda b, i, c: (0, 0)),          # wproj
                pl.BlockSpec((1, C), lambda b, i, c: (0, 0)),          # bproj
                pl.BlockSpec((1, C), lambda b, i, c: (0, 0)),          # ln2w
                pl.BlockSpec((1, C), lambda b, i, c: (0, 0)),          # ln2b
                pl.BlockSpec((C, hc), lambda b, i, c: (0, c)),         # wfc chunk
                pl.BlockSpec((1, hc), lambda b, i, c: (0, c)),         # bfc chunk
                pl.BlockSpec((hc, C), lambda b, i, c: (c, 0)),         # wfc2 chunk
                pl.BlockSpec((1, C), lambda b, i, c: (0, 0)),          # bfc2
            ],
            out_specs=pl.BlockSpec((1, tq, C), lambda b, i, c: (b, i, 0)),
            scratch_shapes=[
                pltpu.VMEM((tq, C), jnp.float32),    # x1 (residual 1)
                pltpu.VMEM((tq, C), jnp.float32),    # ln_2(x1)
                pltpu.VMEM((tq, C), jnp.float32),    # MLP accumulator
            ],
        ),
        compiler_params=cp_c,
    )(x, y, wproj, bproj, ln2w, ln2b, wfc, bfc, wfc2, bfc2)

    return out


# ---------------- pure-JAX reference for verification ----------------
def block_ref(x, params, n_head):
    (ln1w, ln1b, wattn, battn, wproj, bproj,
     ln2w, ln2b, wfc, bfc, wfc2, bfc2) = params
    B, T, C = x.shape
    hd = C // n_head

    def ln(h, w, b):
        mu = jnp.mean(h, axis=-1, keepdims=True)
        var = jnp.mean((h - mu) ** 2, axis=-1, keepdims=True)
        return (h - mu) / jnp.sqrt(var + 1e-5) * w[0] + b[0]

    h = ln(x, ln1w, ln1b)
    qkv = h @ wattn + battn[0]
    q, k, v = jnp.split(qkv, 3, axis=-1)
    q = q.reshape(B, T, n_head, hd).transpose(0, 2, 1, 3)
    k = k.reshape(B, T, n_head, hd).transpose(0, 2, 1, 3)
    v = v.reshape(B, T, n_head, hd).transpose(0, 2, 1, 3)
    s = jnp.einsum("bhqd,bhkd->bhqk", q, k) / math.sqrt(hd)
    mask = jnp.tril(jnp.ones((T, T), bool))
    s = jnp.where(mask, s, -jnp.inf)
    p = jax.nn.softmax(s, axis=-1)
    y = jnp.einsum("bhqk,bhkd->bhqd", p, v)
    y = y.transpose(0, 2, 1, 3).reshape(B, T, C)
    x1 = x + (y @ wproj + bproj[0])

    h2 = ln(x1, ln2w, ln2b)
    m = jax.nn.gelu(h2 @ wfc + bfc[0], approximate=False)
    m = m @ wfc2 + bfc2[0]
    return x1 + m


if __name__ == "__main__":
    # Small shapes, but T/tq chosen so the triangular kv schedule (init,
    # off-diagonal unmasked step, diagonal masked step, finalize) and
    # multi-tile grids are actually exercised (nq = 2, P = 3).
    B, T, C, n_head = 2, 16, 32, 4

    key = jax.random.PRNGKey(0)
    ks = jax.random.split(key, 8)

    x = jax.random.normal(ks[0], (B, T, C), jnp.float32)

    ln1w = jnp.ones((1, C), jnp.float32)
    ln1b = jnp.zeros((1, C), jnp.float32)
    ln2w = jnp.ones((1, C), jnp.float32)
    ln2b = jnp.zeros((1, C), jnp.float32)
    wattn = 0.02 * jax.random.normal(ks[1], (C, 3 * C), jnp.float32)
    battn = 0.01 * jax.random.normal(ks[2], (1, 3 * C), jnp.float32)
    wproj = 0.02 * jax.random.normal(ks[3], (C, C), jnp.float32)
    bproj = 0.01 * jax.random.normal(ks[4], (1, C), jnp.float32)
    wfc = 0.02 * jax.random.normal(ks[5], (C, 4 * C), jnp.float32)
    bfc = 0.01 * jax.random.normal(ks[6], (1, 4 * C), jnp.float32)
    wfc2 = 0.02 * jax.random.normal(ks[7], (4 * C, C), jnp.float32)
    bfc2 = jnp.zeros((1, C), jnp.float32)

    params = (ln1w, ln1b, wattn, battn, wproj, bproj,
              ln2w, ln2b, wfc, bfc, wfc2, bfc2)

    # For bf16 MXU operands (roughly 2x matmul throughput on v6e/v7x and half
    # the weight VMEM), pass bf16 x / weights instead; accumulation stays f32.
    fwd = jax.jit(functools.partial(block_forward, n_head=n_head, tq=8))
    out = jax.block_until_ready(fwd(x, params))

    ref = block_ref(x, params, n_head)
    assert out.shape == (B, T, C)
    assert jnp.allclose(out, ref, atol=1e-4, rtol=1e-4), (
        f"max abs err = {jnp.max(jnp.abs(out - ref))}")

    print("KERNEL_OK")
</pallas_src>

<mosaic_0001>
module attributes {stable_mosaic.version = 11 : i64} {
  func.func @ln_qkv_kernel(%arg0: i32, %arg1: i32, %arg2: memref<1x8x32xf32, #tpu.memory_space<vmem>>, %arg3: memref<1x32xf32, #tpu.memory_space<vmem>>, %arg4: memref<1x32xf32, #tpu.memory_space<vmem>>, %arg5: memref<32x96xf32, #tpu.memory_space<vmem>>, %arg6: memref<1x96xf32, #tpu.memory_space<vmem>>, %arg7: memref<1x12x8x8xf32, #tpu.memory_space<vmem>>) attributes {dimension_semantics = [#tpu.dimension_semantics<parallel>, #tpu.dimension_semantics<parallel>], iteration_bounds = array<i64: 2, 2>, scalar_prefetch = 0 : i64, scratch_operands = 0 : i64, tpu.core_type = #tpu.core_type<tc>, window_params = [{transform_indices = @transform_0, window_bounds = array<i64: 1, 8, 32>}, {pipeline_mode = #tpu.pipeline_mode<synchronous>, transform_indices = @transform_1, window_bounds = array<i64: 1, 32>}, {pipeline_mode = #tpu.pipeline_mode<synchronous>, transform_indices = @transform_2, window_bounds = array<i64: 1, 32>}, {pipeline_mode = #tpu.pipeline_mode<synchronous>, transform_indices = @transform_3, window_bounds = array<i64: 32, 96>}, {pipeline_mode = #tpu.pipeline_mode<synchronous>, transform_indices = @transform_4, window_bounds = array<i64: 1, 96>}, {transform_indices = @transform_5, window_bounds = array<i64: 1, 12, 8, 8>}]} {
    %c0 = arith.constant 0 : index
    %c0_0 = arith.constant 0 : index
    %c0_1 = arith.constant 0 : index
    %0 = vector.load %arg2[%c0, %c0_0, %c0_1] : memref<1x8x32xf32, #tpu.memory_space<vmem>>, vector<1x8x32xf32>
    %1 = vector.shape_cast %0 : vector<1x8x32xf32> to vector<8x32xf32>
    %c0_2 = arith.constant 0 : index
    %c0_3 = arith.constant 0 : index
    %2 = vector.load %arg3[%c0_2, %c0_3] : memref<1x32xf32, #tpu.memory_space<vmem>>, vector<1x32xf32>
    %3 = vector.shape_cast %2 : vector<1x32xf32> to vector<32xf32>
    %c0_4 = arith.constant 0 : index
    %c0_5 = arith.constant 0 : index
    %4 = vector.load %arg4[%c0_4, %c0_5] : memref<1x32xf32, #tpu.memory_space<vmem>>, vector<1x32xf32>
    %5 = vector.shape_cast %4 : vector<1x32xf32> to vector<32xf32>
    %cst = arith.constant dense<0.000000e+00> : vector<8xf32>
    %6 = vector.multi_reduction <add>, %1, %cst [1] : vector<8x32xf32> to vector<8xf32>
    %7 = vector.shape_cast %6 : vector<8xf32> to vector<8x1xf32>
    %cst_6 = arith.constant 3.200000e+01 : f32
    %8 = vector.broadcast %cst_6 : f32 to vector<8x1xf32>
    %9 = arith.divf %7, %8 : vector<8x1xf32>
    %10 = vector.broadcast %9 : vector<8x1xf32> to vector<8x32xf32>
    %11 = arith.subf %1, %10 : vector<8x32xf32>
    %12 = arith.mulf %11, %11 : vector<8x32xf32>
    %cst_7 = arith.constant dense<0.000000e+00> : vector<8xf32>
    %13 = vector.multi_reduction <add>, %12, %cst_7 [1] : vector<8x32xf32> to vector<8xf32>
    %14 = vector.shape_cast %13 : vector<8xf32> to vector<8x1xf32>
    %cst_8 = arith.constant 3.200000e+01 : f32
    %15 = vector.broadcast %cst_8 : f32 to vector<8x1xf32>
    %16 = arith.divf %14, %15 : vector<8x1xf32>
    %17 = vector.broadcast %9 : vector<8x1xf32> to vector<8x32xf32>
    %18 = arith.subf %1, %17 : vector<8x32xf32>
    %cst_9 = arith.constant 9.99999974E-6 : f32
    %19 = vector.broadcast %cst_9 : f32 to vector<8x1xf32>
    %20 = arith.addf %16, %19 : vector<8x1xf32>
    %21 = math.rsqrt %20 : vector<8x1xf32>
    %22 = vector.broadcast %21 : vector<8x1xf32> to vector<8x32xf32>
    %23 = arith.mulf %18, %22 : vector<8x32xf32>
    %24 = vector.shape_cast %3 : vector<32xf32> to vector<1x32xf32>
    %25 = vector.broadcast %24 : vector<1x32xf32> to vector<8x32xf32>
    %26 = arith.mulf %23, %25 : vector<8x32xf32>
    %27 = vector.shape_cast %5 : vector<32xf32> to vector<1x32xf32>
    %28 = vector.broadcast %27 : vector<1x32xf32> to vector<8x32xf32>
    %29 = arith.addf %26, %28 : vector<8x32xf32>
    %c0_10 = arith.constant 0 : index
    %c0_11 = arith.constant 0 : index
    %30 = vector.load %arg5[%c0_10, %c0_11] : memref<32x96xf32, #tpu.memory_space<vmem>>, vector<32x96xf32>
    %cst_12 = arith.constant dense<0.000000e+00> : vector<8x96xf32>
    %31 = tpu.matmul %29, %30, %cst_12 {dimension_numbers = #tpu.dot_dimension_numbers<[1], [0], [0], [1], [0, 0, 1, 1], [], []>} : vector<8x32xf32>, vector<32x96xf32>, vector<8x96xf32> -> vector<8x96xf32>
    %c0_13 = arith.constant 0 : index
    %c0_14 = arith.constant 0 : index
    %32 = vector.load %arg6[%c0_13, %c0_14] : memref<1x96xf32, #tpu.memory_space<vmem>>, vector<1x96xf32>
    %33 = vector.shape_cast %32 : vector<1x96xf32> to vector<96xf32>
    %34 = vector.shape_cast %33 : vector<96xf32> to vector<1x96xf32>
    %35 = vector.broadcast %34 : vector<1x96xf32> to vector<8x96xf32>
    %36 = arith.addf %31, %35 : vector<8x96xf32>
    %37 = vector.extract_strided_slice %36 {offsets = [0, 0], sizes = [8, 8], strides = [1, 1]} : vector<8x96xf32> to vector<8x8xf32>
    %cst_15 = arith.constant 0.353553385 : f32
    %38 = vector.broadcast %cst_15 : f32 to vector<8x8xf32>
    %39 = arith.mulf %37, %38 : vector<8x8xf32>
    %40 = vector.extract_strided_slice %36 {offsets = [0, 8], sizes = [8, 8], strides = [1, 1]} : vector<8x96xf32> to vector<8x8xf32>
    %cst_16 = arith.constant 0.353553385 : f32
    %41 = vector.broadcast %cst_16 : f32 to vector<8x8xf32>
    %42 = arith.mulf %40, %41 : vector<8x8xf32>
    %43 = vector.extract_strided_slice %36 {offsets = [0, 16], sizes = [8, 8], strides = [1, 1]} : vector<8x96xf32> to vector<8x8xf32>
    %cst_17 = arith.constant 0.353553385 : f32
    %44 = vector.broadcast %cst_17 : f32 to vector<8x8xf32>
    %45 = arith.mulf %43, %44 : vector<8x8xf32>
    %46 = vector.extract_strided_slice %36 {offsets = [0, 24], sizes = [8, 8], strides = [1, 1]} : vector<8x96xf32> to vector<8x8xf32>
    %cst_18 = arith.constant 0.353553385 : f32
    %47 = vector.broadcast %cst_18 : f32 to vector<8x8xf32>
    %48 = arith.mulf %46, %47 : vector<8x8xf32>
    %49 = vector.extract_strided_slice %36 {offsets = [0, 32], sizes = [8, 8], strides = [1, 1]} : vector<8x96xf32> to vector<8x8xf32>
    %50 = vector.extract_strided_slice %36 {offsets = [0, 40], sizes = [8, 8], strides = [1, 1]} : vector<8x96xf32> to vector<8x8xf32>
    %51 = vector.extract_strided_slice %36 {offsets = [0, 48], sizes = [8, 8], strides = [1, 1]} : vector<8x96xf32> to vector<8x8xf32>
    %52 = vector.extract_strided_slice %36 {offsets = [0, 56], sizes = [8, 8], strides = [1, 1]} : vector<8x96xf32> to vector<8x8xf32>
    %53 = vector.extract_strided_slice %36 {offsets = [0, 64], sizes = [8, 8], strides = [1, 1]} : vector<8x96xf32> to vector<8x8xf32>
    %54 = vector.extract_strided_slice %36 {offsets = [0, 72], sizes = [8, 8], strides = [1, 1]} : vector<8x96xf32> to vector<8x8xf32>
    %55 = vector.extract_strided_slice %36 {offsets = [0, 80], sizes = [8, 8], strides = [1, 1]} : vector<8x96xf32> to vector<8x8xf32>
    %56 = vector.extract_strided_slice %36 {offsets = [0, 88], sizes = [8, 8], strides = [1, 1]} : vector<8x96xf32> to vector<8x8xf32>
    %57 = vector.shape_cast %39 : vector<8x8xf32> to vector<1x8x8xf32>
    %58 = vector.shape_cast %42 : vector<8x8xf32> to vector<1x8x8xf32>
    %59 = vector.shape_cast %45 : vector<8x8xf32> to vector<1x8x8xf32>
    %60 = vector.shape_cast %48 : vector<8x8xf32> to vector<1x8x8xf32>
    %61 = vector.shape_cast %49 : vector<8x8xf32> to vector<1x8x8xf32>
    %62 = vector.shape_cast %50 : vector<8x8xf32> to vector<1x8x8xf32>
    %63 = vector.shape_cast %51 : vector<8x8xf32> to vector<1x8x8xf32>
    %64 = vector.shape_cast %52 : vector<8x8xf32> to vector<1x8x8xf32>
    %65 = vector.shape_cast %53 : vector<8x8xf32> to vector<1x8x8xf32>
    %66 = vector.shape_cast %54 : vector<8x8xf32> to vector<1x8x8xf32>
    %67 = vector.shape_cast %55 : vector<8x8xf32> to vector<1x8x8xf32>
    %68 = vector.shape_cast %56 : vector<8x8xf32> to vector<1x8x8xf32>
    %69 = tpu.concatenate %57, %58, %59, %60, %61, %62, %63, %64, %65, %66, %67, %68 in 0 : vector<1x8x8xf32>, vector<1x8x8xf32>, vector<1x8x8xf32>, vector<1x8x8xf32>, vector<1x8x8xf32>, vector<1x8x8xf32>, vector<1x8x8xf32>, vector<1x8x8xf32>, vector<1x8x8xf32>, vector<1x8x8xf32>, vector<1x8x8xf32>, vector<1x8x8xf32> -> vector<12x8x8xf32>
    %c0_19 = arith.constant 0 : index
    %c0_20 = arith.constant 0 : index
    %c0_21 = arith.constant 0 : index
    %c0_22 = arith.constant 0 : index
    %70 = vector.load %arg7[%c0_19, %c0_20, %c0_21, %c0_22] : memref<1x12x8x8xf32, #tpu.memory_space<vmem>>, vector<1x12x8x8xf32>
    %71 = vector.shape_cast %70 : vector<1x12x8x8xf32> to vector<12x8x8xf32>
    %72 = vector.shape_cast %69 : vector<12x8x8xf32> to vector<1x12x8x8xf32>
    tpu.vector_store %arg7[%c0_19, %c0_20, %c0_21, %c0_22], %72 {strides = array<i32>} : memref<1x12x8x8xf32, #tpu.memory_space<vmem>>, vector<1x12x8x8xf32>,
    return
  }
  func.func @transform_0(%arg0: i32, %arg1: i32) -> (i32, i32, i32) {
    %c0_i32 = arith.constant 0 : i32
    %c0_i32_0 = arith.constant 0 : i32
    return %arg0, %arg1, %c0_i32 : i32, i32, i32
  }
  func.func @transform_1(%arg0: i32, %arg1: i32) -> (i32, i32) {
    %c0_i32 = arith.constant 0 : i32
    %c0_i32_0 = arith.constant 0 : i32
    %c0_i32_1 = arith.constant 0 : i32
    return %c0_i32, %c0_i32_0 : i32, i32
  }
  func.func @transform_2(%arg0: i32, %arg1: i32) -> (i32, i32) {
    %c0_i32 = arith.constant 0 : i32
    %c0_i32_0 = arith.constant 0 : i32
    %c0_i32_1 = arith.constant 0 : i32
    return %c0_i32, %c0_i32_0 : i32, i32
  }
  func.func @transform_3(%arg0: i32, %arg1: i32) -> (i32, i32) {
    %c0_i32 = arith.constant 0 : i32
    %c0_i32_0 = arith.constant 0 : i32
    %c0_i32_1 = arith.constant 0 : i32
    return %c0_i32, %c0_i32_0 : i32, i32
  }
  func.func @transform_4(%arg0: i32, %arg1: i32) -> (i32, i32) {
    %c0_i32 = arith.constant 0 : i32
    %c0_i32_0 = arith.constant 0 : i32
    %c0_i32_1 = arith.constant 0 : i32
    return %c0_i32, %c0_i32_0 : i32, i32
  }
  func.func @transform_5(%arg0: i32, %arg1: i32) -> (i32, i32, i32, i32) {
    %c0_i32 = arith.constant 0 : i32
    %c0_i32_0 = arith.constant 0 : i32
    %c0_i32_1 = arith.constant 0 : i32
    return %arg0, %c0_i32, %arg1, %c0_i32_0 : i32, i32, i32, i32
  }
}

module attributes {stable_mosaic.version = 11 : i64} {
  func.func @flash_attn_kernel(%arg0: i32, %arg1: i32, %arg2: memref<3xi32, #tpu.memory_space<smem>>, %arg3: memref<3xi32, #tpu.memory_space<smem>>, %arg4: memref<1x4x8x8xf32, #tpu.memory_space<vmem>>, %arg5: memref<1x4x8x8xf32, #tpu.memory_space<vmem>>, %arg6: memref<1x4x8x8xf32, #tpu.memory_space<vmem>>, %arg7: memref<1x8x32xf32, #tpu.memory_space<vmem>>, %arg8: memref<4x8x1xf32, #tpu.memory_space<vmem>>, %arg9: memref<4x8x1xf32, #tpu.memory_space<vmem>>, %arg10: memref<4x8x8xf32, #tpu.memory_space<vmem>>) attributes {dimension_semantics = [#tpu.dimension_semantics<parallel>, #tpu.dimension_semantics<arbitrary>], iteration_bounds = array<i64: 2, 3>, scalar_prefetch = 2 : i64, scratch_operands = 3 : i64, tpu.core_type = #tpu.core_type<tc>, window_params = [{transform_indices = @transform_0, window_bounds = array<i64: 1, 4, 8, 8>}, {transform_indices = @transform_1, window_bounds = array<i64: 1, 4, 8, 8>}, {transform_indices = @transform_2, window_bounds = array<i64: 1, 4, 8, 8>}, {transform_indices = @transform_3, window_bounds = array<i64: 1, 8, 32>}]} {
    %0 = arith.index_cast %arg1 : i32 to index
    %1 = memref.load %arg2[%0] : memref<3xi32, #tpu.memory_space<smem>>
    %2 = arith.index_cast %arg1 : i32 to index
    %3 = memref.load %arg3[%2] : memref<3xi32, #tpu.memory_space<smem>>
    %c0_i32 = arith.constant 0 : i32
    %4 = arith.cmpi eq, %3, %c0_i32 : i32
    %5 = arith.extui %4 : i1 to i32
    %c0_i32_0 = arith.constant 0 : i32
    %6 = arith.cmpi ne, %5, %c0_i32_0 : i32
    scf.if %6 {
      %cst_15 = arith.constant -2.38197653E+38 : f32
      %23 = vector.broadcast %cst_15 : f32 to vector<4x8x1xf32>
      %c0_16 = arith.constant 0 : index
      %c0_17 = arith.constant 0 : index
      %c0_18 = arith.constant 0 : index
      %24 = vector.load %arg8[%c0_16, %c0_17, %c0_18] : memref<4x8x1xf32, #tpu.memory_space<vmem>>, vector<4x8x1xf32>
      tpu.vector_store %arg8[%c0_16, %c0_17, %c0_18], %23 {strides = array<i32>} : memref<4x8x1xf32, #tpu.memory_space<vmem>>, vector<4x8x1xf32>,
      %cst_19 = arith.constant 0.000000e+00 : f32
      %25 = vector.broadcast %cst_19 : f32 to vector<4x8x1xf32>
      %c0_20 = arith.constant 0 : index
      %c0_21 = arith.constant 0 : index
      %c0_22 = arith.constant 0 : index
      %26 = vector.load %arg9[%c0_20, %c0_21, %c0_22] : memref<4x8x1xf32, #tpu.memory_space<vmem>>, vector<4x8x1xf32>
      tpu.vector_store %arg9[%c0_20, %c0_21, %c0_22], %25 {strides = array<i32>} : memref<4x8x1xf32, #tpu.memory_space<vmem>>, vector<4x8x1xf32>,
      %cst_23 = arith.constant 0.000000e+00 : f32
      %27 = vector.broadcast %cst_23 : f32 to vector<4x8x8xf32>
      %c0_24 = arith.constant 0 : index
      %c0_25 = arith.constant 0 : index
      %c0_26 = arith.constant 0 : index
      %28 = vector.load %arg10[%c0_24, %c0_25, %c0_26] : memref<4x8x8xf32, #tpu.memory_space<vmem>>, vector<4x8x8xf32>
      tpu.vector_store %arg10[%c0_24, %c0_25, %c0_26], %27 {strides = array<i32>} : memref<4x8x8xf32, #tpu.memory_space<vmem>>, vector<4x8x8xf32>,
    } else {
    }
    %c0 = arith.constant 0 : index
    %c0_1 = arith.constant 0 : index
    %c0_2 = arith.constant 0 : index
    %c0_3 = arith.constant 0 : index
    %7 = vector.load %arg4[%c0, %c0_1, %c0_2, %c0_3] : memref<1x4x8x8xf32, #tpu.memory_space<vmem>>, vector<1x4x8x8xf32>
    %8 = vector.shape_cast %7 : vector<1x4x8x8xf32> to vector<4x8x8xf32>
    %c0_4 = arith.constant 0 : index
    %c0_5 = arith.constant 0 : index
    %c0_6 = arith.constant 0 : index
    %c0_7 = arith.constant 0 : index
    %9 = vector.load %arg5[%c0_4, %c0_5, %c0_6, %c0_7] : memref<1x4x8x8xf32, #tpu.memory_space<vmem>>, vector<1x4x8x8xf32>
    %10 = vector.shape_cast %9 : vector<1x4x8x8xf32> to vector<4x8x8xf32>
    %c0_8 = arith.constant 0 : index
    %c0_9 = arith.constant 0 : index
    %c0_10 = arith.constant 0 : index
    %c0_11 = arith.constant 0 : index
    %11 = vector.load %arg6[%c0_8, %c0_9, %c0_10, %c0_11] : memref<1x4x8x8xf32, #tpu.memory_space<vmem>>, vector<1x4x8x8xf32>
    %12 = vector.shape_cast %11 : vector<1x4x8x8xf32> to vector<4x8x8xf32>
    %cst = arith.constant dense<0.000000e+00> : vector<4x8x8xf32>
    %13 = tpu.matmul %8, %10, %cst {dimension_numbers = #tpu.dot_dimension_numbers<[2], [2], [1], [1], [0, 0, 0, 1, 1, 1], [0], [0]>} : vector<4x8x8xf32>, vector<4x8x8xf32>, vector<4x8x8xf32> -> vector<4x8x8xf32>
    %14 = arith.cmpi slt, %3, %1 : i32
    %15 = arith.extui %14 : i1 to i32
    %c0_i32_12 = arith.constant 0 : i32
    %16 = arith.cmpi ne, %15, %c0_i32_12 : i32
    scf.if %16 {
      %c0_15 = arith.constant 0 : index
      %c0_16 = arith.constant 0 : index
      %c0_17 = arith.constant 0 : index
      %23 = vector.load %arg8[%c0_15, %c0_16, %c0_17] : memref<4x8x1xf32, #tpu.memory_space<vmem>>, vector<4x8x1xf32>
      %cst_18 = arith.constant dense<0xFF800000> : vector<4x8xf32>
      %24 = vector.multi_reduction <maximumf>, %13, %cst_18 [2] : vector<4x8x8xf32> to vector<4x8xf32>
      %25 = vector.shape_cast %24 : vector<4x8xf32> to vector<4x8x1xf32>
      %26 = arith.maximumf %23, %25 : vector<4x8x1xf32>
      %27 = arith.subf %23, %26 : vector<4x8x1xf32>
      %28 = math.exp %27 : vector<4x8x1xf32>
      %29 = vector.broadcast %26 : vector<4x8x1xf32> to vector<4x8x8xf32>
      %30 = arith.subf %13, %29 : vector<4x8x8xf32>
      %31 = math.exp %30 : vector<4x8x8xf32>
      %c0_19 = arith.constant 0 : index
      %c0_20 = arith.constant 0 : index
      %c0_21 = arith.constant 0 : index
      %32 = vector.load %arg9[%c0_19, %c0_20, %c0_21] : memref<4x8x1xf32, #tpu.memory_space<vmem>>, vector<4x8x1xf32>
      %33 = arith.mulf %28, %32 : vector<4x8x1xf32>
      %cst_22 = arith.constant dense<0.000000e+00> : vector<4x8xf32>
      %34 = vector.multi_reduction <add>, %31, %cst_22 [2] : vector<4x8x8xf32> to vector<4x8xf32>
      %35 = vector.shape_cast %34 : vector<4x8xf32> to vector<4x8x1xf32>
      %36 = arith.addf %33, %35 : vector<4x8x1xf32>
      %c0_23 = arith.constant 0 : index
      %c0_24 = arith.constant 0 : index
      %c0_25 = arith.constant 0 : index
      %37 = vector.load %arg9[%c0_23, %c0_24, %c0_25] : memref<4x8x1xf32, #tpu.memory_space<vmem>>, vector<4x8x1xf32>
      tpu.vector_store %arg9[%c0_23, %c0_24, %c0_25], %36 {strides = array<i32>} : memref<4x8x1xf32, #tpu.memory_space<vmem>>, vector<4x8x1xf32>,
      %cst_26 = arith.constant dense<0.000000e+00> : vector<4x8x8xf32>
      %38 = tpu.matmul %31, %12, %cst_26 {dimension_numbers = #tpu.dot_dimension_numbers<[2], [1], [1], [2], [0, 0, 0, 1, 1, 2], [0], [0]>} : vector<4x8x8xf32>, vector<4x8x8xf32>, vector<4x8x8xf32> -> vector<4x8x8xf32>
      %c0_27 = arith.constant 0 : index
      %c0_28 = arith.constant 0 : index
      %c0_29 = arith.constant 0 : index
      %39 = vector.load %arg10[%c0_27, %c0_28, %c0_29] : memref<4x8x8xf32, #tpu.memory_space<vmem>>, vector<4x8x8xf32>
      %40 = vector.broadcast %28 : vector<4x8x1xf32> to vector<4x8x8xf32>
      %41 = arith.mulf %40, %39 : vector<4x8x8xf32>
      %42 = arith.addf %41, %38 : vector<4x8x8xf32>
      %c0_30 = arith.constant 0 : index
      %c0_31 = arith.constant 0 : index
      %c0_32 = arith.constant 0 : index
      %43 = vector.load %arg10[%c0_30, %c0_31, %c0_32] : memref<4x8x8xf32, #tpu.memory_space<vmem>>, vector<4x8x8xf32>
      tpu.vector_store %arg10[%c0_30, %c0_31, %c0_32], %42 {strides = array<i32>} : memref<4x8x8xf32, #tpu.memory_space<vmem>>, vector<4x8x8xf32>,
      %c0_33 = arith.constant 0 : index
      %c0_34 = arith.constant 0 : index
      %c0_35 = arith.constant 0 : index
      %44 = vector.load %arg8[%c0_33, %c0_34, %c0_35] : memref<4x8x1xf32, #tpu.memory_space<vmem>>, vector<4x8x1xf32>
      tpu.vector_store %arg8[%c0_33, %c0_34, %c0_35], %26 {strides = array<i32>} : memref<4x8x1xf32, #tpu.memory_space<vmem>>, vector<4x8x1xf32>,
    } else {
    }
    %17 = arith.cmpi eq, %3, %1 : i32
    %18 = arith.extui %17 : i1 to i32
    %c0_i32_13 = arith.constant 0 : i32
    %19 = arith.cmpi ne, %18, %c0_i32_13 : i32
    scf.if %19 {
      %23 = tpu.iota {dimensions = array<i32: 0>} : vector<8x8xi32>
      %24 = tpu.iota {dimensions = array<i32: 1>} : vector<8x8xi32>
      %25 = arith.cmpi sge, %23, %24 : vector<8x8xi32>
      %26 = vector.shape_cast %25 : vector<8x8xi1> to vector<1x8x8xi1>
      %cst_15 = arith.constant -2.38197653E+38 : f32
      %27 = vector.shape_cast %26 : vector<1x8x8xi1> to vector<1x8x8xi1>
      %28 = vector.broadcast %27 : vector<1x8x8xi1> to vector<4x8x8xi1>
      %29 = vector.broadcast %cst_15 : f32 to vector<4x8x8xf32>
      %30 = arith.select %28, %13, %29 : vector<4x8x8xi1>, vector<4x8x8xf32>
      %c0_16 = arith.constant 0 : index
      %c0_17 = arith.constant 0 : index
      %c0_18 = arith.constant 0 : index
      %31 = vector.load %arg8[%c0_16, %c0_17, %c0_18] : memref<4x8x1xf32, #tpu.memory_space<vmem>>, vector<4x8x1xf32>
      %cst_19 = arith.constant dense<0xFF800000> : vector<4x8xf32>
      %32 = vector.multi_reduction <maximumf>, %30, %cst_19 [2] : vector<4x8x8xf32> to vector<4x8xf32>
      %33 = vector.shape_cast %32 : vector<4x8xf32> to vector<4x8x1xf32>
      %34 = arith.maximumf %31, %33 : vector<4x8x1xf32>
      %35 = arith.subf %31, %34 : vector<4x8x1xf32>
      %36 = math.exp %35 : vector<4x8x1xf32>
      %37 = vector.broadcast %34 : vector<4x8x1xf32> to vector<4x8x8xf32>
      %38 = arith.subf %30, %37 : vector<4x8x8xf32>
      %39 = math.exp %38 : vector<4x8x8xf32>
      %c0_20 = arith.constant 0 : index
      %c0_21 = arith.constant 0 : index
      %c0_22 = arith.constant 0 : index
      %40 = vector.load %arg9[%c0_20, %c0_21, %c0_22] : memref<4x8x1xf32, #tpu.memory_space<vmem>>, vector<4x8x1xf32>
      %41 = arith.mulf %36, %40 : vector<4x8x1xf32>
      %cst_23 = arith.constant dense<0.000000e+00> : vector<4x8xf32>
      %42 = vector.multi_reduction <add>, %39, %cst_23 [2] : vector<4x8x8xf32> to vector<4x8xf32>
      %43 = vector.shape_cast %42 : vector<4x8xf32> to vector<4x8x1xf32>
      %44 = arith.addf %41, %43 : vector<4x8x1xf32>
      %c0_24 = arith.constant 0 : index
      %c0_25 = arith.constant 0 : index
      %c0_26 = arith.constant 0 : index
      %45 = vector.load %arg9[%c0_24, %c0_25, %c0_26] : memref<4x8x1xf32, #tpu.memory_space<vmem>>, vector<4x8x1xf32>
      tpu.vector_store %arg9[%c0_24, %c0_25, %c0_26], %44 {strides = array<i32>} : memref<4x8x1xf32, #tpu.memory_space<vmem>>, vector<4x8x1xf32>,
      %cst_27 = arith.constant dense<0.000000e+00> : vector<4x8x8xf32>
      %46 = tpu.matmul %39, %12, %cst_27 {dimension_numbers = #tpu.dot_dimension_numbers<[2], [1], [1], [2], [0, 0, 0, 1, 1, 2], [0], [0]>} : vector<4x8x8xf32>, vector<4x8x8xf32>, vector<4x8x8xf32> -> vector<4x8x8xf32>
      %c0_28 = arith.constant 0 : index
      %c0_29 = arith.constant 0 : index
      %c0_30 = arith.constant 0 : index
      %47 = vector.load %arg10[%c0_28, %c0_29, %c0_30] : memref<4x8x8xf32, #tpu.memory_space<vmem>>, vector<4x8x8xf32>
      %48 = vector.broadcast %36 : vector<4x8x1xf32> to vector<4x8x8xf32>
      %49 = arith.mulf %48, %47 : vector<4x8x8xf32>
      %50 = arith.addf %49, %46 : vector<4x8x8xf32>
      %c0_31 = arith.constant 0 : index
      %c0_32 = arith.constant 0 : index
      %c0_33 = arith.constant 0 : index
      %51 = vector.load %arg10[%c0_31, %c0_32, %c0_33] : memref<4x8x8xf32, #tpu.memory_space<vmem>>, vector<4x8x8xf32>
      tpu.vector_store %arg10[%c0_31, %c0_32, %c0_33], %50 {strides = array<i32>} : memref<4x8x8xf32, #tpu.memory_space<vmem>>, vector<4x8x8xf32>,
      %c0_34 = arith.constant 0 : index
      %c0_35 = arith.constant 0 : index
      %c0_36 = arith.constant 0 : index
      %52 = vector.load %arg8[%c0_34, %c0_35, %c0_36] : memref<4x8x1xf32, #tpu.memory_space<vmem>>, vector<4x8x1xf32>
      tpu.vector_store %arg8[%c0_34, %c0_35, %c0_36], %34 {strides = array<i32>} : memref<4x8x1xf32, #tpu.memory_space<vmem>>, vector<4x8x1xf32>,
    } else {
    }
    %20 = arith.cmpi eq, %3, %1 : i32
    %21 = arith.extui %20 : i1 to i32
    %c0_i32_14 = arith.constant 0 : i32
    %22 = arith.cmpi ne, %21, %c0_i32_14 : i32
    scf.if %22 {
      %c0_15 = arith.constant 0 : index
      %c0_16 = arith.constant 0 : index
      %c0_17 = arith.constant 0 : index
      %23 = vector.load %arg9[%c0_15, %c0_16, %c0_17] : memref<4x8x1xf32, #tpu.memory_space<vmem>>, vector<4x8x1xf32>
      %24 = tpu.reciprocal %23 : vector<4x8x1xf32> -> vector<4x8x1xf32>
      %c0_18 = arith.constant 0 : index
      %c0_19 = arith.constant 0 : index
      %c0_20 = arith.constant 0 : index
      %25 = vector.load %arg10[%c0_18, %c0_19, %c0_20] : memref<4x8x8xf32, #tpu.memory_space<vmem>>, vector<4x8x8xf32>
      %26 = vector.broadcast %24 : vector<4x8x1xf32> to vector<4x8x8xf32>
      %27 = arith.mulf %25, %26 : vector<4x8x8xf32>
      %28 = vector.extract_strided_slice %27 {offsets = [0, 0, 0], sizes = [1, 8, 8], strides = [1, 1, 1]} : vector<4x8x8xf32> to vector<1x8x8xf32>
      %29 = vector.shape_cast %28 : vector<1x8x8xf32> to vector<8x8xf32>
      %30 = vector.extract_strided_slice %27 {offsets = [1, 0, 0], sizes = [1, 8, 8], strides = [1, 1, 1]} : vector<4x8x8xf32> to vector<1x8x8xf32>
      %31 = vector.shape_cast %30 : vector<1x8x8xf32> to vector<8x8xf32>
      %32 = vector.extract_strided_slice %27 {offsets = [2, 0, 0], sizes = [1, 8, 8], strides = [1, 1, 1]} : vector<4x8x8xf32> to vector<1x8x8xf32>
      %33 = vector.shape_cast %32 : vector<1x8x8xf32> to vector<8x8xf32>
      %34 = vector.extract_strided_slice %27 {offsets = [3, 0, 0], sizes = [1, 8, 8], strides = [1, 1, 1]} : vector<4x8x8xf32> to vector<1x8x8xf32>
      %35 = vector.shape_cast %34 : vector<1x8x8xf32> to vector<8x8xf32>
      %36 = tpu.concatenate %29, %31, %33, %35 in 1 : vector<8x8xf32>, vector<8x8xf32>, vector<8x8xf32>, vector<8x8xf32> -> vector<8x32xf32>
      %c0_21 = arith.constant 0 : index
      %c0_22 = arith.constant 0 : index
      %c0_23 = arith.constant 0 : index
      %37 = vector.load %arg7[%c0_21, %c0_22, %c0_23] : memref<1x8x32xf32, #tpu.memory_space<vmem>>, vector<1x8x32xf32>
      %38 = vector.shape_cast %37 : vector<1x8x32xf32> to vector<8x32xf32>
      %39 = vector.shape_cast %36 : vector<8x32xf32> to vector<1x8x32xf32>
      tpu.vector_store %arg7[%c0_21, %c0_22, %c0_23], %39 {strides = array<i32>} : memref<1x8x32xf32, #tpu.memory_space<vmem>>, vector<1x8x32xf32>,
    } else {
    }
    return
  }
  func.func @transform_0(%arg0: i32, %arg1: i32, %arg2: memref<3xi32, #tpu.memory_space<smem>>, %arg3: memref<3xi32, #tpu.memory_space<smem>>) -> (i32, i32, i32, i32) {
    %0 = arith.index_cast %arg1 : i32 to index
    %1 = memref.load %arg2[%0] : memref<3xi32, #tpu.memory_space<smem>>
    %c0_i32 = arith.constant 0 : i32
    %c0_i32_0 = arith.constant 0 : i32
    %c0_i32_1 = arith.constant 0 : i32
    return %arg0, %c0_i32, %1, %c0_i32_0 : i32, i32, i32, i32
  }
  func.func @transform_1(%arg0: i32, %arg1: i32, %arg2: memref<3xi32, #tpu.memory_space<smem>>, %arg3: memref<3xi32, #tpu.memory_space<smem>>) -> (i32, i32, i32, i32) {
    %0 = arith.index_cast %arg1 : i32 to index
    %1 = memref.load %arg3[%0] : memref<3xi32, #tpu.memory_space<smem>>
    %c1_i32 = arith.constant 1 : i32
    %c0_i32 = arith.constant 0 : i32
    %c0_i32_0 = arith.constant 0 : i32
    return %arg0, %c1_i32, %1, %c0_i32 : i32, i32, i32, i32
  }
  func.func @transform_2(%arg0: i32, %arg1: i32, %arg2: memref<3xi32, #tpu.memory_space<smem>>, %arg3: memref<3xi32, #tpu.memory_space<smem>>) -> (i32, i32, i32, i32) {
    %0 = arith.index_cast %arg1 : i32 to index
    %1 = memref.load %arg3[%0] : memref<3xi32, #tpu.memory_space<smem>>
    %c2_i32 = arith.constant 2 : i32
    %c0_i32 = arith.constant 0 : i32
    %c0_i32_0 = arith.constant 0 : i32
    return %arg0, %c2_i32, %1, %c0_i32 : i32, i32, i32, i32
  }
  func.func @transform_3(%arg0: i32, %arg1: i32, %arg2: memref<3xi32, #tpu.memory_space<smem>>, %arg3: memref<3xi32, #tpu.memory_space<smem>>) -> (i32, i32, i32) {
    %0 = arith.index_cast %arg1 : i32 to index
    %1 = memref.load %arg2[%0] : memref<3xi32, #tpu.memory_space<smem>>
    %c0_i32 = arith.constant 0 : i32
    %c0_i32_0 = arith.constant 0 : i32
    return %arg0, %1, %c0_i32 : i32, i32, i32
  }
}

module attributes {stable_mosaic.version = 11 : i64} {
  func.func @proj_mlp_kernel(%arg0: i32, %arg1: i32, %arg2: i32, %arg3: memref<1x8x32xf32, #tpu.memory_space<vmem>>, %arg4: memref<1x8x32xf32, #tpu.memory_space<vmem>>, %arg5: memref<32x32xf32, #tpu.memory_space<vmem>>, %arg6: memref<1x32xf32, #tpu.memory_space<vmem>>, %arg7: memref<1x32xf32, #tpu.memory_space<vmem>>, %arg8: memref<1x32xf32, #tpu.memory_space<vmem>>, %arg9: memref<32x128xf32, #tpu.memory_space<vmem>>, %arg10: memref<1x128xf32, #tpu.memory_space<vmem>>, %arg11: memref<128x32xf32, #tpu.memory_space<vmem>>, %arg12: memref<1x32xf32, #tpu.memory_space<vmem>>, %arg13: memref<1x8x32xf32, #tpu.memory_space<vmem>>, %arg14: memref<8x32xf32, #tpu.memory_space<vmem>>, %arg15: memref<8x32xf32, #tpu.memory_space<vmem>>, %arg16: memref<8x32xf32, #tpu.memory_space<vmem>>) attributes {dimension_semantics = [#tpu.dimension_semantics<parallel>, #tpu.dimension_semantics<parallel>, #tpu.dimension_semantics<arbitrary>], iteration_bounds = array<i64: 2, 2, 1>, scalar_prefetch = 0 : i64, scratch_operands = 3 : i64, tpu.core_type = #tpu.core_type<tc>, window_params = [{transform_indices = @transform_0, window_bounds = array<i64: 1, 8, 32>}, {transform_indices = @transform_1, window_bounds = array<i64: 1, 8, 32>}, {pipeline_mode = #tpu.pipeline_mode<synchronous>, transform_indices = @transform_2, window_bounds = array<i64: 32, 32>}, {pipeline_mode = #tpu.pipeline_mode<synchronous>, transform_indices = @transform_3, window_bounds = array<i64: 1, 32>}, {pipeline_mode = #tpu.pipeline_mode<synchronous>, transform_indices = @transform_4, window_bounds = array<i64: 1, 32>}, {pipeline_mode = #tpu.pipeline_mode<synchronous>, transform_indices = @transform_5, window_bounds = array<i64: 1, 32>}, {transform_indices = @transform_6, window_bounds = array<i64: 32, 128>}, {transform_indices = @transform_7, window_bounds = array<i64: 1, 128>}, {transform_indices = @transform_8, window_bounds = array<i64: 128, 32>}, {pipeline_mode = #tpu.pipeline_mode<synchronous>, transform_indices = @transform_9, window_bounds = array<i64: 1, 32>}, {transform_indices = @transform_10, window_bounds = array<i64: 1, 8, 32>}]} {
    %c0_i32 = arith.constant 0 : i32
    %0 = arith.cmpi eq, %arg2, %c0_i32 : i32
    %1 = arith.extui %0 : i1 to i32
    %c0_i32_0 = arith.constant 0 : i32
    %2 = arith.cmpi ne, %1, %c0_i32_0 : i32
    scf.if %2 {
      %c0_30 = arith.constant 0 : index
      %c0_31 = arith.constant 0 : index
      %c0_32 = arith.constant 0 : index
      %59 = vector.load %arg3[%c0_30, %c0_31, %c0_32] : memref<1x8x32xf32, #tpu.memory_space<vmem>>, vector<1x8x32xf32>
      %60 = vector.shape_cast %59 : vector<1x8x32xf32> to vector<8x32xf32>
      %c0_33 = arith.constant 0 : index
      %c0_34 = arith.constant 0 : index
      %61 = vector.load %arg5[%c0_33, %c0_34] : memref<32x32xf32, #tpu.memory_space<vmem>>, vector<32x32xf32>
      %c0_35 = arith.constant 0 : index
      %c0_36 = arith.constant 0 : index
      %c0_37 = arith.constant 0 : index
      %62 = vector.load %arg4[%c0_35, %c0_36, %c0_37] : memref<1x8x32xf32, #tpu.memory_space<vmem>>, vector<1x8x32xf32>
      %63 = vector.shape_cast %62 : vector<1x8x32xf32> to vector<8x32xf32>
      %cst_38 = arith.constant dense<0.000000e+00> : vector<8x32xf32>
      %64 = tpu.matmul %63, %61, %cst_38 {dimension_numbers = #tpu.dot_dimension_numbers<[1], [0], [0], [1], [0, 0, 1, 1], [], []>} : vector<8x32xf32>, vector<32x32xf32>, vector<8x32xf32> -> vector<8x32xf32>
      %65 = arith.addf %60, %64 : vector<8x32xf32>
      %c0_39 = arith.constant 0 : index
      %c0_40 = arith.constant 0 : index
      %66 = vector.load %arg6[%c0_39, %c0_40] : memref<1x32xf32, #tpu.memory_space<vmem>>, vector<1x32xf32>
      %67 = vector.shape_cast %66 : vector<1x32xf32> to vector<32xf32>
      %68 = vector.shape_cast %67 : vector<32xf32> to vector<1x32xf32>
      %69 = vector.broadcast %68 : vector<1x32xf32> to vector<8x32xf32>
      %70 = arith.addf %65, %69 : vector<8x32xf32>
      %c0_41 = arith.constant 0 : index
      %c0_42 = arith.constant 0 : index
      %71 = vector.load %arg14[%c0_41, %c0_42] : memref<8x32xf32, #tpu.memory_space<vmem>>, vector<8x32xf32>
      tpu.vector_store %arg14[%c0_41, %c0_42], %70 {strides = array<i32>} : memref<8x32xf32, #tpu.memory_space<vmem>>, vector<8x32xf32>,
      %c0_43 = arith.constant 0 : index
      %c0_44 = arith.constant 0 : index
      %72 = vector.load %arg7[%c0_43, %c0_44] : memref<1x32xf32, #tpu.memory_space<vmem>>, vector<1x32xf32>
      %73 = vector.shape_cast %72 : vector<1x32xf32> to vector<32xf32>
      %c0_45 = arith.constant 0 : index
      %c0_46 = arith.constant 0 : index
      %74 = vector.load %arg8[%c0_45, %c0_46] : memref<1x32xf32, #tpu.memory_space<vmem>>, vector<1x32xf32>
      %75 = vector.shape_cast %74 : vector<1x32xf32> to vector<32xf32>
      %cst_47 = arith.constant dense<0.000000e+00> : vector<8xf32>
      %76 = vector.multi_reduction <add>, %70, %cst_47 [1] : vector<8x32xf32> to vector<8xf32>
      %77 = vector.shape_cast %76 : vector<8xf32> to vector<8x1xf32>
      %cst_48 = arith.constant 3.200000e+01 : f32
      %78 = vector.broadcast %cst_48 : f32 to vector<8x1xf32>
      %79 = arith.divf %77, %78 : vector<8x1xf32>
      %80 = vector.broadcast %79 : vector<8x1xf32> to vector<8x32xf32>
      %81 = arith.subf %70, %80 : vector<8x32xf32>
      %82 = arith.mulf %81, %81 : vector<8x32xf32>
      %cst_49 = arith.constant dense<0.000000e+00> : vector<8xf32>
      %83 = vector.multi_reduction <add>, %82, %cst_49 [1] : vector<8x32xf32> to vector<8xf32>
      %84 = vector.shape_cast %83 : vector<8xf32> to vector<8x1xf32>
      %cst_50 = arith.constant 3.200000e+01 : f32
      %85 = vector.broadcast %cst_50 : f32 to vector<8x1xf32>
      %86 = arith.divf %84, %85 : vector<8x1xf32>
      %87 = vector.broadcast %79 : vector<8x1xf32> to vector<8x32xf32>
      %88 = arith.subf %70, %87 : vector<8x32xf32>
      %cst_51 = arith.constant 9.99999974E-6 : f32
      %89 = vector.broadcast %cst_51 : f32 to vector<8x1xf32>
      %90 = arith.addf %86, %89 : vector<8x1xf32>
      %91 = math.rsqrt %90 : vector<8x1xf32>
      %92 = vector.broadcast %91 : vector<8x1xf32> to vector<8x32xf32>
      %93 = arith.mulf %88, %92 : vector<8x32xf32>
      %94 = vector.shape_cast %73 : vector<32xf32> to vector<1x32xf32>
      %95 = vector.broadcast %94 : vector<1x32xf32> to vector<8x32xf32>
      %96 = arith.mulf %93, %95 : vector<8x32xf32>
      %97 = vector.shape_cast %75 : vector<32xf32> to vector<1x32xf32>
      %98 = vector.broadcast %97 : vector<1x32xf32> to vector<8x32xf32>
      %99 = arith.addf %96, %98 : vector<8x32xf32>
      %c0_52 = arith.constant 0 : index
      %c0_53 = arith.constant 0 : index
      %100 = vector.load %arg15[%c0_52, %c0_53] : memref<8x32xf32, #tpu.memory_space<vmem>>, vector<8x32xf32>
      tpu.vector_store %arg15[%c0_52, %c0_53], %99 {strides = array<i32>} : memref<8x32xf32, #tpu.memory_space<vmem>>, vector<8x32xf32>,
      %cst_54 = arith.constant 0.000000e+00 : f32
      %101 = vector.broadcast %cst_54 : f32 to vector<8x32xf32>
      %c0_55 = arith.constant 0 : index
      %c0_56 = arith.constant 0 : index
      %102 = vector.load %arg16[%c0_55, %c0_56] : memref<8x32xf32, #tpu.memory_space<vmem>>, vector<8x32xf32>
      tpu.vector_store %arg16[%c0_55, %c0_56], %101 {strides = array<i32>} : memref<8x32xf32, #tpu.memory_space<vmem>>, vector<8x32xf32>,
    } else {
    }
    %c0 = arith.constant 0 : index
    %c0_1 = arith.constant 0 : index
    %3 = vector.load %arg9[%c0, %c0_1] : memref<32x128xf32, #tpu.memory_space<vmem>>, vector<32x128xf32>
    %c0_2 = arith.constant 0 : index
    %c0_3 = arith.constant 0 : index
    %4 = vector.load %arg15[%c0_2, %c0_3] : memref<8x32xf32, #tpu.memory_space<vmem>>, vector<8x32xf32>
    %cst = arith.constant dense<0.000000e+00> : vector<8x128xf32>
    %5 = tpu.matmul %4, %3, %cst {dimension_numbers = #tpu.dot_dimension_numbers<[1], [0], [0], [1], [0, 0, 1, 1], [], []>} : vector<8x32xf32>, vector<32x128xf32>, vector<8x128xf32> -> vector<8x128xf32>
    %c0_4 = arith.constant 0 : index
    %c0_5 = arith.constant 0 : index
    %6 = vector.load %arg10[%c0_4, %c0_5] : memref<1x128xf32, #tpu.memory_space<vmem>>, vector<1x128xf32>
    %7 = vector.shape_cast %6 : vector<1x128xf32> to vector<128xf32>
    %8 = vector.shape_cast %7 : vector<128xf32> to vector<1x128xf32>
    %9 = vector.broadcast %8 : vector<1x128xf32> to vector<8x128xf32>
    %10 = arith.addf %5, %9 : vector<8x128xf32>
    %cst_6 = arith.constant 5.000000e-01 : f32
    %11 = vector.broadcast %cst_6 : f32 to vector<8x128xf32>
    %12 = arith.mulf %11, %10 : vector<8x128xf32>
    %cst_7 = arith.constant 0.707106769 : f32
    %13 = vector.broadcast %cst_7 : f32 to vector<8x128xf32>
    %14 = arith.mulf %10, %13 : vector<8x128xf32>
    %15 = math.absf %14 : vector<8x128xf32>
    %cst_8 = arith.constant 0.327591091 : f32
    %16 = vector.broadcast %cst_8 : f32 to vector<8x128xf32>
    %17 = arith.mulf %16, %15 : vector<8x128xf32>
    %cst_9 = arith.constant 1.000000e+00 : f32
    %18 = vector.broadcast %cst_9 : f32 to vector<8x128xf32>
    %19 = arith.addf %18, %17 : vector<8x128xf32>
    %cst_10 = arith.constant 1.000000e+00 : f32
    %20 = vector.broadcast %cst_10 : f32 to vector<8x128xf32>
    %21 = arith.divf %20, %19 : vector<8x128xf32>
    %cst_11 = arith.constant 1.06140542 : f32
    %22 = vector.broadcast %cst_11 : f32 to vector<8x128xf32>
    %23 = arith.mulf %22, %21 : vector<8x128xf32>
    %cst_12 = arith.constant -1.45315206 : f32
    %24 = vector.broadcast %cst_12 : f32 to vector<8x128xf32>
    %25 = arith.addf %23, %24 : vector<8x128xf32>
    %26 = arith.mulf %25, %21 : vector<8x128xf32>
    %cst_13 = arith.constant 1.42141378 : f32
    %27 = vector.broadcast %cst_13 : f32 to vector<8x128xf32>
    %28 = arith.addf %26, %27 : vector<8x128xf32>
    %29 = arith.mulf %28, %21 : vector<8x128xf32>
    %cst_14 = arith.constant -0.284496725 : f32
    %30 = vector.broadcast %cst_14 : f32 to vector<8x128xf32>
    %31 = arith.addf %29, %30 : vector<8x128xf32>
    %32 = arith.mulf %31, %21 : vector<8x128xf32>
    %cst_15 = arith.constant 0.254829586 : f32
    %33 = vector.broadcast %cst_15 : f32 to vector<8x128xf32>
    %34 = arith.addf %32, %33 : vector<8x128xf32>
    %35 = arith.mulf %34, %21 : vector<8x128xf32>
    %cst_16 = arith.constant 0.000000e+00 : f32
    %36 = vector.broadcast %cst_16 : f32 to vector<8x128xf32>
    %37 = arith.subf %36, %15 : vector<8x128xf32>
    %38 = arith.mulf %37, %15 : vector<8x128xf32>
    %39 = math.exp %38 : vector<8x128xf32>
    %40 = arith.mulf %35, %39 : vector<8x128xf32>
    %cst_17 = arith.constant 1.000000e+00 : f32
    %41 = vector.broadcast %cst_17 : f32 to vector<8x128xf32>
    %42 = arith.subf %41, %40 : vector<8x128xf32>
    %cst_18 = arith.constant 0.000000e+00 : f32
    %43 = vector.broadcast %cst_18 : f32 to vector<8x128xf32>
    %44 = arith.cmpf oge, %14, %43 : vector<8x128xf32>
    %cst_19 = arith.constant 0.000000e+00 : f32
    %45 = vector.broadcast %cst_19 : f32 to vector<8x128xf32>
    %46 = arith.subf %45, %42 : vector<8x128xf32>
    %47 = arith.select %44, %42, %46 : vector<8x128xi1>, vector<8x128xf32>
    %cst_20 = arith.constant 1.000000e+00 : f32
    %48 = vector.broadcast %cst_20 : f32 to vector<8x128xf32>
    %49 = arith.addf %48, %47 : vector<8x128xf32>
    %50 = arith.mulf %12, %49 : vector<8x128xf32>
    %c0_21 = arith.constant 0 : index
    %c0_22 = arith.constant 0 : index
    %51 = vector.load %arg11[%c0_21, %c0_22] : memref<128x32xf32, #tpu.memory_space<vmem>>, vector<128x32xf32>
    %c0_23 = arith.constant 0 : index
    %c0_24 = arith.constant 0 : index
    %52 = vector.load %arg16[%c0_23, %c0_24] : memref<8x32xf32, #tpu.memory_space<vmem>>, vector<8x32xf32>
    %cst_25 = arith.constant dense<0.000000e+00> : vector<8x32xf32>
    %53 = tpu.matmul %50, %51, %cst_25 {dimension_numbers = #tpu.dot_dimension_numbers<[1], [0], [0], [1], [0, 0, 1, 1], [], []>} : vector<8x128xf32>, vector<128x32xf32>, vector<8x32xf32> -> vector<8x32xf32>
    %54 = arith.addf %52, %53 : vector<8x32xf32>
    %c0_26 = arith.constant 0 : index
    %c0_27 = arith.constant 0 : index
    %55 = vector.load %arg16[%c0_26, %c0_27] : memref<8x32xf32, #tpu.memory_space<vmem>>, vector<8x32xf32>
    tpu.vector_store %arg16[%c0_26, %c0_27], %54 {strides = array<i32>} : memref<8x32xf32, #tpu.memory_space<vmem>>, vector<8x32xf32>,
    %c0_i32_28 = arith.constant 0 : i32
    %56 = arith.cmpi eq, %arg2, %c0_i32_28 : i32
    %57 = arith.extui %56 : i1 to i32
    %c0_i32_29 = arith.constant 0 : i32
    %58 = arith.cmpi ne, %57, %c0_i32_29 : i32
    scf.if %58 {
      %c0_30 = arith.constant 0 : index
      %c0_31 = arith.constant 0 : index
      %59 = vector.load %arg14[%c0_30, %c0_31] : memref<8x32xf32, #tpu.memory_space<vmem>>, vector<8x32xf32>
      %c0_32 = arith.constant 0 : index
      %c0_33 = arith.constant 0 : index
      %60 = vector.load %arg16[%c0_32, %c0_33] : memref<8x32xf32, #tpu.memory_space<vmem>>, vector<8x32xf32>
      %61 = arith.addf %59, %60 : vector<8x32xf32>
      %c0_34 = arith.constant 0 : index
      %c0_35 = arith.constant 0 : index
      %62 = vector.load %arg12[%c0_34, %c0_35] : memref<1x32xf32, #tpu.memory_space<vmem>>, vector<1x32xf32>
      %63 = vector.shape_cast %62 : vector<1x32xf32> to vector<32xf32>
      %64 = vector.shape_cast %63 : vector<32xf32> to vector<1x32xf32>
      %65 = vector.broadcast %64 : vector<1x32xf32> to vector<8x32xf32>
      %66 = arith.addf %61, %65 : vector<8x32xf32>
      %c0_36 = arith.constant 0 : index
      %c0_37 = arith.constant 0 : index
      %c0_38 = arith.constant 0 : index
      %67 = vector.load %arg13[%c0_36, %c0_37, %c0_38] : memref<1x8x32xf32, #tpu.memory_space<vmem>>, vector<1x8x32xf32>
      %68 = vector.shape_cast %67 : vector<1x8x32xf32> to vector<8x32xf32>
      %69 = vector.shape_cast %66 : vector<8x32xf32> to vector<1x8x32xf32>
      tpu.vector_store %arg13[%c0_36, %c0_37, %c0_38], %69 {strides = array<i32>} : memref<1x8x32xf32, #tpu.memory_space<vmem>>, vector<1x8x32xf32>,
    } else {
    }
    return
  }
  func.func @transform_0(%arg0: i32, %arg1: i32, %arg2: i32) -> (i32, i32, i32) {
    %c0_i32 = arith.constant 0 : i32
    %c0_i32_0 = arith.constant 0 : i32
    return %arg0, %arg1, %c0_i32 : i32, i32, i32
  }
  func.func @transform_1(%arg0: i32, %arg1: i32, %arg2: i32) -> (i32, i32, i32) {
    %c0_i32 = arith.constant 0 : i32
    %c0_i32_0 = arith.constant 0 : i32
    return %arg0, %arg1, %c0_i32 : i32, i32, i32
  }
  func.func @transform_2(%arg0: i32, %arg1: i32, %arg2: i32) -> (i32, i32) {
    %c0_i32 = arith.constant 0 : i32
    %c0_i32_0 = arith.constant 0 : i32
    %c0_i32_1 = arith.constant 0 : i32
    return %c0_i32, %c0_i32_0 : i32, i32
  }
  func.func @transform_3(%arg0: i32, %arg1: i32, %arg2: i32) -> (i32, i32) {
    %c0_i32 = arith.constant 0 : i32
    %c0_i32_0 = arith.constant 0 : i32
    %c0_i32_1 = arith.constant 0 : i32
    return %c0_i32, %c0_i32_0 : i32, i32
  }
  func.func @transform_4(%arg0: i32, %arg1: i32, %arg2: i32) -> (i32, i32) {
    %c0_i32 = arith.constant 0 : i32
    %c0_i32_0 = arith.constant 0 : i32
    %c0_i32_1 = arith.constant 0 : i32
    return %c0_i32, %c0_i32_0 : i32, i32
  }
  func.func @transform_5(%arg0: i32, %arg1: i32, %arg2: i32) -> (i32, i32) {
    %c0_i32 = arith.constant 0 : i32
    %c0_i32_0 = arith.constant 0 : i32
    %c0_i32_1 = arith.constant 0 : i32
    return %c0_i32, %c0_i32_0 : i32, i32
  }
  func.func @transform_6(%arg0: i32, %arg1: i32, %arg2: i32) -> (i32, i32) {
    %c0_i32 = arith.constant 0 : i32
    %c0_i32_0 = arith.constant 0 : i32
    return %c0_i32, %arg2 : i32, i32
  }
  func.func @transform_7(%arg0: i32, %arg1: i32, %arg2: i32) -> (i32, i32) {
    %c0_i32 = arith.constant 0 : i32
    %c0_i32_0 = arith.constant 0 : i32
    return %c0_i32, %arg2 : i32, i32
  }
  func.func @transform_8(%arg0: i32, %arg1: i32, %arg2: i32) -> (i32, i32) {
    %c0_i32 = arith.constant 0 : i32
    %c0_i32_0 = arith.constant 0 : i32
    return %arg2, %c0_i32 : i32, i32
  }
  func.func @transform_9(%arg0: i32, %arg1: i32, %arg2: i32) -> (i32, i32) {
    %c0_i32 = arith.constant 0 : i32
    %c0_i32_0 = arith.constant 0 : i32
    %c0_i32_1 = arith.constant 0 : i32
    return %c0_i32, %c0_i32_0 : i32, i32
  }
  func.func @transform_10(%arg0: i32, %arg1: i32, %arg2: i32) -> (i32, i32, i32) {
    %c0_i32 = arith.constant 0 : i32
    %c0_i32_0 = arith.constant 0 : i32
    return %arg0, %arg1, %c0_i32 : i32, i32, i32
  }
}

</mosaic_0001>

<llo_original>
// kernel: block_forward.3
$region0: #{block_forward.3}
  #allocation0 [shape = 'u32[]', space=smem, size = 0x4, offset = 0x4, fixed_abs, tag = 'smem constant byte address 0x4 - core index']
  #allocation1 [shape = 'u32[144,128]{1,0:T(1,128)}', space=vmem, size = 0x12000, scoped, tag = 'internal scratch']
  %s0 = inlined_call_operand.hbm [shape: f32[2,16,32], index: 0, kind: input, shape index: {}]
  %s1 = inlined_call_operand.vmem [shape: f32[1,32], index: 1, kind: input, shape index: {}]
  %s2 = inlined_call_operand.vmem [shape: f32[1,32], index: 2, kind: input, shape index: {}]
  %s3 = inlined_call_operand.vmem [shape: f32[32,96], index: 3, kind: input, shape index: {}]
  %s4 = inlined_call_operand.vmem [shape: f32[1,96], index: 4, kind: input, shape index: {}]
  %s5 = inlined_call_operand.vmem [shape: f32[2,12,16,8], index: 5, kind: output, shape index: {}]
  %s6 = sld [smem:[#allocation0]]
  $region91: #{block_forward.3} parent=0
    _
  %s8 = ssub.s32 1, %s6
  %s9 = scalar_select 0, %s8, %s6
  $region1: #{block_forward.3} parent=0
    #allocation2 [shape = 'u8[8192]{0}', space=vmem, size = 0x2000, scoped, tag = 'input window, operand 0']
    #allocation3 [shape = 's32[2]{0}', space=sflag, size = 0x8, scoped, tag = 'scoped memory for block_forward.3']
    #allocation4 [shape = 'u8[98304]{0}', space=vmem, size = 0x18000, scoped, tag = 'output window, operand 0']
    %10 = vsyncpa [#allocation3], 0
    %s11 = scalar_lea.sflag [#allocation3], 1
    %12 = vsyncpa %s11, 0
    loop: start=0, step=1, limit=6
    $region2: #{block_forward.3} parent=1 // loop_pre_header
      _
    $region3: #{block_forward.3} parent=1 // loop_header
      %s14 = sphi 0, %s18
      %p15 = scmp.ge.s32.totalorder %s14, 6
      %s21 = sphi 0, %s33
      %s22 = sphi 0, %s29
      %s23 = sphi 0, %s21
      %s24 = sphi 0, %s22
      %s25 = sphi 0, %s23
      %s26 = sphi 0, %s24
      %s38 = sphi 0, %s40
      %s41 = sphi 0, %s38
      %s42 = sphi 0, %s41
      %s58 = sphi 0, %s42
      %s62 = sphi 0, %s62
      %s64 = sphi 0, %s62
      %s65 = sphi 0, %s64
      %s79 = sphi 0, %s65
      %s83 = sphi 0, %s83
      %s85 = sphi 0, %s83
      %s86 = sphi 0, %s85
      %s100 = sphi 0, %s86
      %s104 = sphi 0, %s104
      %s106 = sphi 0, %s104
      %s107 = sphi 0, %s106
      %s121 = sphi 0, %s107
      %s125 = sphi 0, %s125
      %s127 = sphi 0, %s125
      %s128 = sphi 0, %s127
      %s142 = sphi 0, %s128
      %s150 = sphi 0, %s152
      %s153 = sphi 0, %s150
      %s154 = sphi 0, %s153
      %s170 = sphi 0, %s154
    $region4: #{block_forward.3} parent=1 // loop_header_branch
      %17 = sbr.rel (%p15) target = $region8
    $region5: #{block_forward.3} parent=1 // loop_body
      %s19 = ssub.s32 %s14, 1
      %s20 = ssub.s32 %s14, 2
      %s27 = sadd.s32 1, %s22
      %p28 = scmp.ge.s32.totalorder %s27, 2
      %s29 = scalar_select %p28, 0, %s27
      %s30 = sadd.s32 1, %s21
      %s31 = scalar_select %p28, %s30, %s21
      %p32 = scmp.ge.s32.totalorder %s31, 2
      %s33 = scalar_select %p32, 0, %s31
      %s34 = ssub.s32 %s21, %s33
      %s35 = ssub.s32 %s22, %s29
      %s36 = sor.u32 %s34, %s35
      %p37 = scmp.eq.s32.totalorder %s36, 0
      %s39 = sadd.s32 %s38, 1
      %s40 = scalar_select %p37, %s38, %s39
      %p43 = pneg %p37
      %p44 = scmp.eq.s32.totalorder %s14, 3
      %p45 = por %p43, %p44
      %p46 = scmp.ne.s32.totalorder %s38, %s41
      %p47 = scmp.eq.s32.totalorder %s14, 0
      %p48 = por %p46, %p47
      %p49 = scmp.ne.s32.totalorder %s38, %s41
      %p50 = scmp.eq.s32.totalorder %s19, 3
      %p51 = por %p49, %p50
      %p52 = scmp.ne.s32.totalorder %s41, %s42
      %p53 = scmp.eq.s32.totalorder %s19, 0
      %p54 = por %p52, %p53
      %p55 = scmp.ne.s32.totalorder %s41, %s42
      %p56 = scmp.eq.s32.totalorder %s20, 3
      %p57 = por %p55, %p56
      %p59 = scmp.ne.s32.totalorder %s42, %s58
      %p60 = scmp.eq.s32.totalorder %s20, 0
      %p61 = por %p59, %p60
      %s63 = sadd.s32 %s62, 1
      %p66 = scmp.eq.s32.totalorder %s14, 3
      %p67 = scmp.ne.s32.totalorder %s62, %s64
      %p68 = scmp.eq.s32.totalorder %s14, 0
      %p69 = por %p67, %p68
      %p70 = scmp.ne.s32.totalorder %s62, %s64
      %p71 = scmp.eq.s32.totalorder %s19, 3
      %p72 = por %p70, %p71
      %p73 = scmp.ne.s32.totalorder %s64, %s65
      %p74 = scmp.eq.s32.totalorder %s19, 0
      %p75 = por %p73, %p74
      %p76 = scmp.ne.s32.totalorder %s64, %s65
      %p77 = scmp.eq.s32.totalorder %s20, 3
      %p78 = por %p76, %p77
      %p80 = scmp.ne.s32.totalorder %s65, %s79
      %p81 = scmp.eq.s32.totalorder %s20, 0
      %p82 = por %p80, %p81
      %s84 = sadd.s32 %s83, 1
      %p87 = scmp.eq.s32.totalorder %s14, 3
      %p88 = scmp.ne.s32.totalorder %s83, %s85
      %p89 = scmp.eq.s32.totalorder %s14, 0
      %p90 = por %p88, %p89
      %p91 = scmp.ne.s32.totalorder %s83, %s85
      %p92 = scmp.eq.s32.totalorder %s19, 3
      %p93 = por %p91, %p92
      %p94 = scmp.ne.s32.totalorder %s85, %s86
      %p95 = scmp.eq.s32.totalorder %s19, 0
      %p96 = por %p94, %p95
      %p97 = scmp.ne.s32.totalorder %s85, %s86
      %p98 = scmp.eq.s32.totalorder %s20, 3
      %p99 = por %p97, %p98
      %p101 = scmp.ne.s32.totalorder %s86, %s100
      %p102 = scmp.eq.s32.totalorder %s20, 0
      %p103 = por %p101, %p102
      %s105 = sadd.s32 %s104, 1
      %p108 = scmp.eq.s32.totalorder %s14, 3
      %p109 = scmp.ne.s32.totalorder %s104, %s106
      %p110 = scmp.eq.s32.totalorder %s14, 0
      %p111 = por %p109, %p110
      %p112 = scmp.ne.s32.totalorder %s104, %s106
      %p113 = scmp.eq.s32.totalorder %s19, 3
      %p114 = por %p112, %p113
      %p115 = scmp.ne.s32.totalorder %s106, %s107
      %p116 = scmp.eq.s32.totalorder %s19, 0
      %p117 = por %p115, %p116
      %p118 = scmp.ne.s32.totalorder %s106, %s107
      %p119 = scmp.eq.s32.totalorder %s20, 3
      %p120 = por %p118, %p119
      %p122 = scmp.ne.s32.totalorder %s107, %s121
      %p123 = scmp.eq.s32.totalorder %s20, 0
      %p124 = por %p122, %p123
      %s126 = sadd.s32 %s125, 1
      %p129 = scmp.eq.s32.totalorder %s14, 3
      %p130 = scmp.ne.s32.totalorder %s125, %s127
      %p131 = scmp.eq.s32.totalorder %s14, 0
      %p132 = por %p130, %p131
      %p133 = scmp.ne.s32.totalorder %s125, %s127
      %p134 = scmp.eq.s32.totalorder %s19, 3
      %p135 = por %p133, %p134
      %p136 = scmp.ne.s32.totalorder %s127, %s128
      %p137 = scmp.eq.s32.totalorder %s19, 0
      %p138 = por %p136, %p137
      %p139 = scmp.ne.s32.totalorder %s127, %s128
      %p140 = scmp.eq.s32.totalorder %s20, 3
      %p141 = por %p139, %p140
      %p143 = scmp.ne.s32.totalorder %s128, %s142
      %p144 = scmp.eq.s32.totalorder %s20, 0
      %p145 = por %p143, %p144
      %s146 = ssub.s32 %s21, %s33
      %s147 = ssub.s32 %s22, %s29
      %s148 = sor.u32 %s146, %s147
      %p149 = scmp.eq.s32.totalorder %s148, 0
      %s151 = sadd.s32 %s150, 1
      %s152 = scalar_select %p149, %s150, %s151
      %p155 = pneg %p149
      %p156 = scmp.eq.s32.totalorder %s14, 3
      %p157 = por %p155, %p156
      %p158 = scmp.ne.s32.totalorder %s150, %s153
      %p159 = scmp.eq.s32.totalorder %s14, 0
      %p160 = por %p158, %p159
      %p161 = scmp.ne.s32.totalorder %s150, %s153
      %p162 = scmp.eq.s32.totalorder %s19, 3
      %p163 = por %p161, %p162
      %p164 = scmp.ne.s32.totalorder %s153, %s154
      %p165 = scmp.eq.s32.totalorder %s19, 0
      %p166 = por %p164, %p165
      %p167 = scmp.ne.s32.totalorder %s153, %s154
      %p168 = scmp.eq.s32.totalorder %s20, 3
      %p169 = por %p167, %p168
      %p171 = scmp.ne.s32.totalorder %s154, %s170
      %p172 = scmp.eq.s32.totalorder %s20, 0
      %p173 = por %p171, %p172
      %p174 = scmp.le.s32.totalorder 1, %s14
      %p175 = scmp.lt.s32.totalorder %s14, 5
      %p176 = pnand %p174, %p175
      %p177 = pneg %p176
      // Predicated region
      $region9: #{block_forward.3} parent=5 // pred_check
        _
      $region10: #{block_forward.3} parent=5 // pred_check_branch
        %179 = sbr.rel (%p176) target = $region12
      $region11: #{block_forward.3} parent=5 // pred_region
        %s180 = ssub.s32 %s14, 1
        // Predicated region
        $region13: #{block_forward.3} parent=11 // pred_check
          %p181 = pneg %p75
        $region14: #{block_forward.3} parent=11 // pred_check_branch
          %183 = sbr.rel (%p181) target = $region16
        $region15: #{block_forward.3} parent=11 // pred_region
          _
        $region16: #{block_forward.3} parent=11 // pred_fallthru
          _
        // Predicated region
        $region17: #{block_forward.3} parent=11 // pred_check
          %p184 = pneg %p96
        $region18: #{block_forward.3} parent=11 // pred_check_branch
          %186 = sbr.rel (%p184) target = $region20
        $region19: #{block_forward.3} parent=11 // pred_region
          _
        $region20: #{block_forward.3} parent=11 // pred_fallthru
          _
        // Predicated region
        $region21: #{block_forward.3} parent=11 // pred_check
          %p187 = pneg %p117
        $region22: #{block_forward.3} parent=11 // pred_check_branch
          %189 = sbr.rel (%p187) target = $region24
        $region23: #{block_forward.3} parent=11 // pred_region
          _
        $region24: #{block_forward.3} parent=11 // pred_fallthru
          _
        // Predicated region
        $region25: #{block_forward.3} parent=11 // pred_check
          %p190 = pneg %p138
        $region26: #{block_forward.3} parent=11 // pred_check_branch
          %192 = sbr.rel (%p190) target = $region28
        $region27: #{block_forward.3} parent=11 // pred_region
          _
        $region28: #{block_forward.3} parent=11 // pred_fallthru
          _
      $region12: #{block_forward.3} parent=5 // pred_fallthru
        _
      %p193 = scmp.lt.s32.totalorder %s14, 4
      // Predicated region
      $region29: #{block_forward.3} parent=5 // pred_check
        %p194 = pneg %p193
      $region30: #{block_forward.3} parent=5 // pred_check_branch
        %196 = sbr.rel (%p194) target = $region32
      $region31: #{block_forward.3} parent=5 // pred_region
        // Predicated region
        $region33: #{block_forward.3} parent=31 // pred_check
          %p197 = pneg %p48
        $region34: #{block_forward.3} parent=31 // pred_check_branch
          %199 = sbr.rel (%p197) target = $region36
        $region35: #{block_forward.3} parent=31 // pred_region
          %s200 = sand.u32 %s38, 1
          %s201 = scalar_lea.sflag [#allocation3], %s200
          %s202 = sand.u32 %s38, 1
          %s203 = smul.addr %s202, 8
          %s204 = scalar_lea.vmem [#allocation2], %s203
          %s206 = ssub.s32 128, 128
          %207 = vsyncadd %s201, %s206
          %s208 = smul.addr %s21, 2
          %s209 = sadd.s32 %s22, %s208
          %s210 = smul.addr %s209, 128
          %s211 = scalar_lea.hbm %s0, %s210
          %s213 = sshll.u32 %s204, 4
          %s214 = int_to_ptr.vmem [resolvable:$true] %s213
          %216 = dma.hbm_to_vmem [thread:$0]  %s211, 128, %s214, %s201
        $region36: #{block_forward.3} parent=31 // pred_fallthru
          _
      $region32: #{block_forward.3} parent=5 // pred_fallthru
        _
      %p217 = scmp.le.s32.totalorder 1, %s14
      %p218 = scmp.lt.s32.totalorder %s14, 5
      %p219 = pnand %p217, %p218
      %p220 = pneg %p219
      // Predicated region
      $region37: #{block_forward.3} parent=5 // pred_check
        _
      $region38: #{block_forward.3} parent=5 // pred_check_branch
        %222 = sbr.rel (%p219) target = $region40
      $region39: #{block_forward.3} parent=5 // pred_region
        %s223 = ssub.s32 %s14, 1
        %s224 = sand.u32 %s41, 1
        %s225 = scalar_lea.sflag [#allocation3], %s224
        %s226 = sand.u32 %s41, 1
        %s227 = smul.addr %s226, 8
        %s228 = scalar_lea.vmem [#allocation2], %s227
        // Predicated region
        $region41: #{block_forward.3} parent=39 // pred_check
          %p229 = pneg %p54
        $region42: #{block_forward.3} parent=39 // pred_check_branch
          %231 = sbr.rel (%p229) target = $region44
        $region43: #{block_forward.3} parent=39 // pred_region
          %232 = dma.done %s225, 128
        $region44: #{block_forward.3} parent=39 // pred_fallthru
          _
        %s233 = sand.u32 %s41, 1
        %s234 = scalar_lea.sflag [#allocation3], %s233
        %s235 = sand.u32 %s41, 1
        %s236 = smul.addr %s235, 8
        %s237 = scalar_lea.vmem [#allocation2], %s236
        %p238 = pneg %p54
        %p239 = pneg %p51
        %p240 = pneg %p75
        %p241 = pneg %p72
        %p242 = pneg %p96
        %p243 = pneg %p93
        %p244 = pneg %p117
        %p245 = pneg %p114
        %p246 = pneg %p138
        %p247 = pneg %p135
        %p248 = pneg %p166
        %p249 = pneg %p163
        %s250 = sand.u32 %s153, 1
        %s251 = sand.u32 %s153, 1
        %s252 = smul.addr %s251, 96
        %s253 = scalar_lea.vmem [#allocation4], %s252
        %v254 = vld [vmem:[%s228] sm:$0xff]
        %v255 = vld [vmem:[%s1] sm:$0x1]
        %v256 = vld [vmem:[%s2] sm:$0x1]
        %vm257 = vcmask 261120
        %v258 = vsel %vm257, %v254, 0.0
        %259 = vadd.xlane.f32.xlu0 %v258
        %v260 = vpop.xlane.xlu0 %259
        %v261 = vrcp.pop 32.0
        %v262 = vmul.f32 %v260, %v261
        %v263 = vsub.f32 %v254, %v262
        %v264 = vmul.f32 %v263, %v263
        %v265 = vsel %vm257, %v264, 0.0
        %266 = vadd.xlane.f32.xlu0 %v265
        %v267 = vpop.xlane.xlu0 %266
        %v268 = vmul.f32 %v267, %v261
        %v269 = vadd.f32 %v268, 1e-05
        %v270 = vrsqrt.pop %v269
        %v271 = vmul.f32 %v263, %v270
        %v273 = vlaneseq
        %v274 = vshrl.u32 %v273, 7
        %v275 = vsub.s32 0, %v274
        %v276 = vrot.slane %v255, %v275
        %v278 = vmul.f32 %v271, %v276
        %v280 = vlaneseq
        %v281 = vshrl.u32 %v280, 7
        %v282 = vsub.s32 0, %v281
        %v283 = vrot.slane %v256, %v282
        %v285 = vadd.f32 %v278, %v283
        %v286 = vld [vmem:[%s3] sm:$0xff]
        %v287 = vld [vmem:[%s3 + $0x8] sm:$0xff]
        %v288 = vld [vmem:[%s3 + $0x10] sm:$0xff]
        %v289 = vld [vmem:[%s3 + $0x18] sm:$0xff]
        %v290 = vld [vmem:[%s4] sm:$0x1]
        %v292 = vlaneseq
        %v293 = vshrl.u32 %v292, 7
        %v294 = vsub.s32 0, %v293
        %v295 = vrot.slane %v290, %v294
        %v298 = vsel %vm257, %v285, 0
        %300 = vmatprep.subr.mxu0 0.0
        %301 = vmatpush1.msra.mxu0 %v286
        %302 = vmatprep.subr.mxu0 0.0
        %303 = vmatpush1.msra.mxu0 %v287
        %304 = vmatprep.subr.mxu0 0.0
        %305 = vmatpush1.msra.mxu0 %v288
        %306 = vmatprep.subr.mxu0 0.0
        %307 = vmatpush1.msra.mxu0 %v289
        %308 = vmatprep.subr.mxu0 0.0
        %309 = vmatpush1.msra.mxu0 0.0
        %310 = vmatprep.subr.mxu0 0.0
        %311 = vmatpush1.msra.mxu0 0.0
        %312 = vmatprep.subr.mxu0 0.0
        %313 = vmatpush1.msra.mxu0 0.0
        %314 = vmatprep.subr.mxu0 0.0
        %315 = vmatpush1.msra.mxu0 0.0
        %316 = vmatprep.subr.mxu0 0.0
        %317 = vmatpush1.msra.mxu0 0.0
        %318 = vmatprep.subr.mxu0 0.0
        %319 = vmatpush1.msra.mxu0 0.0
        %320 = vmatprep.subr.mxu0 0.0
        %321 = vmatpush1.msra.mxu0 0.0
        %322 = vmatprep.subr.mxu0 0.0
        %323 = vmatpush1.msra.mxu0 0.0
        %324 = vmatprep.subr.mxu0 0.0
        %325 = vmatpush1.msra.mxu0 0.0
        %326 = vmatprep.subr.mxu0 0.0
        %327 = vmatpush1.msra.mxu0 0.0
        %328 = vmatprep.subr.mxu0 0.0
        %329 = vmatpush1.msra.mxu0 0.0
        %330 = vmatprep.subr.mxu0 0.0
        %331 = vmatpush1.msra.mxu0 0.0
        %332 = vmatprep.subr.mxu0 0.0
        %333 = vmatpush1.msra.mxu0 0.0
        %334 = vmatprep.subr.mxu0 0.0
        %335 = vmatpush1.msra.mxu0 0.0
        %336 = vmatprep.subr.mxu0 0.0
        %337 = vmatpush1.msra.mxu0 0.0
        %338 = vmatprep.subr.mxu0 0.0
        %339 = vmatpush1.msra.mxu0 0.0
        %340 = vmatprep.subr.mxu0 0.0
        %341 = vmatpush1.msra.mxu0 0.0
        %342 = vmatprep.subr.mxu0 0.0
        %343 = vmatpush1.msra.mxu0 0.0
        %344 = vmatprep.subr.mxu0 0.0
        %345 = vmatpush1.msra.mxu0 0.0
        %346 = vmatprep.subr.mxu0 0.0
        %347 = vmatpush1.msra.mxu0 0.0
        %348 = vmatprep.subr.mxu0 0.0
        %349 = vmatpush1.msra.mxu0 0.0
        %350 = vmatprep.subr.mxu0 0.0
        %351 = vmatpush1.msra.mxu0 0.0
        %352 = vmatprep.subr.mxu0 0.0
        %353 = vmatpush1.msra.mxu0 0.0
        %354 = vmatprep.subr.mxu0 0.0
        %355 = vmatpush1.msra.mxu0 0.0
        %356 = vmatprep.subr.mxu0 0.0
        %357 = vmatpush1.msra.mxu0 0.0
        %358 = vmatprep.subr.mxu0 0.0
        %359 = vmatpush1.msra.mxu0 0.0
        %360 = vmatprep.subr.mxu0 0.0
        %361 = vmatpush1.msra.mxu0 0.0
        %362 = vmatprep.subr.mxu0 0.0
        %363 = vmatpush1.msra.mxu0 0.0
        %364 = vmatprep.mubr.f32.mxu0 0.0
        %365 = vmatmul.mubr.f32.gmra.mrb[0].mxu0 %v298
        %v366 = vpop.f32.mrb[0].mxu0
        %v367 = vadd.f32 %v295, %v366
        %v368 = vpop.f32.mrb[0].mxu0
        %369 = vdwg.mxu0
        %v370 = vmul.f32 %v367, 0.35355338
        %372 = vrot.lane.b32.xlu0 %v370, 120
        %v373 = vpop.permute.xlu0 %372
        %375 = vrot.lane.b32.xlu0 %v370, 112
        %v376 = vpop.permute.xlu0 %375
        %378 = vrot.lane.b32.xlu0 %v370, 104
        %v379 = vpop.permute.xlu0 %378
        %382 = vrot.lane.b32.xlu0 %v367, 96
        %v383 = vpop.permute.xlu0 %382
        %385 = vrot.lane.b32.xlu0 %v367, 88
        %v386 = vpop.permute.xlu0 %385
        %388 = vrot.lane.b32.xlu0 %v367, 80
        %v389 = vpop.permute.xlu0 %388
        %391 = vrot.lane.b32.xlu0 %v367, 72
        %v392 = vpop.permute.xlu0 %391
        %394 = vrot.lane.b32.xlu0 %v367, 64
        %v395 = vpop.permute.xlu0 %394
        %397 = vrot.lane.b32.xlu0 %v367, 56
        %v398 = vpop.permute.xlu0 %397
        %400 = vrot.lane.b32.xlu0 %v367, 48
        %v401 = vpop.permute.xlu0 %400
        %403 = vrot.lane.b32.xlu0 %v367, 40
        %v404 = vpop.permute.xlu0 %403
        %vm406 = vcmask 64512
        %407 = vst.msk [vmem:[%s253] sm:$0xff] %vm406, %v370
        %408 = vst.msk [vmem:[%s253 + $0x8] sm:$0xff] %vm406, %v373
        %409 = vst.msk [vmem:[%s253 + $0x10] sm:$0xff] %vm406, %v376
        %410 = vst.msk [vmem:[%s253 + $0x18] sm:$0xff] %vm406, %v379
        %411 = vst.msk [vmem:[%s253 + $0x20] sm:$0xff] %vm406, %v383
        %412 = vst.msk [vmem:[%s253 + $0x28] sm:$0xff] %vm406, %v386
        %413 = vst.msk [vmem:[%s253 + $0x30] sm:$0xff] %vm406, %v389
        %414 = vst.msk [vmem:[%s253 + $0x38] sm:$0xff] %vm406, %v392
        %415 = vst.msk [vmem:[%s253 + $0x40] sm:$0xff] %vm406, %v395
        %416 = vst.msk [vmem:[%s253 + $0x48] sm:$0xff] %vm406, %v398
        %417 = vst.msk [vmem:[%s253 + $0x50] sm:$0xff] %vm406, %v401
        %418 = vst.msk [vmem:[%s253 + $0x58] sm:$0xff] %vm406, %v404
        %s419 = sand.u32 %s153, 1
        %s420 = sand.u32 %s153, 1
        %s421 = smul.addr %s420, 96
        %s422 = scalar_lea.vmem [#allocation4], %s421
        // Predicated region
        $region45: #{block_forward.3} parent=39 // pred_check
          %p423 = pneg %p163
        $region46: #{block_forward.3} parent=39 // pred_check_branch
          %425 = sbr.rel (%p423) target = $region48
        $region47: #{block_forward.3} parent=39 // pred_region
          %s426 = smul.addr %s23, 24
          %s427 = sadd.s32 %s24, %s426
          %s428 = smul.addr %s427, 8
          %s429 = scalar_lea.vmem %s5, %s428
          // Predicated region
          $region49: #{block_forward.3} parent=47 // pred_check
            _
          $region50: #{block_forward.3} parent=47 // pred_check_branch
            %431 = sbr.rel (0) target = $region52
          $region51: #{block_forward.3} parent=47 // pred_region
            // Predicated region
            $region53: #{block_forward.3} parent=51 // pred_check
              _
            $region54: #{block_forward.3} parent=51 // pred_check_branch
              %433 = sbr.rel (0) target = $region56
            $region55: #{block_forward.3} parent=51 // pred_region
              // Predicated region
              $region68: #{block_forward.3} parent=55 // pred_check
                _
              $region69: #{block_forward.3} parent=55 // pred_check_branch
                %470 = sbr.rel (0) target = $region71
              $region70: #{block_forward.3} parent=55 // pred_region
                loop: start=0, step=1, limit=1
                $region72: #{block_forward.3} parent=70 // loop_pre_header
                  _
                $region73: #{block_forward.3} parent=70 // loop_header
                  %s472 = sphi 0, %s476
                  %p473 = scmp.ge.s32.totalorder %s472, 1
                  %s477 = sphi %s422, %s422
                  %s478 = sphi %s429, %s429
                $region74: #{block_forward.3} parent=70 // loop_header_branch
                  %475 = sbr.rel (%p473) target = $region78
                $region75: #{block_forward.3} parent=70 // loop_body
                  %v479 = vld [vmem:[%s477] sm:$0xff]
                  %480 = vst [vmem:[%s478] sm:$0xff] %v479
                  %v481 = vld [vmem:[%s477 + $0x8] sm:$0xff]
                  %482 = vst [vmem:[%s478 + $0x10] sm:$0xff] %v481
                  %v483 = vld [vmem:[%s477 + $0x10] sm:$0xff]
                  %484 = vst [vmem:[%s478 + $0x20] sm:$0xff] %v483
                  %v485 = vld [vmem:[%s477 + $0x18] sm:$0xff]
                  %486 = vst [vmem:[%s478 + $0x30] sm:$0xff] %v485
                  %v487 = vld [vmem:[%s477 + $0x20] sm:$0xff]
                  %488 = vst [vmem:[%s478 + $0x40] sm:$0xff] %v487
                  %v489 = vld [vmem:[%s477 + $0x28] sm:$0xff]
                  %490 = vst [vmem:[%s478 + $0x50] sm:$0xff] %v489
                  %v491 = vld [vmem:[%s477 + $0x30] sm:$0xff]
                  %492 = vst [vmem:[%s478 + $0x60] sm:$0xff] %v491
                  %v493 = vld [vmem:[%s477 + $0x38] sm:$0xff]
                  %494 = vst [vmem:[%s478 + $0x70] sm:$0xff] %v493
                  %v495 = vld [vmem:[%s477 + $0x40] sm:$0xff]
                  %496 = vst [vmem:[%s478 + $0x80] sm:$0xff] %v495
                  %v497 = vld [vmem:[%s477 + $0x48] sm:$0xff]
                  %498 = vst [vmem:[%s478 + $0x90] sm:$0xff] %v497
                  %v499 = vld [vmem:[%s477 + $0x50] sm:$0xff]
                  %500 = vst [vmem:[%s478 + $0xa0] sm:$0xff] %v499
                  %v501 = vld [vmem:[%s477 + $0x58] sm:$0xff]
                  %502 = vst [vmem:[%s478 + $0xb0] sm:$0xff] %v501
                $region76: #{block_forward.3} parent=70 // loop_footer
                  %s476 = sadd.s32 1, %s472
                $region77: #{block_forward.3} parent=70 // loop_footer_branch
                  %471 = sbr.rel target = $region73
                $region78: #{block_forward.3} parent=70 // loop_exit
                  _
              $region71: #{block_forward.3} parent=55 // pred_fallthru
                _
              // Predicated region
              $region79: #{block_forward.3} parent=55 // pred_check
                _
              $region80: #{block_forward.3} parent=55 // pred_check_branch
                %504 = sbr.rel target = $region82
              $region81: #{block_forward.3} parent=55 // pred_region
                _
              $region82: #{block_forward.3} parent=55 // pred_fallthru
                _
            $region56: #{block_forward.3} parent=51 // pred_fallthru
              _
            // Predicated region
            $region57: #{block_forward.3} parent=51 // pred_check
              _
            $region58: #{block_forward.3} parent=51 // pred_check_branch
              %435 = sbr.rel target = $region60
            $region59: #{block_forward.3} parent=51 // pred_region
              loop: start=0, step=1, limit=1
              $region61: #{block_forward.3} parent=59 // loop_pre_header
                _
              $region62: #{block_forward.3} parent=59 // loop_header
                %s438 = sphi 0, %s442
                %p439 = scmp.ge.s32.totalorder %s438, 1
                %s443 = sphi %s422, %s422
                %s444 = sphi %s429, %s429
              $region63: #{block_forward.3} parent=59 // loop_header_branch
                %441 = sbr.rel (%p439) target = $region67
              $region64: #{block_forward.3} parent=59 // loop_body
                %v445 = vld [vmem:[%s443] sm:$0xff]
                %446 = vst [vmem:[%s444] sm:$0xff] %v445
                %v447 = vld [vmem:[%s443 + $0x8] sm:$0xff]
                %448 = vst [vmem:[%s444 + $0x10] sm:$0xff] %v447
                %v449 = vld [vmem:[%s443 + $0x10] sm:$0xff]
                %450 = vst [vmem:[%s444 + $0x20] sm:$0xff] %v449
                %v451 = vld [vmem:[%s443 + $0x18] sm:$0xff]
                %452 = vst [vmem:[%s444 + $0x30] sm:$0xff] %v451
                %v453 = vld [vmem:[%s443 + $0x20] sm:$0xff]
                %454 = vst [vmem:[%s444 + $0x40] sm:$0xff] %v453
                %v455 = vld [vmem:[%s443 + $0x28] sm:$0xff]
                %456 = vst [vmem:[%s444 + $0x50] sm:$0xff] %v455
                %v457 = vld [vmem:[%s443 + $0x30] sm:$0xff]
                %458 = vst [vmem:[%s444 + $0x60] sm:$0xff] %v457
                %v459 = vld [vmem:[%s443 + $0x38] sm:$0xff]
                %460 = vst [vmem:[%s444 + $0x70] sm:$0xff] %v459
                %v461 = vld [vmem:[%s443 + $0x40] sm:$0xff]
                %462 = vst [vmem:[%s444 + $0x80] sm:$0xff] %v461
                %v463 = vld [vmem:[%s443 + $0x48] sm:$0xff]
                %464 = vst [vmem:[%s444 + $0x90] sm:$0xff] %v463
                %v465 = vld [vmem:[%s443 + $0x50] sm:$0xff]
                %466 = vst [vmem:[%s444 + $0xa0] sm:$0xff] %v465
                %v467 = vld [vmem:[%s443 + $0x58] sm:$0xff]
                %468 = vst [vmem:[%s444 + $0xb0] sm:$0xff] %v467
              $region65: #{block_forward.3} parent=59 // loop_footer
                %s442 = sadd.s32 1, %s438
              $region66: #{block_forward.3} parent=59 // loop_footer_branch
                %437 = sbr.rel target = $region62
              $region67: #{block_forward.3} parent=59 // loop_exit
                _
            $region60: #{block_forward.3} parent=51 // pred_fallthru
              _
          $region52: #{block_forward.3} parent=47 // pred_fallthru
            _
          %505 = vnop
        $region48: #{block_forward.3} parent=39 // pred_fallthru
          _
      $region40: #{block_forward.3} parent=5 // pred_fallthru
        _
      %p506 = scmp.le.s32.totalorder 2, %s14
      // Predicated region
      $region83: #{block_forward.3} parent=5 // pred_check
        %p507 = pneg %p506
      $region84: #{block_forward.3} parent=5 // pred_check_branch
        %509 = sbr.rel (%p507) target = $region86
      $region85: #{block_forward.3} parent=5 // pred_region
        %s510 = ssub.s32 %s14, 2
        // Predicated region
        $region87: #{block_forward.3} parent=85 // pred_check
          %p511 = pneg %p169
        $region88: #{block_forward.3} parent=85 // pred_check_branch
          %513 = sbr.rel (%p511) target = $region90
        $region89: #{block_forward.3} parent=85 // pred_region
          %s514 = sand.u32 %s154, 1
          %s515 = sand.u32 %s154, 1
          %s516 = smul.addr %s515, 96
          %s517 = scalar_lea.vmem [#allocation4], %s516
        $region90: #{block_forward.3} parent=85 // pred_fallthru
          _
      $region86: #{block_forward.3} parent=5 // pred_fallthru
        _
    $region6: #{block_forward.3} parent=1 // loop_footer
      %s18 = sadd.s32 1, %s14
    $region7: #{block_forward.3} parent=1 // loop_footer_branch
      %13 = sbr.rel target = $region3
    $region8: #{block_forward.3} parent=1 // loop_exit
      _
    %518 = vsyncpa [#allocation3], 1
    %s519 = scalar_lea.sflag [#allocation3], 1
    %520 = vsyncpa %s519, 1

// kernel: block_forward.4
$region0: #{block_forward.4}
  #allocation0 [shape = 'u32[]', space=smem, size = 0x4, offset = 0x4, fixed_abs, tag = 'smem constant byte address 0x4 - core index']
  #allocation1 [shape = 'u32[144,128]{1,0:T(1,128)}', space=vmem, size = 0x12000, scoped, tag = 'internal scratch']
  #allocation2 [shape = 'f32[4,8,1]{2,1,0:T(8,128)}', space=vmem, size = 0x4000, scoped, tag = 'scratch operand']
  #allocation3 [shape = 'f32[4,8,1]{2,1,0:T(8,128)}', space=vmem, size = 0x4000, scoped, tag = 'scratch operand']
  #allocation4 [shape = 'f32[4,8,8]{2,1,0:T(8,128)}', space=vmem, size = 0x4000, scoped, tag = 'scratch operand']
  #allocation5 [shape = 's32[1]{0}', space=sflag, size = 0x4, scoped, tag = 'scoped memory for block_forward.4']
  #allocation6 [shape = 'u8[512]{0}', space=smem, size = 0x200, scoped, tag = 'prefetched SMEM operand 0']
  #allocation7 [shape = 'u8[512]{0}', space=smem, size = 0x200, scoped, tag = 'prefetched SMEM operand 1']
  %s0 = inlined_call_operand.vmem [shape: s32[3], index: 0, kind: input, shape index: {}]
  %s1 = inlined_call_operand.vmem [shape: s32[3], index: 1, kind: input, shape index: {}]
  %s2 = inlined_call_operand.vmem [shape: f32[2,12,16,8], index: 2, kind: input, shape index: {}, may-alias: {2,3,4}]
  %s3 = inlined_call_operand.vmem [shape: f32[2,12,16,8], index: 3, kind: input, shape index: {}, may-alias: {2,3,4}]
  %s4 = inlined_call_operand.vmem [shape: f32[2,12,16,8], index: 4, kind: input, shape index: {}, may-alias: {2,3,4}]
  %s5 = inlined_call_operand.vmem [shape: f32[2,16,32], index: 5, kind: output, shape index: {}]
  %s6 = sld [smem:[#allocation0]]
  $region171: #{block_forward.4} parent=0
    _
  %s8 = ssub.s32 1, %s6
  %s9 = scalar_select 0, %s8, %s6
  %s10 = sshll.u32 %s0, 4
  %s11 = int_to_ptr.vmem [resolvable:$true] %s10
  %13 = dma.vmem_to_smem %s11, 16, [#allocation6], [#allocation5]
  %s14 = sshll.u32 %s1, 4
  %s15 = int_to_ptr.vmem [resolvable:$true] %s14
  %17 = dma.vmem_to_smem %s15, 16, [#allocation7], [#allocation5]
  %18 = dma.done [#allocation5], 32
  %19 = sfence
  $region1: #{block_forward.4} parent=0
    #allocation8 [shape = 'u8[32768]{0}', space=vmem, size = 0x8000, scoped, tag = 'input window, operand 2']
    #allocation9 [shape = 'u8[32768]{0}', space=vmem, size = 0x8000, scoped, tag = 'input window, operand 3']
    #allocation10 [shape = 'u8[32768]{0}', space=vmem, size = 0x8000, scoped, tag = 'input window, operand 4']
    loop: start=0, step=1, limit=8
    $region2: #{block_forward.4} parent=1 // loop_pre_header
      _
    $region3: #{block_forward.4} parent=1 // loop_header
      %s21 = sphi 0, %s25
      %p22 = scmp.ge.s32.totalorder %s21, 8
      %s28 = sphi 0, %s40
      %s29 = sphi 0, %s36
      %s30 = sphi 0, %s28
      %s31 = sphi 0, %s29
      %s32 = sphi 0, %s30
      %s33 = sphi 0, %s31
      %s47 = sphi 0, %s49
      %s50 = sphi 0, %s47
      %s51 = sphi 0, %s50
      %s67 = sphi 0, %s51
      %s77 = sphi 0, %s79
      %s80 = sphi 0, %s77
      %s81 = sphi 0, %s80
      %s97 = sphi 0, %s81
      %s107 = sphi 0, %s109
      %s110 = sphi 0, %s107
      %s111 = sphi 0, %s110
      %s127 = sphi 0, %s111
      %s137 = sphi 0, %s139
      %s140 = sphi 0, %s137
      %s141 = sphi 0, %s140
      %s157 = sphi 0, %s141
    $region4: #{block_forward.4} parent=1 // loop_header_branch
      %24 = sbr.rel (%p22) target = $region8
    $region5: #{block_forward.4} parent=1 // loop_body
      %s26 = ssub.s32 %s21, 1
      %s27 = ssub.s32 %s21, 2
      %s34 = sadd.s32 1, %s29
      %p35 = scmp.ge.s32.totalorder %s34, 3
      %s36 = scalar_select %p35, 0, %s34
      %s37 = sadd.s32 1, %s28
      %s38 = scalar_select %p35, %s37, %s28
      %p39 = scmp.ge.s32.totalorder %s38, 2
      %s40 = scalar_select %p39, 0, %s38
      %s41 = sld [smem:[#allocation6 + %s29]]
      %s42 = sld [smem:[#allocation6 + %s36]]
      %s43 = ssub.s32 %s28, %s40
      %s44 = ssub.s32 %s41, %s42
      %s45 = sor.u32 %s43, %s44
      %p46 = scmp.eq.s32.totalorder %s45, 0
      %s48 = sadd.s32 %s47, 1
      %s49 = scalar_select %p46, %s47, %s48
      %p52 = pneg %p46
      %p53 = scmp.eq.s32.totalorder %s21, 5
      %p54 = por %p52, %p53
      %p55 = scmp.ne.s32.totalorder %s47, %s50
      %p56 = scmp.eq.s32.totalorder %s21, 0
      %p57 = por %p55, %p56
      %p58 = scmp.ne.s32.totalorder %s47, %s50
      %p59 = scmp.eq.s32.totalorder %s26, 5
      %p60 = por %p58, %p59
      %p61 = scmp.ne.s32.totalorder %s50, %s51
      %p62 = scmp.eq.s32.totalorder %s26, 0
      %p63 = por %p61, %p62
      %p64 = scmp.ne.s32.totalorder %s50, %s51
      %p65 = scmp.eq.s32.totalorder %s27, 5
      %p66 = por %p64, %p65
      %p68 = scmp.ne.s32.totalorder %s51, %s67
      %p69 = scmp.eq.s32.totalorder %s27, 0
      %p70 = por %p68, %p69
      %s71 = sld [smem:[#allocation7 + %s29]]
      %s72 = sld [smem:[#allocation7 + %s36]]
      %s73 = ssub.s32 %s28, %s40
      %s74 = ssub.s32 %s71, %s72
      %s75 = sor.u32 %s73, %s74
      %p76 = scmp.eq.s32.totalorder %s75, 0
      %s78 = sadd.s32 %s77, 1
      %s79 = scalar_select %p76, %s77, %s78
      %p82 = pneg %p76
      %p83 = scmp.eq.s32.totalorder %s21, 5
      %p84 = por %p82, %p83
      %p85 = scmp.ne.s32.totalorder %s77, %s80
      %p86 = scmp.eq.s32.totalorder %s21, 0
      %p87 = por %p85, %p86
      %p88 = scmp.ne.s32.totalorder %s77, %s80
      %p89 = scmp.eq.s32.totalorder %s26, 5
      %p90 = por %p88, %p89
      %p91 = scmp.ne.s32.totalorder %s80, %s81
      %p92 = scmp.eq.s32.totalorder %s26, 0
      %p93 = por %p91, %p92
      %p94 = scmp.ne.s32.totalorder %s80, %s81
      %p95 = scmp.eq.s32.totalorder %s27, 5
      %p96 = por %p94, %p95
      %p98 = scmp.ne.s32.totalorder %s81, %s97
      %p99 = scmp.eq.s32.totalorder %s27, 0
      %p100 = por %p98, %p99
      %s101 = sld [smem:[#allocation7 + %s29]]
      %s102 = sld [smem:[#allocation7 + %s36]]
      %s103 = ssub.s32 %s28, %s40
      %s104 = ssub.s32 %s101, %s102
      %s105 = sor.u32 %s103, %s104
      %p106 = scmp.eq.s32.totalorder %s105, 0
      %s108 = sadd.s32 %s107, 1
      %s109 = scalar_select %p106, %s107, %s108
      %p112 = pneg %p106
      %p113 = scmp.eq.s32.totalorder %s21, 5
      %p114 = por %p112, %p113
      %p115 = scmp.ne.s32.totalorder %s107, %s110
      %p116 = scmp.eq.s32.totalorder %s21, 0
      %p117 = por %p115, %p116
      %p118 = scmp.ne.s32.totalorder %s107, %s110
      %p119 = scmp.eq.s32.totalorder %s26, 5
      %p120 = por %p118, %p119
      %p121 = scmp.ne.s32.totalorder %s110, %s111
      %p122 = scmp.eq.s32.totalorder %s26, 0
      %p123 = por %p121, %p122
      %p124 = scmp.ne.s32.totalorder %s110, %s111
      %p125 = scmp.eq.s32.totalorder %s27, 5
      %p126 = por %p124, %p125
      %p128 = scmp.ne.s32.totalorder %s111, %s127
      %p129 = scmp.eq.s32.totalorder %s27, 0
      %p130 = por %p128, %p129
      %s131 = sld [smem:[#allocation6 + %s29]]
      %s132 = sld [smem:[#allocation6 + %s36]]
      %s133 = ssub.s32 %s28, %s40
      %s134 = ssub.s32 %s131, %s132
      %s135 = sor.u32 %s133, %s134
      %p136 = scmp.eq.s32.totalorder %s135, 0
      %s138 = sadd.s32 %s137, 1
      %s139 = scalar_select %p136, %s137, %s138
      %p142 = pneg %p136
      %p143 = scmp.eq.s32.totalorder %s21, 5
      %p144 = por %p142, %p143
      %p145 = scmp.ne.s32.totalorder %s137, %s140
      %p146 = scmp.eq.s32.totalorder %s21, 0
      %p147 = por %p145, %p146
      %p148 = scmp.ne.s32.totalorder %s137, %s140
      %p149 = scmp.eq.s32.totalorder %s26, 5
      %p150 = por %p148, %p149
      %p151 = scmp.ne.s32.totalorder %s140, %s141
      %p152 = scmp.eq.s32.totalorder %s26, 0
      %p153 = por %p151, %p152
      %p154 = scmp.ne.s32.totalorder %s140, %s141
      %p155 = scmp.eq.s32.totalorder %s27, 5
      %p156 = por %p154, %p155
      %p158 = scmp.ne.s32.totalorder %s141, %s157
      %p159 = scmp.eq.s32.totalorder %s27, 0
      %p160 = por %p158, %p159
      %p161 = scmp.le.s32.totalorder 1, %s21
      %p162 = scmp.lt.s32.totalorder %s21, 7
      %p163 = pnand %p161, %p162
      %p164 = pneg %p163
      // Predicated region
      $region9: #{block_forward.4} parent=5 // pred_check
        _
      $region10: #{block_forward.4} parent=5 // pred_check_branch
        %166 = sbr.rel (%p163) target = $region12
      $region11: #{block_forward.4} parent=5 // pred_region
        %s167 = ssub.s32 %s21, 1
      $region12: #{block_forward.4} parent=5 // pred_fallthru
        _
      %p168 = scmp.lt.s32.totalorder %s21, 6
      // Predicated region
      $region13: #{block_forward.4} parent=5 // pred_check
        %p169 = pneg %p168
      $region14: #{block_forward.4} parent=5 // pred_check_branch
        %171 = sbr.rel (%p169) target = $region16
      $region15: #{block_forward.4} parent=5 // pred_region
        // Predicated region
        $region17: #{block_forward.4} parent=15 // pred_check
          %p172 = pneg %p57
        $region18: #{block_forward.4} parent=15 // pred_check_branch
          %174 = sbr.rel (%p172) target = $region20
        $region19: #{block_forward.4} parent=15 // pred_region
          %s175 = sand.u32 %s47, 1
          %s176 = sand.u32 %s47, 1
          %s177 = smul.addr %s176, 32
          %s178 = scalar_lea.vmem [#allocation8], %s177
          %s179 = sld [smem:[#allocation6 + %s29]]
          %s180 = smul.addr %s28, 24
          %s181 = sadd.s32 %s179, %s180
          %s182 = smul.addr %s181, 8
          %s183 = scalar_lea.vmem %s2, %s182
          // Predicated region
          $region21: #{block_forward.4} parent=19 // pred_check
            _
          $region22: #{block_forward.4} parent=19 // pred_check_branch
            %185 = sbr.rel (0) target = $region24
          $region23: #{block_forward.4} parent=19 // pred_region
            // Predicated region
            $region25: #{block_forward.4} parent=23 // pred_check
              _
            $region26: #{block_forward.4} parent=23 // pred_check_branch
              %187 = sbr.rel (0) target = $region28
            $region27: #{block_forward.4} parent=23 // pred_region
              // Predicated region
              $region40: #{block_forward.4} parent=27 // pred_check
                _
              $region41: #{block_forward.4} parent=27 // pred_check_branch
                %208 = sbr.rel (0) target = $region43
              $region42: #{block_forward.4} parent=27 // pred_region
                loop: start=0, step=1, limit=1
                $region44: #{block_forward.4} parent=42 // loop_pre_header
                  _
                $region45: #{block_forward.4} parent=42 // loop_header
                  %s210 = sphi 0, %s214
                  %p211 = scmp.ge.s32.totalorder %s210, 1
                  %s215 = sphi %s183, %s183
                  %s216 = sphi %s178, %s178
                $region46: #{block_forward.4} parent=42 // loop_header_branch
                  %213 = sbr.rel (%p211) target = $region50
                $region47: #{block_forward.4} parent=42 // loop_body
                  %v217 = vld [vmem:[%s215] sm:$0xff]
                  %218 = vst [vmem:[%s216] sm:$0xff] %v217
                  %v219 = vld [vmem:[%s215 + $0x10] sm:$0xff]
                  %220 = vst [vmem:[%s216 + $0x8] sm:$0xff] %v219
                  %v221 = vld [vmem:[%s215 + $0x20] sm:$0xff]
                  %222 = vst [vmem:[%s216 + $0x10] sm:$0xff] %v221
                  %v223 = vld [vmem:[%s215 + $0x30] sm:$0xff]
                  %224 = vst [vmem:[%s216 + $0x18] sm:$0xff] %v223
                $region48: #{block_forward.4} parent=42 // loop_footer
                  %s214 = sadd.s32 1, %s210
                $region49: #{block_forward.4} parent=42 // loop_footer_branch
                  %209 = sbr.rel target = $region45
                $region50: #{block_forward.4} parent=42 // loop_exit
                  _
              $region43: #{block_forward.4} parent=27 // pred_fallthru
                _
              // Predicated region
              $region51: #{block_forward.4} parent=27 // pred_check
                _
              $region52: #{block_forward.4} parent=27 // pred_check_branch
                %226 = sbr.rel target = $region54
              $region53: #{block_forward.4} parent=27 // pred_region
                _
              $region54: #{block_forward.4} parent=27 // pred_fallthru
                _
            $region28: #{block_forward.4} parent=23 // pred_fallthru
              _
            // Predicated region
            $region29: #{block_forward.4} parent=23 // pred_check
              _
            $region30: #{block_forward.4} parent=23 // pred_check_branch
              %189 = sbr.rel target = $region32
            $region31: #{block_forward.4} parent=23 // pred_region
              loop: start=0, step=1, limit=1
              $region33: #{block_forward.4} parent=31 // loop_pre_header
                _
              $region34: #{block_forward.4} parent=31 // loop_header
                %s192 = sphi 0, %s196
                %p193 = scmp.ge.s32.totalorder %s192, 1
                %s197 = sphi %s183, %s183
                %s198 = sphi %s178, %s178
              $region35: #{block_forward.4} parent=31 // loop_header_branch
                %195 = sbr.rel (%p193) target = $region39
              $region36: #{block_forward.4} parent=31 // loop_body
                %v199 = vld [vmem:[%s197] sm:$0xff]
                %200 = vst [vmem:[%s198] sm:$0xff] %v199
                %v201 = vld [vmem:[%s197 + $0x10] sm:$0xff]
                %202 = vst [vmem:[%s198 + $0x8] sm:$0xff] %v201
                %v203 = vld [vmem:[%s197 + $0x20] sm:$0xff]
                %204 = vst [vmem:[%s198 + $0x10] sm:$0xff] %v203
                %v205 = vld [vmem:[%s197 + $0x30] sm:$0xff]
                %206 = vst [vmem:[%s198 + $0x18] sm:$0xff] %v205
              $region37: #{block_forward.4} parent=31 // loop_footer
                %s196 = sadd.s32 1, %s192
              $region38: #{block_forward.4} parent=31 // loop_footer_branch
                %191 = sbr.rel target = $region34
              $region39: #{block_forward.4} parent=31 // loop_exit
                _
            $region32: #{block_forward.4} parent=23 // pred_fallthru
              _
          $region24: #{block_forward.4} parent=19 // pred_fallthru
            _
          %227 = vnop
        $region20: #{block_forward.4} parent=15 // pred_fallthru
          _
        // Predicated region
        $region55: #{block_forward.4} parent=15 // pred_check
          %p228 = pneg %p87
        $region56: #{block_forward.4} parent=15 // pred_check_branch
          %230 = sbr.rel (%p228) target = $region58
        $region57: #{block_forward.4} parent=15 // pred_region
          %s231 = sand.u32 %s77, 1
          %s232 = sand.u32 %s77, 1
          %s233 = smul.addr %s232, 32
          %s234 = scalar_lea.vmem [#allocation9], %s233
          %s235 = sld [smem:[#allocation7 + %s29]]
          %s236 = sadd.s32 %s235, 8
          %s237 = smul.addr %s28, 24
          %s238 = sadd.s32 %s236, %s237
          %s239 = smul.addr %s238, 8
          %s240 = scalar_lea.vmem %s3, %s239
          // Predicated region
          $region59: #{block_forward.4} parent=57 // pred_check
            _
          $region60: #{block_forward.4} parent=57 // pred_check_branch
            %242 = sbr.rel (0) target = $region62
          $region61: #{block_forward.4} parent=57 // pred_region
            // Predicated region
            $region63: #{block_forward.4} parent=61 // pred_check
              _
            $region64: #{block_forward.4} parent=61 // pred_check_branch
              %244 = sbr.rel (0) target = $region66
            $region65: #{block_forward.4} parent=61 // pred_region
              // Predicated region
              $region78: #{block_forward.4} parent=65 // pred_check
                _
              $region79: #{block_forward.4} parent=65 // pred_check_branch
                %265 = sbr.rel (0) target = $region81
              $region80: #{block_forward.4} parent=65 // pred_region
                loop: start=0, step=1, limit=1
                $region82: #{block_forward.4} parent=80 // loop_pre_header
                  _
                $region83: #{block_forward.4} parent=80 // loop_header
                  %s267 = sphi 0, %s271
                  %p268 = scmp.ge.s32.totalorder %s267, 1
                  %s272 = sphi %s240, %s240
                  %s273 = sphi %s234, %s234
                $region84: #{block_forward.4} parent=80 // loop_header_branch
                  %270 = sbr.rel (%p268) target = $region88
                $region85: #{block_forward.4} parent=80 // loop_body
                  %v274 = vld [vmem:[%s272] sm:$0xff]
                  %275 = vst [vmem:[%s273] sm:$0xff] %v274
                  %v276 = vld [vmem:[%s272 + $0x10] sm:$0xff]
                  %277 = vst [vmem:[%s273 + $0x8] sm:$0xff] %v276
                  %v278 = vld [vmem:[%s272 + $0x20] sm:$0xff]
                  %279 = vst [vmem:[%s273 + $0x10] sm:$0xff] %v278
                  %v280 = vld [vmem:[%s272 + $0x30] sm:$0xff]
                  %281 = vst [vmem:[%s273 + $0x18] sm:$0xff] %v280
                $region86: #{block_forward.4} parent=80 // loop_footer
                  %s271 = sadd.s32 1, %s267
                $region87: #{block_forward.4} parent=80 // loop_footer_branch
                  %266 = sbr.rel target = $region83
                $region88: #{block_forward.4} parent=80 // loop_exit
                  _
              $region81: #{block_forward.4} parent=65 // pred_fallthru
                _
              // Predicated region
              $region89: #{block_forward.4} parent=65 // pred_check
                _
              $region90: #{block_forward.4} parent=65 // pred_check_branch
                %283 = sbr.rel target = $region92
              $region91: #{block_forward.4} parent=65 // pred_region
                _
              $region92: #{block_forward.4} parent=65 // pred_fallthru
                _
            $region66: #{block_forward.4} parent=61 // pred_fallthru
              _
            // Predicated region
            $region67: #{block_forward.4} parent=61 // pred_check
              _
            $region68: #{block_forward.4} parent=61 // pred_check_branch
              %246 = sbr.rel target = $region70
            $region69: #{block_forward.4} parent=61 // pred_region
              loop: start=0, step=1, limit=1
              $region71: #{block_forward.4} parent=69 // loop_pre_header
                _
              $region72: #{block_forward.4} parent=69 // loop_header
                %s249 = sphi 0, %s253
                %p250 = scmp.ge.s32.totalorder %s249, 1
                %s254 = sphi %s240, %s240
                %s255 = sphi %s234, %s234
              $region73: #{block_forward.4} parent=69 // loop_header_branch
                %252 = sbr.rel (%p250) target = $region77
              $region74: #{block_forward.4} parent=69 // loop_body
                %v256 = vld [vmem:[%s254] sm:$0xff]
                %257 = vst [vmem:[%s255] sm:$0xff] %v256
                %v258 = vld [vmem:[%s254 + $0x10] sm:$0xff]
                %259 = vst [vmem:[%s255 + $0x8] sm:$0xff] %v258
                %v260 = vld [vmem:[%s254 + $0x20] sm:$0xff]
                %261 = vst [vmem:[%s255 + $0x10] sm:$0xff] %v260
                %v262 = vld [vmem:[%s254 + $0x30] sm:$0xff]
                %263 = vst [vmem:[%s255 + $0x18] sm:$0xff] %v262
              $region75: #{block_forward.4} parent=69 // loop_footer
                %s253 = sadd.s32 1, %s249
              $region76: #{block_forward.4} parent=69 // loop_footer_branch
                %248 = sbr.rel target = $region72
              $region77: #{block_forward.4} parent=69 // loop_exit
                _
            $region70: #{block_forward.4} parent=61 // pred_fallthru
              _
          $region62: #{block_forward.4} parent=57 // pred_fallthru
            _
          %284 = vnop
        $region58: #{block_forward.4} parent=15 // pred_fallthru
          _
        // Predicated region
        $region93: #{block_forward.4} parent=15 // pred_check
          %p285 = pneg %p117
        $region94: #{block_forward.4} parent=15 // pred_check_branch
          %287 = sbr.rel (%p285) target = $region96
        $region95: #{block_forward.4} parent=15 // pred_region
          %s288 = sand.u32 %s107, 1
          %s289 = sand.u32 %s107, 1
          %s290 = smul.addr %s289, 32
          %s291 = scalar_lea.vmem [#allocation10], %s290
          %s292 = sld [smem:[#allocation7 + %s29]]
          %s293 = sadd.s32 %s292, 16
          %s294 = smul.addr %s28, 24
          %s295 = sadd.s32 %s293, %s294
          %s296 = smul.addr %s295, 8
          %s297 = scalar_lea.vmem %s4, %s296
          // Predicated region
          $region97: #{block_forward.4} parent=95 // pred_check
            _
          $region98: #{block_forward.4} parent=95 // pred_check_branch
            %299 = sbr.rel (0) target = $region100
          $region99: #{block_forward.4} parent=95 // pred_region
            // Predicated region
            $region101: #{block_forward.4} parent=99 // pred_check
              _
            $region102: #{block_forward.4} parent=99 // pred_check_branch
              %301 = sbr.rel (0) target = $region104
            $region103: #{block_forward.4} parent=99 // pred_region
              // Predicated region
              $region116: #{block_forward.4} parent=103 // pred_check
                _
              $region117: #{block_forward.4} parent=103 // pred_check_branch
                %322 = sbr.rel (0) target = $region119
              $region118: #{block_forward.4} parent=103 // pred_region
                loop: start=0, step=1, limit=1
                $region120: #{block_forward.4} parent=118 // loop_pre_header
                  _
                $region121: #{block_forward.4} parent=118 // loop_header
                  %s324 = sphi 0, %s328
                  %p325 = scmp.ge.s32.totalorder %s324, 1
                  %s329 = sphi %s297, %s297
                  %s330 = sphi %s291, %s291
                $region122: #{block_forward.4} parent=118 // loop_header_branch
                  %327 = sbr.rel (%p325) target = $region126
                $region123: #{block_forward.4} parent=118 // loop_body
                  %v331 = vld [vmem:[%s329] sm:$0xff]
                  %332 = vst [vmem:[%s330] sm:$0xff] %v331
                  %v333 = vld [vmem:[%s329 + $0x10] sm:$0xff]
                  %334 = vst [vmem:[%s330 + $0x8] sm:$0xff] %v333
                  %v335 = vld [vmem:[%s329 + $0x20] sm:$0xff]
                  %336 = vst [vmem:[%s330 + $0x10] sm:$0xff] %v335
                  %v337 = vld [vmem:[%s329 + $0x30] sm:$0xff]
                  %338 = vst [vmem:[%s330 + $0x18] sm:$0xff] %v337
                $region124: #{block_forward.4} parent=118 // loop_footer
                  %s328 = sadd.s32 1, %s324
                $region125: #{block_forward.4} parent=118 // loop_footer_branch
                  %323 = sbr.rel target = $region121
                $region126: #{block_forward.4} parent=118 // loop_exit
                  _
              $region119: #{block_forward.4} parent=103 // pred_fallthru
                _
              // Predicated region
              $region127: #{block_forward.4} parent=103 // pred_check
                _
              $region128: #{block_forward.4} parent=103 // pred_check_branch
                %340 = sbr.rel target = $region130
              $region129: #{block_forward.4} parent=103 // pred_region
                _
              $region130: #{block_forward.4} parent=103 // pred_fallthru
                _
            $region104: #{block_forward.4} parent=99 // pred_fallthru
              _
            // Predicated region
            $region105: #{block_forward.4} parent=99 // pred_check
              _
            $region106: #{block_forward.4} parent=99 // pred_check_branch
              %303 = sbr.rel target = $region108
            $region107: #{block_forward.4} parent=99 // pred_region
              loop: start=0, step=1, limit=1
              $region109: #{block_forward.4} parent=107 // loop_pre_header
                _
              $region110: #{block_forward.4} parent=107 // loop_header
                %s306 = sphi 0, %s310
                %p307 = scmp.ge.s32.totalorder %s306, 1
                %s311 = sphi %s297, %s297
                %s312 = sphi %s291, %s291
              $region111: #{block_forward.4} parent=107 // loop_header_branch
                %309 = sbr.rel (%p307) target = $region115
              $region112: #{block_forward.4} parent=107 // loop_body
                %v313 = vld [vmem:[%s311] sm:$0xff]
                %314 = vst [vmem:[%s312] sm:$0xff] %v313
                %v315 = vld [vmem:[%s311 + $0x10] sm:$0xff]
                %316 = vst [vmem:[%s312 + $0x8] sm:$0xff] %v315
                %v317 = vld [vmem:[%s311 + $0x20] sm:$0xff]
                %318 = vst [vmem:[%s312 + $0x10] sm:$0xff] %v317
                %v319 = vld [vmem:[%s311 + $0x30] sm:$0xff]
                %320 = vst [vmem:[%s312 + $0x18] sm:$0xff] %v319
              $region113: #{block_forward.4} parent=107 // loop_footer
                %s310 = sadd.s32 1, %s306
              $region114: #{block_forward.4} parent=107 // loop_footer_branch
                %305 = sbr.rel target = $region110
              $region115: #{block_forward.4} parent=107 // loop_exit
                _
            $region108: #{block_forward.4} parent=99 // pred_fallthru
              _
          $region100: #{block_forward.4} parent=95 // pred_fallthru
            _
          %341 = vnop
        $region96: #{block_forward.4} parent=15 // pred_fallthru
          _
      $region16: #{block_forward.4} parent=5 // pred_fallthru
        _
      %p342 = scmp.le.s32.totalorder 1, %s21
      %p343 = scmp.lt.s32.totalorder %s21, 7
      %p344 = pnand %p342, %p343
      %p345 = pneg %p344
      // Predicated region
      $region131: #{block_forward.4} parent=5 // pred_check
        _
      $region132: #{block_forward.4} parent=5 // pred_check_branch
        %347 = sbr.rel (%p344) target = $region134
      $region133: #{block_forward.4} parent=5 // pred_region
        %s348 = ssub.s32 %s21, 1
        %s349 = sand.u32 %s50, 1
        %s350 = sand.u32 %s50, 1
        %s351 = smul.addr %s350, 32
        %s352 = scalar_lea.vmem [#allocation8], %s351
        // Predicated region
        $region135: #{block_forward.4} parent=133 // pred_check
          %p353 = pneg %p63
        $region136: #{block_forward.4} parent=133 // pred_check_branch
          %355 = sbr.rel (%p353) target = $region138
        $region137: #{block_forward.4} parent=133 // pred_region
          _
        $region138: #{block_forward.4} parent=133 // pred_fallthru
          _
        %s356 = sand.u32 %s80, 1
        %s357 = sand.u32 %s80, 1
        %s358 = smul.addr %s357, 32
        %s359 = scalar_lea.vmem [#allocation9], %s358
        // Predicated region
        $region139: #{block_forward.4} parent=133 // pred_check
          %p360 = pneg %p93
        $region140: #{block_forward.4} parent=133 // pred_check_branch
          %362 = sbr.rel (%p360) target = $region142
        $region141: #{block_forward.4} parent=133 // pred_region
          _
        $region142: #{block_forward.4} parent=133 // pred_fallthru
          _
        %s363 = sand.u32 %s110, 1
        %s364 = sand.u32 %s110, 1
        %s365 = smul.addr %s364, 32
        %s366 = scalar_lea.vmem [#allocation10], %s365
        // Predicated region
        $region143: #{block_forward.4} parent=133 // pred_check
          %p367 = pneg %p123
        $region144: #{block_forward.4} parent=133 // pred_check_branch
          %369 = sbr.rel (%p367) target = $region146
        $region145: #{block_forward.4} parent=133 // pred_region
          _
        $region146: #{block_forward.4} parent=133 // pred_fallthru
          _
        %s370 = sand.u32 %s50, 1
        %s371 = sand.u32 %s50, 1
        %s372 = smul.addr %s371, 32
        %s373 = scalar_lea.vmem [#allocation8], %s372
        %p374 = pneg %p63
        %p375 = pneg %p60
        %s376 = sand.u32 %s80, 1
        %s377 = sand.u32 %s80, 1
        %s378 = smul.addr %s377, 32
        %s379 = scalar_lea.vmem [#allocation9], %s378
        %p380 = pneg %p93
        %p381 = pneg %p90
        %s382 = sand.u32 %s110, 1
        %s383 = sand.u32 %s110, 1
        %s384 = smul.addr %s383, 32
        %s385 = scalar_lea.vmem [#allocation10], %s384
        %p386 = pneg %p123
        %p387 = pneg %p120
        %p388 = pneg %p153
        %p389 = pneg %p150
        %s390 = sld [smem:[#allocation6 + %s31]]
        %p391 = scmp.lt.s32.totalorder %s30, 1
        %s392 = scalar_select %p391, %s30, 1
        %p393 = scmp.lt.s32.totalorder %s390, 1
        %s394 = scalar_select %p393, %s390, 1
        %s395 = smul.addr %s392, 2
        %s396 = sadd.s32 %s394, %s395
        %s397 = smul.addr %s396, 8
        %s398 = scalar_lea.vmem %s5, %s397
        %s399 = sld [smem:[#allocation6 + %s31]]
        %s400 = sld [smem:[#allocation7 + %s31]]
        %s401 = sld [smem:[#allocation7 + %s31]]
        %s402 = sld [smem:[#allocation6 + %s31]]
        %p403 = scmp.lt.s32.totalorder %s30, 1
        %s404 = scalar_select %p403, %s30, 1
        %p405 = scmp.lt.s32.totalorder %s402, 1
        %s406 = scalar_select %p405, %s402, 1
        %s407 = smul.addr %s404, 2
        %s408 = sadd.s32 %s406, %s407
        %s409 = smul.addr %s408, 8
        %s410 = scalar_lea.vmem %s5, %s409
        %s411 = sld [smem:[#allocation6 + %s31]]
        %s412 = sld [smem:[#allocation6 + %s31]]
        %s413 = sld [smem:[#allocation7 + %s31]]
        %p414 = scmp.eq.s32.totalorder %s413, 0
        // Predicated region
        $region147: #{block_forward.4} parent=133 // pred_check
          %p415 = pneg %p414
        $region148: #{block_forward.4} parent=133 // pred_check_branch
          %417 = sbr.rel (%p415) target = $region150
        $region149: #{block_forward.4} parent=133 // pred_region
          %vm418 = vcmask 7168
          %419 = vst.msk [vmem:[#allocation2] sm:$0xff] %vm418, -2.3819765e+38
          %420 = vst.msk [vmem:[#allocation2 + $0x8] sm:$0xff] %vm418, -2.3819765e+38
          %421 = vst.msk [vmem:[#allocation2 + $0x10] sm:$0xff] %vm418, -2.3819765e+38
          %422 = vst.msk [vmem:[#allocation2 + $0x18] sm:$0xff] %vm418, -2.3819765e+38
          %423 = vst.msk [vmem:[#allocation3] sm:$0xff] %vm418, 0.0
          %424 = vst.msk [vmem:[#allocation3 + $0x8] sm:$0xff] %vm418, 0.0
          %425 = vst.msk [vmem:[#allocation3 + $0x10] sm:$0xff] %vm418, 0.0
          %426 = vst.msk [vmem:[#allocation3 + $0x18] sm:$0xff] %vm418, 0.0
          %vm427 = vcmask 64512
          %428 = vst.msk [vmem:[#allocation4] sm:$0xff] %vm427, 0.0
          %429 = vst.msk [vmem:[#allocation4 + $0x8] sm:$0xff] %vm427, 0.0
          %430 = vst.msk [vmem:[#allocation4 + $0x10] sm:$0xff] %vm427, 0.0
          %431 = vst.msk [vmem:[#allocation4 + $0x18] sm:$0xff] %vm427, 0.0
        $region150: #{block_forward.4} parent=133 // pred_fallthru
          _
        %v432 = vld [vmem:[%s352] sm:$0xff]
        %v433 = vld [vmem:[%s352 + $0x8] sm:$0xff]
        %v434 = vld [vmem:[%s352 + $0x10] sm:$0xff]
        %v435 = vld [vmem:[%s352 + $0x18] sm:$0xff]
        %v436 = vld [vmem:[%s359] sm:$0xff]
        %v437 = vld [vmem:[%s359 + $0x8] sm:$0xff]
        %v438 = vld [vmem:[%s359 + $0x10] sm:$0xff]
        %v439 = vld [vmem:[%s359 + $0x18] sm:$0xff]
        %v440 = vld [vmem:[%s366] sm:$0xff]
        %v441 = vld [vmem:[%s366 + $0x8] sm:$0xff]
        %v442 = vld [vmem:[%s366 + $0x10] sm:$0xff]
        %v443 = vld [vmem:[%s366 + $0x18] sm:$0xff]
        %vm444 = vcmask 64512
        %v446 = vsel %vm444, %v432, 0
        %v449 = vsel %vm444, %v436, 0
        %451 = vmatprep.subr.mxu0 0.0
        %452 = vmatpush1.xpose.msra.mxu0 %v449
        %453 = vmatprep.subr.mxu0 0.0
        %454 = vmatpush1.xpose.msra.mxu0 0.0
        %455 = vmatprep.subr.mxu0 0.0
        %456 = vmatpush1.xpose.msra.mxu0 0.0
        %457 = vmatprep.subr.mxu0 0.0
        %458 = vmatpush1.xpose.msra.mxu0 0.0
        %459 = vmatprep.subr.mxu0 0.0
        %460 = vmatpush1.xpose.msra.mxu0 0.0
        %461 = vmatprep.subr.mxu0 0.0
        %462 = vmatpush1.xpose.msra.mxu0 0.0
        %463 = vmatprep.subr.mxu0 0.0
        %464 = vmatpush1.xpose.msra.mxu0 0.0
        %465 = vmatprep.subr.mxu0 0.0
        %466 = vmatpush1.xpose.msra.mxu0 0.0
        %467 = vmatprep.subr.mxu0 0.0
        %468 = vmatpush1.xpose.msra.mxu0 0.0
        %469 = vmatprep.subr.mxu0 0.0
        %470 = vmatpush1.xpose.msra.mxu0 0.0
        %471 = vmatprep.subr.mxu0 0.0
        %472 = vmatpush1.xpose.msra.mxu0 0.0
        %473 = vmatprep.subr.mxu0 0.0
        %474 = vmatpush1.xpose.msra.mxu0 0.0
        %475 = vmatprep.subr.mxu0 0.0
        %476 = vmatpush1.xpose.msra.mxu0 0.0
        %477 = vmatprep.subr.mxu0 0.0
        %478 = vmatpush1.xpose.msra.mxu0 0.0
        %479 = vmatprep.subr.mxu0 0.0
        %480 = vmatpush1.xpose.msra.mxu0 0.0
        %481 = vmatprep.subr.mxu0 0.0
        %482 = vmatpush1.xpose.msra.mxu0 0.0
        %483 = vmatprep.subr.mxu0 0.0
        %484 = vmatpush1.xpose.msra.mxu0 0.0
        %485 = vmatprep.subr.mxu0 0.0
        %486 = vmatpush1.xpose.msra.mxu0 0.0
        %487 = vmatprep.subr.mxu0 0.0
        %488 = vmatpush1.xpose.msra.mxu0 0.0
        %489 = vmatprep.subr.mxu0 0.0
        %490 = vmatpush1.xpose.msra.mxu0 0.0
        %491 = vmatprep.subr.mxu0 0.0
        %492 = vmatpush1.xpose.msra.mxu0 0.0
        %493 = vmatprep.subr.mxu0 0.0
        %494 = vmatpush1.xpose.msra.mxu0 0.0
        %495 = vmatprep.subr.mxu0 0.0
        %496 = vmatpush1.xpose.msra.mxu0 0.0
        %497 = vmatprep.subr.mxu0 0.0
        %498 = vmatpush1.xpose.msra.mxu0 0.0
        %499 = vmatprep.subr.mxu0 0.0
        %500 = vmatpush1.xpose.msra.mxu0 0.0
        %501 = vmatprep.subr.mxu0 0.0
        %502 = vmatpush1.xpose.msra.mxu0 0.0
        %503 = vmatprep.subr.mxu0 0.0
        %504 = vmatpush1.xpose.msra.mxu0 0.0
        %505 = vmatprep.subr.mxu0 0.0
        %506 = vmatpush1.xpose.msra.mxu0 0.0
        %507 = vmatprep.subr.mxu0 0.0
        %508 = vmatpush1.xpose.msra.mxu0 0.0
        %509 = vmatprep.subr.mxu0 0.0
        %510 = vmatpush1.xpose.msra.mxu0 0.0
        %511 = vmatprep.subr.mxu0 0.0
        %512 = vmatpush1.xpose.msra.mxu0 0.0
        %513 = vmatprep.subr.mxu0 0.0
        %514 = vmatpush1.xpose.msra.mxu0 0.0
        %515 = vmatprep.mubr.f32.mxu0 0.0
        %516 = vmatmul.mubr.f32.gmra.mrb[0].mxu0 %v446
        %v517 = vpop.f32.mrb[0].mxu0
        %v518 = vadd.f32 0.0, %v517
        %v519 = vpop.f32.mrb[0].mxu0
        %520 = vdwg.mxu0
        %v522 = vsel %vm444, %v433, 0
        %v525 = vsel %vm444, %v437, 0
        %527 = vmatprep.subr.mxu0 0.0
        %528 = vmatpush1.xpose.msra.mxu0 %v525
        %529 = vmatprep.subr.mxu0 0.0
        %530 = vmatpush1.xpose.msra.mxu0 0.0
        %531 = vmatprep.subr.mxu0 0.0
        %532 = vmatpush1.xpose.msra.mxu0 0.0
        %533 = vmatprep.subr.mxu0 0.0
        %534 = vmatpush1.xpose.msra.mxu0 0.0
        %535 = vmatprep.subr.mxu0 0.0
        %536 = vmatpush1.xpose.msra.mxu0 0.0
        %537 = vmatprep.subr.mxu0 0.0
        %538 = vmatpush1.xpose.msra.mxu0 0.0
        %539 = vmatprep.subr.mxu0 0.0
        %540 = vmatpush1.xpose.msra.mxu0 0.0
        %541 = vmatprep.subr.mxu0 0.0
        %542 = vmatpush1.xpose.msra.mxu0 0.0
        %543 = vmatprep.subr.mxu0 0.0
        %544 = vmatpush1.xpose.msra.mxu0 0.0
        %545 = vmatprep.subr.mxu0 0.0
        %546 = vmatpush1.xpose.msra.mxu0 0.0
        %547 = vmatprep.subr.mxu0 0.0
        %548 = vmatpush1.xpose.msra.mxu0 0.0
        %549 = vmatprep.subr.mxu0 0.0
        %550 = vmatpush1.xpose.msra.mxu0 0.0
        %551 = vmatprep.subr.mxu0 0.0
        %552 = vmatpush1.xpose.msra.mxu0 0.0
        %553 = vmatprep.subr.mxu0 0.0
        %554 = vmatpush1.xpose.msra.mxu0 0.0
        %555 = vmatprep.subr.mxu0 0.0
        %556 = vmatpush1.xpose.msra.mxu0 0.0
        %557 = vmatprep.subr.mxu0 0.0
        %558 = vmatpush1.xpose.msra.mxu0 0.0
        %559 = vmatprep.subr.mxu0 0.0
        %560 = vmatpush1.xpose.msra.mxu0 0.0
        %561 = vmatprep.subr.mxu0 0.0
        %562 = vmatpush1.xpose.msra.mxu0 0.0
        %563 = vmatprep.subr.mxu0 0.0
        %564 = vmatpush1.xpose.msra.mxu0 0.0
        %565 = vmatprep.subr.mxu0 0.0
        %566 = vmatpush1.xpose.msra.mxu0 0.0
        %567 = vmatprep.subr.mxu0 0.0
        %568 = vmatpush1.xpose.msra.mxu0 0.0
        %569 = vmatprep.subr.mxu0 0.0
        %570 = vmatpush1.xpose.msra.mxu0 0.0
        %571 = vmatprep.subr.mxu0 0.0
        %572 = vmatpush1.xpose.msra.mxu0 0.0
        %573 = vmatprep.subr.mxu0 0.0
        %574 = vmatpush1.xpose.msra.mxu0 0.0
        %575 = vmatprep.subr.mxu0 0.0
        %576 = vmatpush1.xpose.msra.mxu0 0.0
        %577 = vmatprep.subr.mxu0 0.0
        %578 = vmatpush1.xpose.msra.mxu0 0.0
        %579 = vmatprep.subr.mxu0 0.0
        %580 = vmatpush1.xpose.msra.mxu0 0.0
        %581 = vmatprep.subr.mxu0 0.0
        %582 = vmatpush1.xpose.msra.mxu0 0.0
        %583 = vmatprep.subr.mxu0 0.0
        %584 = vmatpush1.xpose.msra.mxu0 0.0
        %585 = vmatprep.subr.mxu0 0.0
        %586 = vmatpush1.xpose.msra.mxu0 0.0
        %587 = vmatprep.subr.mxu0 0.0
        %588 = vmatpush1.xpose.msra.mxu0 0.0
        %589 = vmatprep.subr.mxu0 0.0
        %590 = vmatpush1.xpose.msra.mxu0 0.0
        %591 = vmatprep.mubr.f32.mxu0 0.0
        %592 = vmatmul.mubr.f32.gmra.mrb[0].mxu0 %v522
        %v593 = vpop.f32.mrb[0].mxu0
        %v594 = vadd.f32 0.0, %v593
        %v595 = vpop.f32.mrb[0].mxu0
        %596 = vdwg.mxu0
        %v598 = vsel %vm444, %v434, 0
        %v601 = vsel %vm444, %v438, 0
        %603 = vmatprep.subr.mxu0 0.0
        %604 = vmatpush1.xpose.msra.mxu0 %v601
        %605 = vmatprep.subr.mxu0 0.0
        %606 = vmatpush1.xpose.msra.mxu0 0.0
        %607 = vmatprep.subr.mxu0 0.0
        %608 = vmatpush1.xpose.msra.mxu0 0.0
        %609 = vmatprep.subr.mxu0 0.0
        %610 = vmatpush1.xpose.msra.mxu0 0.0
        %611 = vmatprep.subr.mxu0 0.0
        %612 = vmatpush1.xpose.msra.mxu0 0.0
        %613 = vmatprep.subr.mxu0 0.0
        %614 = vmatpush1.xpose.msra.mxu0 0.0
        %615 = vmatprep.subr.mxu0 0.0
        %616 = vmatpush1.xpose.msra.mxu0 0.0
        %617 = vmatprep.subr.mxu0 0.0
        %618 = vmatpush1.xpose.msra.mxu0 0.0
        %619 = vmatprep.subr.mxu0 0.0
        %620 = vmatpush1.xpose.msra.mxu0 0.0
        %621 = vmatprep.subr.mxu0 0.0
        %622 = vmatpush1.xpose.msra.mxu0 0.0
        %623 = vmatprep.subr.mxu0 0.0
        %624 = vmatpush1.xpose.msra.mxu0 0.0
        %625 = vmatprep.subr.mxu0 0.0
        %626 = vmatpush1.xpose.msra.mxu0 0.0
        %627 = vmatprep.subr.mxu0 0.0
        %628 = vmatpush1.xpose.msra.mxu0 0.0
        %629 = vmatprep.subr.mxu0 0.0
        %630 = vmatpush1.xpose.msra.mxu0 0.0
        %631 = vmatprep.subr.mxu0 0.0
        %632 = vmatpush1.xpose.msra.mxu0 0.0
        %633 = vmatprep.subr.mxu0 0.0
        %634 = vmatpush1.xpose.msra.mxu0 0.0
        %635 = vmatprep.subr.mxu0 0.0
        %636 = vmatpush1.xpose.msra.mxu0 0.0
        %637 = vmatprep.subr.mxu0 0.0
        %638 = vmatpush1.xpose.msra.mxu0 0.0
        %639 = vmatprep.subr.mxu0 0.0
        %640 = vmatpush1.xpose.msra.mxu0 0.0
        %641 = vmatprep.subr.mxu0 0.0
        %642 = vmatpush1.xpose.msra.mxu0 0.0
        %643 = vmatprep.subr.mxu0 0.0
        %644 = vmatpush1.xpose.msra.mxu0 0.0
        %645 = vmatprep.subr.mxu0 0.0
        %646 = vmatpush1.xpose.msra.mxu0 0.0
        %647 = vmatprep.subr.mxu0 0.0
        %648 = vmatpush1.xpose.msra.mxu0 0.0
        %649 = vmatprep.subr.mxu0 0.0
        %650 = vmatpush1.xpose.msra.mxu0 0.0
        %651 = vmatprep.subr.mxu0 0.0
        %652 = vmatpush1.xpose.msra.mxu0 0.0
        %653 = vmatprep.subr.mxu0 0.0
        %654 = vmatpush1.xpose.msra.mxu0 0.0
        %655 = vmatprep.subr.mxu0 0.0
        %656 = vmatpush1.xpose.msra.mxu0 0.0
        %657 = vmatprep.subr.mxu0 0.0
        %658 = vmatpush1.xpose.msra.mxu0 0.0
        %659 = vmatprep.subr.mxu0 0.0
        %660 = vmatpush1.xpose.msra.mxu0 0.0
        %661 = vmatprep.subr.mxu0 0.0
        %662 = vmatpush1.xpose.msra.mxu0 0.0
        %663 = vmatprep.subr.mxu0 0.0
        %664 = vmatpush1.xpose.msra.mxu0 0.0
        %665 = vmatprep.subr.mxu0 0.0
        %666 = vmatpush1.xpose.msra.mxu0 0.0
        %667 = vmatprep.mubr.f32.mxu0 0.0
        %668 = vmatmul.mubr.f32.gmra.mrb[0].mxu0 %v598
        %v669 = vpop.f32.mrb[0].mxu0
        %v670 = vadd.f32 0.0, %v669
        %v671 = vpop.f32.mrb[0].mxu0
        %672 = vdwg.mxu0
        %v674 = vsel %vm444, %v435, 0
        %v677 = vsel %vm444, %v439, 0
        %679 = vmatprep.subr.mxu0 0.0
        %680 = vmatpush1.xpose.msra.mxu0 %v677
        %681 = vmatprep.subr.mxu0 0.0
        %682 = vmatpush1.xpose.msra.mxu0 0.0
        %683 = vmatprep.subr.mxu0 0.0
        %684 = vmatpush1.xpose.msra.mxu0 0.0
        %685 = vmatprep.subr.mxu0 0.0
        %686 = vmatpush1.xpose.msra.mxu0 0.0
        %687 = vmatprep.subr.mxu0 0.0
        %688 = vmatpush1.xpose.msra.mxu0 0.0
        %689 = vmatprep.subr.mxu0 0.0
        %690 = vmatpush1.xpose.msra.mxu0 0.0
        %691 = vmatprep.subr.mxu0 0.0
        %692 = vmatpush1.xpose.msra.mxu0 0.0
        %693 = vmatprep.subr.mxu0 0.0
        %694 = vmatpush1.xpose.msra.mxu0 0.0
        %695 = vmatprep.subr.mxu0 0.0
        %696 = vmatpush1.xpose.msra.mxu0 0.0
        %697 = vmatprep.subr.mxu0 0.0
        %698 = vmatpush1.xpose.msra.mxu0 0.0
        %699 = vmatprep.subr.mxu0 0.0
        %700 = vmatpush1.xpose.msra.mxu0 0.0
        %701 = vmatprep.subr.mxu0 0.0
        %702 = vmatpush1.xpose.msra.mxu0 0.0
        %703 = vmatprep.subr.mxu0 0.0
        %704 = vmatpush1.xpose.msra.mxu0 0.0
        %705 = vmatprep.subr.mxu0 0.0
        %706 = vmatpush1.xpose.msra.mxu0 0.0
        %707 = vmatprep.subr.mxu0 0.0
        %708 = vmatpush1.xpose.msra.mxu0 0.0
        %709 = vmatprep.subr.mxu0 0.0
        %710 = vmatpush1.xpose.msra.mxu0 0.0
        %711 = vmatprep.subr.mxu0 0.0
        %712 = vmatpush1.xpose.msra.mxu0 0.0
        %713 = vmatprep.subr.mxu0 0.0
        %714 = vmatpush1.xpose.msra.mxu0 0.0
        %715 = vmatprep.subr.mxu0 0.0
        %716 = vmatpush1.xpose.msra.mxu0 0.0
        %717 = vmatprep.subr.mxu0 0.0
        %718 = vmatpush1.xpose.msra.mxu0 0.0
        %719 = vmatprep.subr.mxu0 0.0
        %720 = vmatpush1.xpose.msra.mxu0 0.0
        %721 = vmatprep.subr.mxu0 0.0
        %722 = vmatpush1.xpose.msra.mxu0 0.0
        %723 = vmatprep.subr.mxu0 0.0
        %724 = vmatpush1.xpose.msra.mxu0 0.0
        %725 = vmatprep.subr.mxu0 0.0
        %726 = vmatpush1.xpose.msra.mxu0 0.0
        %727 = vmatprep.subr.mxu0 0.0
        %728 = vmatpush1.xpose.msra.mxu0 0.0
        %729 = vmatprep.subr.mxu0 0.0
        %730 = vmatpush1.xpose.msra.mxu0 0.0
        %731 = vmatprep.subr.mxu0 0.0
        %732 = vmatpush1.xpose.msra.mxu0 0.0
        %733 = vmatprep.subr.mxu0 0.0
        %734 = vmatpush1.xpose.msra.mxu0 0.0
        %735 = vmatprep.subr.mxu0 0.0
        %736 = vmatpush1.xpose.msra.mxu0 0.0
        %737 = vmatprep.subr.mxu0 0.0
        %738 = vmatpush1.xpose.msra.mxu0 0.0
        %739 = vmatprep.subr.mxu0 0.0
        %740 = vmatpush1.xpose.msra.mxu0 0.0
        %741 = vmatprep.subr.mxu0 0.0
        %742 = vmatpush1.xpose.msra.mxu0 0.0
        %743 = vmatprep.mubr.f32.mxu0 0.0
        %744 = vmatmul.mubr.f32.gmra.mrb[0].mxu0 %v674
        %v745 = vpop.f32.mrb[0].mxu0
        %v746 = vadd.f32 0.0, %v745
        %v747 = vpop.f32.mrb[0].mxu0
        %748 = vdwg.mxu0
        %p749 = scmp.lt.s32.totalorder %s413, %s412
        // Predicated region
        $region151: #{block_forward.4} parent=133 // pred_check
          %p750 = pneg %p749
        $region152: #{block_forward.4} parent=133 // pred_check_branch
          %752 = sbr.rel (%p750) target = $region154
        $region153: #{block_forward.4} parent=133 // pred_region
          %v753 = vld [vmem:[#allocation2] sm:$0xff]
          %v754 = vld [vmem:[#allocation2 + $0x8] sm:$0xff]
          %v755 = vld [vmem:[#allocation2 + $0x10] sm:$0xff]
          %v756 = vld [vmem:[#allocation2 + $0x18] sm:$0xff]
          %v757 = vsel %vm444, %v518, -inf
          %758 = vmax.xlane.f32.xlu0 %v757
          %v759 = vpop.xlane.xlu0 %758
          %v760 = vsel %vm444, %v594, -inf
          %761 = vmax.xlane.f32.xlu0 %v760
          %v762 = vpop.xlane.xlu0 %761
          %v763 = vsel %vm444, %v670, -inf
          %764 = vmax.xlane.f32.xlu0 %v763
          %v765 = vpop.xlane.xlu0 %764
          %v766 = vsel %vm444, %v746, -inf
          %767 = vmax.xlane.f32.xlu0 %v766
          %v768 = vpop.xlane.xlu0 %767
          %v769 = vmax.f32 %v753, %v759
          %v770 = vmax.f32 %v754, %v762
          %v771 = vmax.f32 %v755, %v765
          %v772 = vmax.f32 %v756, %v768
          %v773 = vsub.f32 %v753, %v769
          %v774 = vsub.f32 %v754, %v770
          %v775 = vsub.f32 %v755, %v771
          %v776 = vsub.f32 %v756, %v772
          %v777 = vmul.f32 %v773, 1.442695
          %v778 = vpow.pop %v777
          %v779 = vmul.f32 %v774, 1.442695
          %v780 = vpow.pop %v779
          %v781 = vmul.f32 %v775, 1.442695
          %v782 = vpow.pop %v781
          %v783 = vmul.f32 %v776, 1.442695
          %v784 = vpow.pop %v783
          %786 = vset.pattern.permute.xlu0 0
          %787 = vperm.xlu0 %786, %v769
          %v788 = vpop.permute.xlu0 %787
          %791 = vset.pattern.permute.xlu0 0
          %792 = vperm.xlu0 %791, %v770
          %v793 = vpop.permute.xlu0 %792
          %796 = vset.pattern.permute.xlu0 0
          %797 = vperm.xlu0 %796, %v771
          %v798 = vpop.permute.xlu0 %797
          %801 = vset.pattern.permute.xlu0 0
          %802 = vperm.xlu0 %801, %v772
          %v803 = vpop.permute.xlu0 %802
          %v805 = vsub.f32 %v518, %v788
          %v806 = vsub.f32 %v594, %v793
          %v807 = vsub.f32 %v670, %v798
          %v808 = vsub.f32 %v746, %v803
          %v809 = vmul.f32 %v805, 1.442695
          %v810 = vpow.pop %v809
          %v811 = vmul.f32 %v806, 1.442695
          %v812 = vpow.pop %v811
          %v813 = vmul.f32 %v807, 1.442695
          %v814 = vpow.pop %v813
          %v815 = vmul.f32 %v808, 1.442695
          %v816 = vpow.pop %v815
          %v817 = vld [vmem:[#allocation3] sm:$0xff]
          %v818 = vld [vmem:[#allocation3 + $0x8] sm:$0xff]
          %v819 = vld [vmem:[#allocation3 + $0x10] sm:$0xff]
          %v820 = vld [vmem:[#allocation3 + $0x18] sm:$0xff]
          %v821 = vmul.f32 %v778, %v817
          %v822 = vmul.f32 %v780, %v818
          %v823 = vmul.f32 %v782, %v819
          %v824 = vmul.f32 %v784, %v820
          %v825 = vsel %vm444, %v810, 0.0
          %826 = vadd.xlane.f32.xlu0 %v825
          %v827 = vpop.xlane.xlu0 %826
          %v828 = vsel %vm444, %v812, 0.0
          %829 = vadd.xlane.f32.xlu0 %v828
          %v830 = vpop.xlane.xlu0 %829
          %v831 = vsel %vm444, %v814, 0.0
          %832 = vadd.xlane.f32.xlu0 %v831
          %v833 = vpop.xlane.xlu0 %832
          %v834 = vsel %vm444, %v816, 0.0
          %835 = vadd.xlane.f32.xlu0 %v834
          %v836 = vpop.xlane.xlu0 %835
          %v837 = vadd.f32 %v821, %v827
          %v838 = vadd.f32 %v822, %v830
          %v839 = vadd.f32 %v823, %v833
          %v840 = vadd.f32 %v824, %v836
          %vm841 = vcmask 7168
          %842 = vst.msk [vmem:[#allocation3] sm:$0xff] %vm841, %v837
          %843 = vst.msk [vmem:[#allocation3 + $0x8] sm:$0xff] %vm841, %v838
          %844 = vst.msk [vmem:[#allocation3 + $0x10] sm:$0xff] %vm841, %v839
          %845 = vst.msk [vmem:[#allocation3 + $0x18] sm:$0xff] %vm841, %v840
          %v847 = vsel %vm444, %v810, 0
          %849 = vmatprep.subr.mxu0 0.0
          %850 = vmatpush1.msra.mxu0 %v440
          %851 = vmatprep.subr.mxu0 0.0
          %852 = vmatpush1.msra.mxu0 0.0
          %853 = vmatprep.subr.mxu0 0.0
          %854 = vmatpush1.msra.mxu0 0.0
          %855 = vmatprep.subr.mxu0 0.0
          %856 = vmatpush1.msra.mxu0 0.0
          %857 = vmatprep.subr.mxu0 0.0
          %858 = vmatpush1.msra.mxu0 0.0
          %859 = vmatprep.subr.mxu0 0.0
          %860 = vmatpush1.msra.mxu0 0.0
          %861 = vmatprep.subr.mxu0 0.0
          %862 = vmatpush1.msra.mxu0 0.0
          %863 = vmatprep.subr.mxu0 0.0
          %864 = vmatpush1.msra.mxu0 0.0
          %865 = vmatprep.subr.mxu0 0.0
          %866 = vmatpush1.msra.mxu0 0.0
          %867 = vmatprep.subr.mxu0 0.0
          %868 = vmatpush1.msra.mxu0 0.0
          %869 = vmatprep.subr.mxu0 0.0
          %870 = vmatpush1.msra.mxu0 0.0
          %871 = vmatprep.subr.mxu0 0.0
          %872 = vmatpush1.msra.mxu0 0.0
          %873 = vmatprep.subr.mxu0 0.0
          %874 = vmatpush1.msra.mxu0 0.0
          %875 = vmatprep.subr.mxu0 0.0
          %876 = vmatpush1.msra.mxu0 0.0
          %877 = vmatprep.subr.mxu0 0.0
          %878 = vmatpush1.msra.mxu0 0.0
          %879 = vmatprep.subr.mxu0 0.0
          %880 = vmatpush1.msra.mxu0 0.0
          %881 = vmatprep.subr.mxu0 0.0
          %882 = vmatpush1.msra.mxu0 0.0
          %883 = vmatprep.subr.mxu0 0.0
          %884 = vmatpush1.msra.mxu0 0.0
          %885 = vmatprep.subr.mxu0 0.0
          %886 = vmatpush1.msra.mxu0 0.0
          %887 = vmatprep.subr.mxu0 0.0
          %888 = vmatpush1.msra.mxu0 0.0
          %889 = vmatprep.subr.mxu0 0.0
          %890 = vmatpush1.msra.mxu0 0.0
          %891 = vmatprep.subr.mxu0 0.0
          %892 = vmatpush1.msra.mxu0 0.0
          %893 = vmatprep.subr.mxu0 0.0
          %894 = vmatpush1.msra.mxu0 0.0
          %895 = vmatprep.subr.mxu0 0.0
          %896 = vmatpush1.msra.mxu0 0.0
          %897 = vmatprep.subr.mxu0 0.0
          %898 = vmatpush1.msra.mxu0 0.0
          %899 = vmatprep.subr.mxu0 0.0
          %900 = vmatpush1.msra.mxu0 0.0
          %901 = vmatprep.subr.mxu0 0.0
          %902 = vmatpush1.msra.mxu0 0.0
          %903 = vmatprep.subr.mxu0 0.0
          %904 = vmatpush1.msra.mxu0 0.0
          %905 = vmatprep.subr.mxu0 0.0
          %906 = vmatpush1.msra.mxu0 0.0
          %907 = vmatprep.subr.mxu0 0.0
          %908 = vmatpush1.msra.mxu0 0.0
          %909 = vmatprep.subr.mxu0 0.0
          %910 = vmatpush1.msra.mxu0 0.0
          %911 = vmatprep.subr.mxu0 0.0
          %912 = vmatpush1.msra.mxu0 0.0
          %913 = vmatprep.mubr.f32.mxu0 0.0
          %914 = vmatmul.mubr.f32.gmra.mrb[0].mxu0 %v847
          %v915 = vpop.f32.mrb[0].mxu0
          %v916 = vadd.f32 0.0, %v915
          %v917 = vpop.f32.mrb[0].mxu0
          %918 = vdwg.mxu0
          %v920 = vsel %vm444, %v812, 0
          %922 = vmatprep.subr.mxu0 0.0
          %923 = vmatpush1.msra.mxu0 %v441
          %924 = vmatprep.subr.mxu0 0.0
          %925 = vmatpush1.msra.mxu0 0.0
          %926 = vmatprep.subr.mxu0 0.0
          %927 = vmatpush1.msra.mxu0 0.0
          %928 = vmatprep.subr.mxu0 0.0
          %929 = vmatpush1.msra.mxu0 0.0
          %930 = vmatprep.subr.mxu0 0.0
          %931 = vmatpush1.msra.mxu0 0.0
          %932 = vmatprep.subr.mxu0 0.0
          %933 = vmatpush1.msra.mxu0 0.0
          %934 = vmatprep.subr.mxu0 0.0
          %935 = vmatpush1.msra.mxu0 0.0
          %936 = vmatprep.subr.mxu0 0.0
          %937 = vmatpush1.msra.mxu0 0.0
          %938 = vmatprep.subr.mxu0 0.0
          %939 = vmatpush1.msra.mxu0 0.0
          %940 = vmatprep.subr.mxu0 0.0
          %941 = vmatpush1.msra.mxu0 0.0
          %942 = vmatprep.subr.mxu0 0.0
          %943 = vmatpush1.msra.mxu0 0.0
          %944 = vmatprep.subr.mxu0 0.0
          %945 = vmatpush1.msra.mxu0 0.0
          %946 = vmatprep.subr.mxu0 0.0
          %947 = vmatpush1.msra.mxu0 0.0
          %948 = vmatprep.subr.mxu0 0.0
          %949 = vmatpush1.msra.mxu0 0.0
          %950 = vmatprep.subr.mxu0 0.0
          %951 = vmatpush1.msra.mxu0 0.0
          %952 = vmatprep.subr.mxu0 0.0
          %953 = vmatpush1.msra.mxu0 0.0
          %954 = vmatprep.subr.mxu0 0.0
          %955 = vmatpush1.msra.mxu0 0.0
          %956 = vmatprep.subr.mxu0 0.0
          %957 = vmatpush1.msra.mxu0 0.0
          %958 = vmatprep.subr.mxu0 0.0
          %959 = vmatpush1.msra.mxu0 0.0
          %960 = vmatprep.subr.mxu0 0.0
          %961 = vmatpush1.msra.mxu0 0.0
          %962 = vmatprep.subr.mxu0 0.0
          %963 = vmatpush1.msra.mxu0 0.0
          %964 = vmatprep.subr.mxu0 0.0
          %965 = vmatpush1.msra.mxu0 0.0
          %966 = vmatprep.subr.mxu0 0.0
          %967 = vmatpush1.msra.mxu0 0.0
          %968 = vmatprep.subr.mxu0 0.0
          %969 = vmatpush1.msra.mxu0 0.0
          %970 = vmatprep.subr.mxu0 0.0
          %971 = vmatpush1.msra.mxu0 0.0
          %972 = vmatprep.subr.mxu0 0.0
          %973 = vmatpush1.msra.mxu0 0.0
          %974 = vmatprep.subr.mxu0 0.0
          %975 = vmatpush1.msra.mxu0 0.0
          %976 = vmatprep.subr.mxu0 0.0
          %977 = vmatpush1.msra.mxu0 0.0
          %978 = vmatprep.subr.mxu0 0.0
          %979 = vmatpush1.msra.mxu0 0.0
          %980 = vmatprep.subr.mxu0 0.0
          %981 = vmatpush1.msra.mxu0 0.0
          %982 = vmatprep.subr.mxu0 0.0
          %983 = vmatpush1.msra.mxu0 0.0
          %984 = vmatprep.subr.mxu0 0.0
          %985 = vmatpush1.msra.mxu0 0.0
          %986 = vmatprep.mubr.f32.mxu0 0.0
          %987 = vmatmul.mubr.f32.gmra.mrb[0].mxu0 %v920
          %v988 = vpop.f32.mrb[0].mxu0
          %v989 = vadd.f32 0.0, %v988
          %v990 = vpop.f32.mrb[0].mxu0
          %991 = vdwg.mxu0
          %v993 = vsel %vm444, %v814, 0
          %995 = vmatprep.subr.mxu0 0.0
          %996 = vmatpush1.msra.mxu0 %v442
          %997 = vmatprep.subr.mxu0 0.0
          %998 = vmatpush1.msra.mxu0 0.0
          %999 = vmatprep.subr.mxu0 0.0
          %1000 = vmatpush1.msra.mxu0 0.0
          %1001 = vmatprep.subr.mxu0 0.0
          %1002 = vmatpush1.msra.mxu0 0.0
          %1003 = vmatprep.subr.mxu0 0.0
          %1004 = vmatpush1.msra.mxu0 0.0
          %1005 = vmatprep.subr.mxu0 0.0
          %1006 = vmatpush1.msra.mxu0 0.0
          %1007 = vmatprep.subr.mxu0 0.0
          %1008 = vmatpush1.msra.mxu0 0.0
          %1009 = vmatprep.subr.mxu0 0.0
          %1010 = vmatpush1.msra.mxu0 0.0
          %1011 = vmatprep.subr.mxu0 0.0
          %1012 = vmatpush1.msra.mxu0 0.0
          %1013 = vmatprep.subr.mxu0 0.0
          %1014 = vmatpush1.msra.mxu0 0.0
          %1015 = vmatprep.subr.mxu0 0.0
          %1016 = vmatpush1.msra.mxu0 0.0
          %1017 = vmatprep.subr.mxu0 0.0
          %1018 = vmatpush1.msra.mxu0 0.0
          %1019 = vmatprep.subr.mxu0 0.0
          %1020 = vmatpush1.msra.mxu0 0.0
          %1021 = vmatprep.subr.mxu0 0.0
          %1022 = vmatpush1.msra.mxu0 0.0
          %1023 = vmatprep.subr.mxu0 0.0
          %1024 = vmatpush1.msra.mxu0 0.0
          %1025 = vmatprep.subr.mxu0 0.0
          %1026 = vmatpush1.msra.mxu0 0.0
          %1027 = vmatprep.subr.mxu0 0.0
          %1028 = vmatpush1.msra.mxu0 0.0
          %1029 = vmatprep.subr.mxu0 0.0
          %1030 = vmatpush1.msra.mxu0 0.0
          %1031 = vmatprep.subr.mxu0 0.0
          %1032 = vmatpush1.msra.mxu0 0.0
          %1033 = vmatprep.subr.mxu0 0.0
          %1034 = vmatpush1.msra.mxu0 0.0
          %1035 = vmatprep.subr.mxu0 0.0
          %1036 = vmatpush1.msra.mxu0 0.0
          %1037 = vmatprep.subr.mxu0 0.0
          %1038 = vmatpush1.msra.mxu0 0.0
          %1039 = vmatprep.subr.mxu0 0.0
          %1040 = vmatpush1.msra.mxu0 0.0
          %1041 = vmatprep.subr.mxu0 0.0
          %1042 = vmatpush1.msra.mxu0 0.0
          %1043 = vmatprep.subr.mxu0 0.0
          %1044 = vmatpush1.msra.mxu0 0.0
          %1045 = vmatprep.subr.mxu0 0.0
          %1046 = vmatpush1.msra.mxu0 0.0
          %1047 = vmatprep.subr.mxu0 0.0
          %1048 = vmatpush1.msra.mxu0 0.0
          %1049 = vmatprep.subr.mxu0 0.0
          %1050 = vmatpush1.msra.mxu0 0.0
          %1051 = vmatprep.subr.mxu0 0.0
          %1052 = vmatpush1.msra.mxu0 0.0
          %1053 = vmatprep.subr.mxu0 0.0
          %1054 = vmatpush1.msra.mxu0 0.0
          %1055 = vmatprep.subr.mxu0 0.0
          %1056 = vmatpush1.msra.mxu0 0.0
          %1057 = vmatprep.subr.mxu0 0.0
          %1058 = vmatpush1.msra.mxu0 0.0
          %1059 = vmatprep.mubr.f32.mxu0 0.0
          %1060 = vmatmul.mubr.f32.gmra.mrb[0].mxu0 %v993
          %v1061 = vpop.f32.mrb[0].mxu0
          %v1062 = vadd.f32 0.0, %v1061
          %v1063 = vpop.f32.mrb[0].mxu0
          %1064 = vdwg.mxu0
          %v1066 = vsel %vm444, %v816, 0
          %1068 = vmatprep.subr.mxu0 0.0
          %1069 = vmatpush1.msra.mxu0 %v443
          %1070 = vmatprep.subr.mxu0 0.0
          %1071 = vmatpush1.msra.mxu0 0.0
          %1072 = vmatprep.subr.mxu0 0.0
          %1073 = vmatpush1.msra.mxu0 0.0
          %1074 = vmatprep.subr.mxu0 0.0
          %1075 = vmatpush1.msra.mxu0 0.0
          %1076 = vmatprep.subr.mxu0 0.0
          %1077 = vmatpush1.msra.mxu0 0.0
          %1078 = vmatprep.subr.mxu0 0.0
          %1079 = vmatpush1.msra.mxu0 0.0
          %1080 = vmatprep.subr.mxu0 0.0
          %1081 = vmatpush1.msra.mxu0 0.0
          %1082 = vmatprep.subr.mxu0 0.0
          %1083 = vmatpush1.msra.mxu0 0.0
          %1084 = vmatprep.subr.mxu0 0.0
          %1085 = vmatpush1.msra.mxu0 0.0
          %1086 = vmatprep.subr.mxu0 0.0
          %1087 = vmatpush1.msra.mxu0 0.0
          %1088 = vmatprep.subr.mxu0 0.0
          %1089 = vmatpush1.msra.mxu0 0.0
          %1090 = vmatprep.subr.mxu0 0.0
          %1091 = vmatpush1.msra.mxu0 0.0
          %1092 = vmatprep.subr.mxu0 0.0
          %1093 = vmatpush1.msra.mxu0 0.0
          %1094 = vmatprep.subr.mxu0 0.0
          %1095 = vmatpush1.msra.mxu0 0.0
          %1096 = vmatprep.subr.mxu0 0.0
          %1097 = vmatpush1.msra.mxu0 0.0
          %1098 = vmatprep.subr.mxu0 0.0
          %1099 = vmatpush1.msra.mxu0 0.0
          %1100 = vmatprep.subr.mxu0 0.0
          %1101 = vmatpush1.msra.mxu0 0.0
          %1102 = vmatprep.subr.mxu0 0.0
          %1103 = vmatpush1.msra.mxu0 0.0
          %1104 = vmatprep.subr.mxu0 0.0
          %1105 = vmatpush1.msra.mxu0 0.0
          %1106 = vmatprep.subr.mxu0 0.0
          %1107 = vmatpush1.msra.mxu0 0.0
          %1108 = vmatprep.subr.mxu0 0.0
          %1109 = vmatpush1.msra.mxu0 0.0
          %1110 = vmatprep.subr.mxu0 0.0
          %1111 = vmatpush1.msra.mxu0 0.0
          %1112 = vmatprep.subr.mxu0 0.0
          %1113 = vmatpush1.msra.mxu0 0.0
          %1114 = vmatprep.subr.mxu0 0.0
          %1115 = vmatpush1.msra.mxu0 0.0
          %1116 = vmatprep.subr.mxu0 0.0
          %1117 = vmatpush1.msra.mxu0 0.0
          %1118 = vmatprep.subr.mxu0 0.0
          %1119 = vmatpush1.msra.mxu0 0.0
          %1120 = vmatprep.subr.mxu0 0.0
          %1121 = vmatpush1.msra.mxu0 0.0
          %1122 = vmatprep.subr.mxu0 0.0
          %1123 = vmatpush1.msra.mxu0 0.0
          %1124 = vmatprep.subr.mxu0 0.0
          %1125 = vmatpush1.msra.mxu0 0.0
          %1126 = vmatprep.subr.mxu0 0.0
          %1127 = vmatpush1.msra.mxu0 0.0
          %1128 = vmatprep.subr.mxu0 0.0
          %1129 = vmatpush1.msra.mxu0 0.0
          %1130 = vmatprep.subr.mxu0 0.0
          %1131 = vmatpush1.msra.mxu0 0.0
          %1132 = vmatprep.mubr.f32.mxu0 0.0
          %1133 = vmatmul.mubr.f32.gmra.mrb[0].mxu0 %v1066
          %v1134 = vpop.f32.mrb[0].mxu0
          %v1135 = vadd.f32 0.0, %v1134
          %v1136 = vpop.f32.mrb[0].mxu0
          %1137 = vdwg.mxu0
          %v1138 = vld [vmem:[#allocation4] sm:$0xff]
          %v1139 = vld [vmem:[#allocation4 + $0x8] sm:$0xff]
          %v1140 = vld [vmem:[#allocation4 + $0x10] sm:$0xff]
          %v1141 = vld [vmem:[#allocation4 + $0x18] sm:$0xff]
          %1143 = vset.pattern.permute.xlu0 0
          %1144 = vperm.xlu0 %1143, %v778
          %v1145 = vpop.permute.xlu0 %1144
          %1148 = vset.pattern.permute.xlu0 0
          %1149 = vperm.xlu0 %1148, %v780
          %v1150 = vpop.permute.xlu0 %1149
          %1153 = vset.pattern.permute.xlu0 0
          %1154 = vperm.xlu0 %1153, %v782
          %v1155 = vpop.permute.xlu0 %1154
          %1158 = vset.pattern.permute.xlu0 0
          %1159 = vperm.xlu0 %1158, %v784
          %v1160 = vpop.permute.xlu0 %1159
          %v1162 = vmul.f32 %v1145, %v1138
          %v1163 = vmul.f32 %v1150, %v1139
          %v1164 = vmul.f32 %v1155, %v1140
          %v1165 = vmul.f32 %v1160, %v1141
          %v1166 = vadd.f32 %v1162, %v916
          %v1167 = vadd.f32 %v1163, %v989
          %v1168 = vadd.f32 %v1164, %v1062
          %v1169 = vadd.f32 %v1165, %v1135
          %1170 = vst.msk [vmem:[#allocation4] sm:$0xff] %vm444, %v1166
          %1171 = vst.msk [vmem:[#allocation4 + $0x8] sm:$0xff] %vm444, %v1167
          %1172 = vst.msk [vmem:[#allocation4 + $0x10] sm:$0xff] %vm444, %v1168
          %1173 = vst.msk [vmem:[#allocation4 + $0x18] sm:$0xff] %vm444, %v1169
          %1174 = vst.msk [vmem:[#allocation2] sm:$0xff] %vm841, %v769
          %1175 = vst.msk [vmem:[#allocation2 + $0x8] sm:$0xff] %vm841, %v770
          %1176 = vst.msk [vmem:[#allocation2 + $0x10] sm:$0xff] %vm841, %v771
          %1177 = vst.msk [vmem:[#allocation2 + $0x18] sm:$0xff] %vm841, %v772
        $region154: #{block_forward.4} parent=133 // pred_fallthru
          _
        %p1178 = scmp.eq.s32.totalorder %s413, %s412
        // Predicated region
        $region155: #{block_forward.4} parent=133 // pred_check
          %p1179 = pneg %p1178
        $region156: #{block_forward.4} parent=133 // pred_check_branch
          %1181 = sbr.rel (%p1179) target = $region158
        $region157: #{block_forward.4} parent=133 // pred_region
          %v1182 = vlaneseq
          %v1183 = vshrl.u32 %v1182, 7
          %v1184 = vlaneseq
          %v1185 = vand.u32 %v1184, 127
          %vm1186 = vcmp.ge.s32.totalorder %v1183, %v1185
          %v1187 = vsel %vm1186, 1, 0
          %vm1188 = vcmp.eq.s32.totalorder %v1187, 1
          %v1189 = vsel %vm1188, %v518, -2.3819765e+38
          %v1190 = vsel %vm1188, %v594, -2.3819765e+38
          %v1191 = vsel %vm1188, %v670, -2.3819765e+38
          %v1192 = vsel %vm1188, %v746, -2.3819765e+38
          %v1193 = vld [vmem:[#allocation2] sm:$0xff]
          %v1194 = vld [vmem:[#allocation2 + $0x8] sm:$0xff]
          %v1195 = vld [vmem:[#allocation2 + $0x10] sm:$0xff]
          %v1196 = vld [vmem:[#allocation2 + $0x18] sm:$0xff]
          %v1197 = vsel %vm444, %v1189, -inf
          %1198 = vmax.xlane.f32.xlu0 %v1197
          %v1199 = vpop.xlane.xlu0 %1198
          %v1200 = vsel %vm444, %v1190, -inf
          %1201 = vmax.xlane.f32.xlu0 %v1200
          %v1202 = vpop.xlane.xlu0 %1201
          %v1203 = vsel %vm444, %v1191, -inf
          %1204 = vmax.xlane.f32.xlu0 %v1203
          %v1205 = vpop.xlane.xlu0 %1204
          %v1206 = vsel %vm444, %v1192, -inf
          %1207 = vmax.xlane.f32.xlu0 %v1206
          %v1208 = vpop.xlane.xlu0 %1207
          %v1209 = vmax.f32 %v1193, %v1199
          %v1210 = vmax.f32 %v1194, %v1202
          %v1211 = vmax.f32 %v1195, %v1205
          %v1212 = vmax.f32 %v1196, %v1208
          %v1213 = vsub.f32 %v1193, %v1209
          %v1214 = vsub.f32 %v1194, %v1210
          %v1215 = vsub.f32 %v1195, %v1211
          %v1216 = vsub.f32 %v1196, %v1212
          %v1217 = vmul.f32 %v1213, 1.442695
          %v1218 = vpow.pop %v1217
          %v1219 = vmul.f32 %v1214, 1.442695
          %v1220 = vpow.pop %v1219
          %v1221 = vmul.f32 %v1215, 1.442695
          %v1222 = vpow.pop %v1221
          %v1223 = vmul.f32 %v1216, 1.442695
          %v1224 = vpow.pop %v1223
          %1226 = vset.pattern.permute.xlu0 0
          %1227 = vperm.xlu0 %1226, %v1209
          %v1228 = vpop.permute.xlu0 %1227
          %1231 = vset.pattern.permute.xlu0 0
          %1232 = vperm.xlu0 %1231, %v1210
          %v1233 = vpop.permute.xlu0 %1232
          %1236 = vset.pattern.permute.xlu0 0
          %1237 = vperm.xlu0 %1236, %v1211
          %v1238 = vpop.permute.xlu0 %1237
          %1241 = vset.pattern.permute.xlu0 0
          %1242 = vperm.xlu0 %1241, %v1212
          %v1243 = vpop.permute.xlu0 %1242
          %v1245 = vsub.f32 %v1189, %v1228
          %v1246 = vsub.f32 %v1190, %v1233
          %v1247 = vsub.f32 %v1191, %v1238
          %v1248 = vsub.f32 %v1192, %v1243
          %v1249 = vmul.f32 %v1245, 1.442695
          %v1250 = vpow.pop %v1249
          %v1251 = vmul.f32 %v1246, 1.442695
          %v1252 = vpow.pop %v1251
          %v1253 = vmul.f32 %v1247, 1.442695
          %v1254 = vpow.pop %v1253
          %v1255 = vmul.f32 %v1248, 1.442695
          %v1256 = vpow.pop %v1255
          %v1257 = vld [vmem:[#allocation3] sm:$0xff]
          %v1258 = vld [vmem:[#allocation3 + $0x8] sm:$0xff]
          %v1259 = vld [vmem:[#allocation3 + $0x10] sm:$0xff]
          %v1260 = vld [vmem:[#allocation3 + $0x18] sm:$0xff]
          %v1261 = vmul.f32 %v1218, %v1257
          %v1262 = vmul.f32 %v1220, %v1258
          %v1263 = vmul.f32 %v1222, %v1259
          %v1264 = vmul.f32 %v1224, %v1260
          %v1265 = vsel %vm444, %v1250, 0.0
          %1266 = vadd.xlane.f32.xlu0 %v1265
          %v1267 = vpop.xlane.xlu0 %1266
          %v1268 = vsel %vm444, %v1252, 0.0
          %1269 = vadd.xlane.f32.xlu0 %v1268
          %v1270 = vpop.xlane.xlu0 %1269
          %v1271 = vsel %vm444, %v1254, 0.0
          %1272 = vadd.xlane.f32.xlu0 %v1271
          %v1273 = vpop.xlane.xlu0 %1272
          %v1274 = vsel %vm444, %v1256, 0.0
          %1275 = vadd.xlane.f32.xlu0 %v1274
          %v1276 = vpop.xlane.xlu0 %1275
          %v1277 = vadd.f32 %v1261, %v1267
          %v1278 = vadd.f32 %v1262, %v1270
          %v1279 = vadd.f32 %v1263, %v1273
          %v1280 = vadd.f32 %v1264, %v1276
          %vm1281 = vcmask 7168
          %1282 = vst.msk [vmem:[#allocation3] sm:$0xff] %vm1281, %v1277
          %1283 = vst.msk [vmem:[#allocation3 + $0x8] sm:$0xff] %vm1281, %v1278
          %1284 = vst.msk [vmem:[#allocation3 + $0x10] sm:$0xff] %vm1281, %v1279
          %1285 = vst.msk [vmem:[#allocation3 + $0x18] sm:$0xff] %vm1281, %v1280
          %v1287 = vsel %vm444, %v1250, 0
          %1289 = vmatprep.subr.mxu0 0.0
          %1290 = vmatpush1.msra.mxu0 %v440
          %1291 = vmatprep.subr.mxu0 0.0
          %1292 = vmatpush1.msra.mxu0 0.0
          %1293 = vmatprep.subr.mxu0 0.0
          %1294 = vmatpush1.msra.mxu0 0.0
          %1295 = vmatprep.subr.mxu0 0.0
          %1296 = vmatpush1.msra.mxu0 0.0
          %1297 = vmatprep.subr.mxu0 0.0
          %1298 = vmatpush1.msra.mxu0 0.0
          %1299 = vmatprep.subr.mxu0 0.0
          %1300 = vmatpush1.msra.mxu0 0.0
          %1301 = vmatprep.subr.mxu0 0.0
          %1302 = vmatpush1.msra.mxu0 0.0
          %1303 = vmatprep.subr.mxu0 0.0
          %1304 = vmatpush1.msra.mxu0 0.0
          %1305 = vmatprep.subr.mxu0 0.0
          %1306 = vmatpush1.msra.mxu0 0.0
          %1307 = vmatprep.subr.mxu0 0.0
          %1308 = vmatpush1.msra.mxu0 0.0
          %1309 = vmatprep.subr.mxu0 0.0
          %1310 = vmatpush1.msra.mxu0 0.0
          %1311 = vmatprep.subr.mxu0 0.0
          %1312 = vmatpush1.msra.mxu0 0.0
          %1313 = vmatprep.subr.mxu0 0.0
          %1314 = vmatpush1.msra.mxu0 0.0
          %1315 = vmatprep.subr.mxu0 0.0
          %1316 = vmatpush1.msra.mxu0 0.0
          %1317 = vmatprep.subr.mxu0 0.0
          %1318 = vmatpush1.msra.mxu0 0.0
          %1319 = vmatprep.subr.mxu0 0.0
          %1320 = vmatpush1.msra.mxu0 0.0
          %1321 = vmatprep.subr.mxu0 0.0
          %1322 = vmatpush1.msra.mxu0 0.0
          %1323 = vmatprep.subr.mxu0 0.0
          %1324 = vmatpush1.msra.mxu0 0.0
          %1325 = vmatprep.subr.mxu0 0.0
          %1326 = vmatpush1.msra.mxu0 0.0
          %1327 = vmatprep.subr.mxu0 0.0
          %1328 = vmatpush1.msra.mxu0 0.0
          %1329 = vmatprep.subr.mxu0 0.0
          %1330 = vmatpush1.msra.mxu0 0.0
          %1331 = vmatprep.subr.mxu0 0.0
          %1332 = vmatpush1.msra.mxu0 0.0
          %1333 = vmatprep.subr.mxu0 0.0
          %1334 = vmatpush1.msra.mxu0 0.0
          %1335 = vmatprep.subr.mxu0 0.0
          %1336 = vmatpush1.msra.mxu0 0.0
          %1337 = vmatprep.subr.mxu0 0.0
          %1338 = vmatpush1.msra.mxu0 0.0
          %1339 = vmatprep.subr.mxu0 0.0
          %1340 = vmatpush1.msra.mxu0 0.0
          %1341 = vmatprep.subr.mxu0 0.0
          %1342 = vmatpush1.msra.mxu0 0.0
          %1343 = vmatprep.subr.mxu0 0.0
          %1344 = vmatpush1.msra.mxu0 0.0
          %1345 = vmatprep.subr.mxu0 0.0
          %1346 = vmatpush1.msra.mxu0 0.0
          %1347 = vmatprep.subr.mxu0 0.0
          %1348 = vmatpush1.msra.mxu0 0.0
          %1349 = vmatprep.subr.mxu0 0.0
          %1350 = vmatpush1.msra.mxu0 0.0
          %1351 = vmatprep.subr.mxu0 0.0
          %1352 = vmatpush1.msra.mxu0 0.0
          %1353 = vmatprep.mubr.f32.mxu0 0.0
          %1354 = vmatmul.mubr.f32.gmra.mrb[0].mxu0 %v1287
          %v1355 = vpop.f32.mrb[0].mxu0
          %v1356 = vadd.f32 0.0, %v1355
          %v1357 = vpop.f32.mrb[0].mxu0
          %1358 = vdwg.mxu0
          %v1360 = vsel %vm444, %v1252, 0
          %1362 = vmatprep.subr.mxu0 0.0
          %1363 = vmatpush1.msra.mxu0 %v441
          %1364 = vmatprep.subr.mxu0 0.0
          %1365 = vmatpush1.msra.mxu0 0.0
          %1366 = vmatprep.subr.mxu0 0.0
          %1367 = vmatpush1.msra.mxu0 0.0
          %1368 = vmatprep.subr.mxu0 0.0
          %1369 = vmatpush1.msra.mxu0 0.0
          %1370 = vmatprep.subr.mxu0 0.0
          %1371 = vmatpush1.msra.mxu0 0.0
          %1372 = vmatprep.subr.mxu0 0.0
          %1373 = vmatpush1.msra.mxu0 0.0
          %1374 = vmatprep.subr.mxu0 0.0
          %1375 = vmatpush1.msra.mxu0 0.0
          %1376 = vmatprep.subr.mxu0 0.0
          %1377 = vmatpush1.msra.mxu0 0.0
          %1378 = vmatprep.subr.mxu0 0.0
          %1379 = vmatpush1.msra.mxu0 0.0
          %1380 = vmatprep.subr.mxu0 0.0
          %1381 = vmatpush1.msra.mxu0 0.0
          %1382 = vmatprep.subr.mxu0 0.0
          %1383 = vmatpush1.msra.mxu0 0.0
          %1384 = vmatprep.subr.mxu0 0.0
          %1385 = vmatpush1.msra.mxu0 0.0
          %1386 = vmatprep.subr.mxu0 0.0
          %1387 = vmatpush1.msra.mxu0 0.0
          %1388 = vmatprep.subr.mxu0 0.0
          %1389 = vmatpush1.msra.mxu0 0.0
          %1390 = vmatprep.subr.mxu0 0.0
          %1391 = vmatpush1.msra.mxu0 0.0
          %1392 = vmatprep.subr.mxu0 0.0
          %1393 = vmatpush1.msra.mxu0 0.0
          %1394 = vmatprep.subr.mxu0 0.0
          %1395 = vmatpush1.msra.mxu0 0.0
          %1396 = vmatprep.subr.mxu0 0.0
          %1397 = vmatpush1.msra.mxu0 0.0
          %1398 = vmatprep.subr.mxu0 0.0
          %1399 = vmatpush1.msra.mxu0 0.0
          %1400 = vmatprep.subr.mxu0 0.0
          %1401 = vmatpush1.msra.mxu0 0.0
          %1402 = vmatprep.subr.mxu0 0.0
          %1403 = vmatpush1.msra.mxu0 0.0
          %1404 = vmatprep.subr.mxu0 0.0
          %1405 = vmatpush1.msra.mxu0 0.0
          %1406 = vmatprep.subr.mxu0 0.0
          %1407 = vmatpush1.msra.mxu0 0.0
          %1408 = vmatprep.subr.mxu0 0.0
          %1409 = vmatpush1.msra.mxu0 0.0
          %1410 = vmatprep.subr.mxu0 0.0
          %1411 = vmatpush1.msra.mxu0 0.0
          %1412 = vmatprep.subr.mxu0 0.0
          %1413 = vmatpush1.msra.mxu0 0.0
          %1414 = vmatprep.subr.mxu0 0.0
          %1415 = vmatpush1.msra.mxu0 0.0
          %1416 = vmatprep.subr.mxu0 0.0
          %1417 = vmatpush1.msra.mxu0 0.0
          %1418 = vmatprep.subr.mxu0 0.0
          %1419 = vmatpush1.msra.mxu0 0.0
          %1420 = vmatprep.subr.mxu0 0.0
          %1421 = vmatpush1.msra.mxu0 0.0
          %1422 = vmatprep.subr.mxu0 0.0
          %1423 = vmatpush1.msra.mxu0 0.0
          %1424 = vmatprep.subr.mxu0 0.0
          %1425 = vmatpush1.msra.mxu0 0.0
          %1426 = vmatprep.mubr.f32.mxu0 0.0
          %1427 = vmatmul.mubr.f32.gmra.mrb[0].mxu0 %v1360
          %v1428 = vpop.f32.mrb[0].mxu0
          %v1429 = vadd.f32 0.0, %v1428
          %v1430 = vpop.f32.mrb[0].mxu0
          %1431 = vdwg.mxu0
          %v1433 = vsel %vm444, %v1254, 0
          %1435 = vmatprep.subr.mxu0 0.0
          %1436 = vmatpush1.msra.mxu0 %v442
          %1437 = vmatprep.subr.mxu0 0.0
          %1438 = vmatpush1.msra.mxu0 0.0
          %1439 = vmatprep.subr.mxu0 0.0
          %1440 = vmatpush1.msra.mxu0 0.0
          %1441 = vmatprep.subr.mxu0 0.0
          %1442 = vmatpush1.msra.mxu0 0.0
          %1443 = vmatprep.subr.mxu0 0.0
          %1444 = vmatpush1.msra.mxu0 0.0
          %1445 = vmatprep.subr.mxu0 0.0
          %1446 = vmatpush1.msra.mxu0 0.0
          %1447 = vmatprep.subr.mxu0 0.0
          %1448 = vmatpush1.msra.mxu0 0.0
          %1449 = vmatprep.subr.mxu0 0.0
          %1450 = vmatpush1.msra.mxu0 0.0
          %1451 = vmatprep.subr.mxu0 0.0
          %1452 = vmatpush1.msra.mxu0 0.0
          %1453 = vmatprep.subr.mxu0 0.0
          %1454 = vmatpush1.msra.mxu0 0.0
          %1455 = vmatprep.subr.mxu0 0.0
          %1456 = vmatpush1.msra.mxu0 0.0
          %1457 = vmatprep.subr.mxu0 0.0
          %1458 = vmatpush1.msra.mxu0 0.0
          %1459 = vmatprep.subr.mxu0 0.0
          %1460 = vmatpush1.msra.mxu0 0.0
          %1461 = vmatprep.subr.mxu0 0.0
          %1462 = vmatpush1.msra.mxu0 0.0
          %1463 = vmatprep.subr.mxu0 0.0
          %1464 = vmatpush1.msra.mxu0 0.0
          %1465 = vmatprep.subr.mxu0 0.0
          %1466 = vmatpush1.msra.mxu0 0.0
          %1467 = vmatprep.subr.mxu0 0.0
          %1468 = vmatpush1.msra.mxu0 0.0
          %1469 = vmatprep.subr.mxu0 0.0
          %1470 = vmatpush1.msra.mxu0 0.0
          %1471 = vmatprep.subr.mxu0 0.0
          %1472 = vmatpush1.msra.mxu0 0.0
          %1473 = vmatprep.subr.mxu0 0.0
          %1474 = vmatpush1.msra.mxu0 0.0
          %1475 = vmatprep.subr.mxu0 0.0
          %1476 = vmatpush1.msra.mxu0 0.0
          %1477 = vmatprep.subr.mxu0 0.0
          %1478 = vmatpush1.msra.mxu0 0.0
          %1479 = vmatprep.subr.mxu0 0.0
          %1480 = vmatpush1.msra.mxu0 0.0
          %1481 = vmatprep.subr.mxu0 0.0
          %1482 = vmatpush1.msra.mxu0 0.0
          %1483 = vmatprep.subr.mxu0 0.0
          %1484 = vmatpush1.msra.mxu0 0.0
          %1485 = vmatprep.subr.mxu0 0.0
          %1486 = vmatpush1.msra.mxu0 0.0
          %1487 = vmatprep.subr.mxu0 0.0
          %1488 = vmatpush1.msra.mxu0 0.0
          %1489 = vmatprep.subr.mxu0 0.0
          %1490 = vmatpush1.msra.mxu0 0.0
          %1491 = vmatprep.subr.mxu0 0.0
          %1492 = vmatpush1.msra.mxu0 0.0
          %1493 = vmatprep.subr.mxu0 0.0
          %1494 = vmatpush1.msra.mxu0 0.0
          %1495 = vmatprep.subr.mxu0 0.0
          %1496 = vmatpush1.msra.mxu0 0.0
          %1497 = vmatprep.subr.mxu0 0.0
          %1498 = vmatpush1.msra.mxu0 0.0
          %1499 = vmatprep.mubr.f32.mxu0 0.0
          %1500 = vmatmul.mubr.f32.gmra.mrb[0].mxu0 %v1433
          %v1501 = vpop.f32.mrb[0].mxu0
          %v1502 = vadd.f32 0.0, %v1501
          %v1503 = vpop.f32.mrb[0].mxu0
          %1504 = vdwg.mxu0
          %v1506 = vsel %vm444, %v1256, 0
          %1508 = vmatprep.subr.mxu0 0.0
          %1509 = vmatpush1.msra.mxu0 %v443
          %1510 = vmatprep.subr.mxu0 0.0
          %1511 = vmatpush1.msra.mxu0 0.0
          %1512 = vmatprep.subr.mxu0 0.0
          %1513 = vmatpush1.msra.mxu0 0.0
          %1514 = vmatprep.subr.mxu0 0.0
          %1515 = vmatpush1.msra.mxu0 0.0
          %1516 = vmatprep.subr.mxu0 0.0
          %1517 = vmatpush1.msra.mxu0 0.0
          %1518 = vmatprep.subr.mxu0 0.0
          %1519 = vmatpush1.msra.mxu0 0.0
          %1520 = vmatprep.subr.mxu0 0.0
          %1521 = vmatpush1.msra.mxu0 0.0
          %1522 = vmatprep.subr.mxu0 0.0
          %1523 = vmatpush1.msra.mxu0 0.0
          %1524 = vmatprep.subr.mxu0 0.0
          %1525 = vmatpush1.msra.mxu0 0.0
          %1526 = vmatprep.subr.mxu0 0.0
          %1527 = vmatpush1.msra.mxu0 0.0
          %1528 = vmatprep.subr.mxu0 0.0
          %1529 = vmatpush1.msra.mxu0 0.0
          %1530 = vmatprep.subr.mxu0 0.0
          %1531 = vmatpush1.msra.mxu0 0.0
          %1532 = vmatprep.subr.mxu0 0.0
          %1533 = vmatpush1.msra.mxu0 0.0
          %1534 = vmatprep.subr.mxu0 0.0
          %1535 = vmatpush1.msra.mxu0 0.0
          %1536 = vmatprep.subr.mxu0 0.0
          %1537 = vmatpush1.msra.mxu0 0.0
          %1538 = vmatprep.subr.mxu0 0.0
          %1539 = vmatpush1.msra.mxu0 0.0
          %1540 = vmatprep.subr.mxu0 0.0
          %1541 = vmatpush1.msra.mxu0 0.0
          %1542 = vmatprep.subr.mxu0 0.0
          %1543 = vmatpush1.msra.mxu0 0.0
          %1544 = vmatprep.subr.mxu0 0.0
          %1545 = vmatpush1.msra.mxu0 0.0
          %1546 = vmatprep.subr.mxu0 0.0
          %1547 = vmatpush1.msra.mxu0 0.0
          %1548 = vmatprep.subr.mxu0 0.0
          %1549 = vmatpush1.msra.mxu0 0.0
          %1550 = vmatprep.subr.mxu0 0.0
          %1551 = vmatpush1.msra.mxu0 0.0
          %1552 = vmatprep.subr.mxu0 0.0
          %1553 = vmatpush1.msra.mxu0 0.0
          %1554 = vmatprep.subr.mxu0 0.0
          %1555 = vmatpush1.msra.mxu0 0.0
          %1556 = vmatprep.subr.mxu0 0.0
          %1557 = vmatpush1.msra.mxu0 0.0
          %1558 = vmatprep.subr.mxu0 0.0
          %1559 = vmatpush1.msra.mxu0 0.0
          %1560 = vmatprep.subr.mxu0 0.0
          %1561 = vmatpush1.msra.mxu0 0.0
          %1562 = vmatprep.subr.mxu0 0.0
          %1563 = vmatpush1.msra.mxu0 0.0
          %1564 = vmatprep.subr.mxu0 0.0
          %1565 = vmatpush1.msra.mxu0 0.0
          %1566 = vmatprep.subr.mxu0 0.0
          %1567 = vmatpush1.msra.mxu0 0.0
          %1568 = vmatprep.subr.mxu0 0.0
          %1569 = vmatpush1.msra.mxu0 0.0
          %1570 = vmatprep.subr.mxu0 0.0
          %1571 = vmatpush1.msra.mxu0 0.0
          %1572 = vmatprep.mubr.f32.mxu0 0.0
          %1573 = vmatmul.mubr.f32.gmra.mrb[0].mxu0 %v1506
          %v1574 = vpop.f32.mrb[0].mxu0
          %v1575 = vadd.f32 0.0, %v1574
          %v1576 = vpop.f32.mrb[0].mxu0
          %1577 = vdwg.mxu0
          %v1578 = vld [vmem:[#allocation4] sm:$0xff]
          %v1579 = vld [vmem:[#allocation4 + $0x8] sm:$0xff]
          %v1580 = vld [vmem:[#allocation4 + $0x10] sm:$0xff]
          %v1581 = vld [vmem:[#allocation4 + $0x18] sm:$0xff]
          %1583 = vset.pattern.permute.xlu0 0
          %1584 = vperm.xlu0 %1583, %v1218
          %v1585 = vpop.permute.xlu0 %1584
          %1588 = vset.pattern.permute.xlu0 0
          %1589 = vperm.xlu0 %1588, %v1220
          %v1590 = vpop.permute.xlu0 %1589
          %1593 = vset.pattern.permute.xlu0 0
          %1594 = vperm.xlu0 %1593, %v1222
          %v1595 = vpop.permute.xlu0 %1594
          %1598 = vset.pattern.permute.xlu0 0
          %1599 = vperm.xlu0 %1598, %v1224
          %v1600 = vpop.permute.xlu0 %1599
          %v1602 = vmul.f32 %v1585, %v1578
          %v1603 = vmul.f32 %v1590, %v1579
          %v1604 = vmul.f32 %v1595, %v1580
          %v1605 = vmul.f32 %v1600, %v1581
          %v1606 = vadd.f32 %v1602, %v1356
          %v1607 = vadd.f32 %v1603, %v1429
          %v1608 = vadd.f32 %v1604, %v1502
          %v1609 = vadd.f32 %v1605, %v1575
          %1610 = vst.msk [vmem:[#allocation4] sm:$0xff] %vm444, %v1606
          %1611 = vst.msk [vmem:[#allocation4 + $0x8] sm:$0xff] %vm444, %v1607
          %1612 = vst.msk [vmem:[#allocation4 + $0x10] sm:$0xff] %vm444, %v1608
          %1613 = vst.msk [vmem:[#allocation4 + $0x18] sm:$0xff] %vm444, %v1609
          %1614 = vst.msk [vmem:[#allocation2] sm:$0xff] %vm1281, %v1209
          %1615 = vst.msk [vmem:[#allocation2 + $0x8] sm:$0xff] %vm1281, %v1210
          %1616 = vst.msk [vmem:[#allocation2 + $0x10] sm:$0xff] %vm1281, %v1211
          %1617 = vst.msk [vmem:[#allocation2 + $0x18] sm:$0xff] %vm1281, %v1212
          %v1618 = vld [vmem:[#allocation3] sm:$0xff]
          %v1619 = vld [vmem:[#allocation3 + $0x8] sm:$0xff]
          %v1620 = vld [vmem:[#allocation3 + $0x10] sm:$0xff]
          %v1621 = vld [vmem:[#allocation3 + $0x18] sm:$0xff]
          %v1622 = vrcp.pop %v1618
          %v1623 = vrcp.pop %v1619
          %v1624 = vrcp.pop %v1620
          %v1625 = vrcp.pop %v1621
          %v1626 = vld [vmem:[#allocation4] sm:$0xff]
          %v1627 = vld [vmem:[#allocation4 + $0x8] sm:$0xff]
          %v1628 = vld [vmem:[#allocation4 + $0x10] sm:$0xff]
          %v1629 = vld [vmem:[#allocation4 + $0x18] sm:$0xff]
          %1631 = vset.pattern.permute.xlu0 0
          %1632 = vperm.xlu0 %1631, %v1622
          %v1633 = vpop.permute.xlu0 %1632
          %1636 = vset.pattern.permute.xlu0 0
          %1637 = vperm.xlu0 %1636, %v1623
          %v1638 = vpop.permute.xlu0 %1637
          %1641 = vset.pattern.permute.xlu0 0
          %1642 = vperm.xlu0 %1641, %v1624
          %v1643 = vpop.permute.xlu0 %1642
          %1646 = vset.pattern.permute.xlu0 0
          %1647 = vperm.xlu0 %1646, %v1625
          %v1648 = vpop.permute.xlu0 %1647
          %v1650 = vmul.f32 %v1626, %v1633
          %v1651 = vmul.f32 %v1627, %v1638
          %v1652 = vmul.f32 %v1628, %v1643
          %v1653 = vmul.f32 %v1629, %v1648
          %1655 = vrot.lane.b32.xlu0 %v1651, 8
          %v1656 = vpop.permute.xlu0 %1655
          %1659 = vrot.lane.b32.xlu0 %v1652, 16
          %v1660 = vpop.permute.xlu0 %1659
          %1663 = vrot.lane.b32.xlu0 %v1653, 24
          %v1664 = vpop.permute.xlu0 %1663
          %v1666 = vsel %vm444, %v1650, %v1656
          %vm1667 = vcmask 130048
          %v1668 = vsel %vm1667, %v1666, %v1660
          %vm1669 = vcmask 195584
          %v1670 = vsel %vm1669, %v1668, %v1664
          %vm1671 = vcmask 261120
          %1672 = vst.msk [vmem:[%s410] sm:$0xff] %vm1671, %v1670
        $region158: #{block_forward.4} parent=133 // pred_fallthru
          _
        %s1673 = sld [smem:[#allocation6 + %s31]]
        %p1674 = scmp.lt.s32.totalorder %s30, 1
        %s1675 = scalar_select %p1674, %s30, 1
        %p1676 = scmp.lt.s32.totalorder %s1673, 1
        %s1677 = scalar_select %p1676, %s1673, 1
        %s1678 = smul.addr %s1675, 2
        %s1679 = sadd.s32 %s1677, %s1678
        %s1680 = smul.addr %s1679, 8
        %s1681 = scalar_lea.vmem %s5, %s1680
        // Predicated region
        $region159: #{block_forward.4} parent=133 // pred_check
          %p1682 = pneg %p150
        $region160: #{block_forward.4} parent=133 // pred_check_branch
          %1684 = sbr.rel (%p1682) target = $region162
        $region161: #{block_forward.4} parent=133 // pred_region
          %s1685 = sld [smem:[#allocation6 + %s31]]
        $region162: #{block_forward.4} parent=133 // pred_fallthru
          _
      $region134: #{block_forward.4} parent=5 // pred_fallthru
        _
      %p1686 = scmp.le.s32.totalorder 2, %s21
      // Predicated region
      $region163: #{block_forward.4} parent=5 // pred_check
        %p1687 = pneg %p1686
      $region164: #{block_forward.4} parent=5 // pred_check_branch
        %1689 = sbr.rel (%p1687) target = $region166
      $region165: #{block_forward.4} parent=5 // pred_region
        %s1690 = ssub.s32 %s21, 2
        // Predicated region
        $region167: #{block_forward.4} parent=165 // pred_check
          %p1691 = pneg %p156
        $region168: #{block_forward.4} parent=165 // pred_check_branch
          %1693 = sbr.rel (%p1691) target = $region170
        $region169: #{block_forward.4} parent=165 // pred_region
          %s1694 = sld [smem:[#allocation6 + %s33]]
          %p1695 = scmp.lt.s32.totalorder %s32, 1
          %s1696 = scalar_select %p1695, %s32, 1
          %p1697 = scmp.lt.s32.totalorder %s1694, 1
          %s1698 = scalar_select %p1697, %s1694, 1
          %s1699 = smul.addr %s1696, 2
          %s1700 = sadd.s32 %s1698, %s1699
          %s1701 = smul.addr %s1700, 8
          %s1702 = scalar_lea.vmem %s5, %s1701
        $region170: #{block_forward.4} parent=165 // pred_fallthru
          _
      $region166: #{block_forward.4} parent=5 // pred_fallthru
        _
    $region6: #{block_forward.4} parent=1 // loop_footer
      %s25 = sadd.s32 1, %s21
    $region7: #{block_forward.4} parent=1 // loop_footer_branch
      %20 = sbr.rel target = $region3
    $region8: #{block_forward.4} parent=1 // loop_exit
      _

// kernel: block_forward.5
$region0: #{block_forward.5}
  #allocation0 [shape = 'u32[]', space=smem, size = 0x4, offset = 0x4, fixed_abs, tag = 'smem constant byte address 0x4 - core index']
  #allocation1 [shape = 'u32[144,128]{1,0:T(1,128)}', space=vmem, size = 0x12000, scoped, tag = 'internal scratch']
  #allocation2 [shape = 'f32[8,32]{1,0:T(8,128)}', space=vmem, size = 0x1000, scoped, tag = 'scratch operand']
  #allocation3 [shape = 'f32[8,32]{1,0:T(8,128)}', space=vmem, size = 0x1000, scoped, tag = 'scratch operand']
  #allocation4 [shape = 'f32[8,32]{1,0:T(8,128)}', space=vmem, size = 0x1000, scoped, tag = 'scratch operand']
  %s0 = inlined_call_operand.vmem [shape: f32[2,16,32], index: 0, kind: input, shape index: {}]
  %s1 = inlined_call_operand.vmem [shape: f32[2,16,32], index: 1, kind: input, shape index: {}]
  %s2 = inlined_call_operand.vmem [shape: f32[32,32], index: 2, kind: input, shape index: {}]
  %s3 = inlined_call_operand.vmem [shape: f32[1,32], index: 3, kind: input, shape index: {}]
  %s4 = inlined_call_operand.vmem [shape: f32[1,32], index: 4, kind: input, shape index: {}]
  %s5 = inlined_call_operand.vmem [shape: f32[1,32], index: 5, kind: input, shape index: {}]
  %s6 = inlined_call_operand.vmem [shape: f32[32,128], index: 6, kind: input, shape index: {}]
  %s7 = inlined_call_operand.vmem [shape: f32[1,128], index: 7, kind: input, shape index: {}]
  %s8 = inlined_call_operand.vmem [shape: f32[128,32], index: 8, kind: input, shape index: {}]
  %s9 = inlined_call_operand.vmem [shape: f32[1,32], index: 9, kind: input, shape index: {}]
  %s10 = inlined_call_operand.hbm [shape: f32[2,16,32], index: 10, kind: output, shape index: {}]
  %s11 = sld [smem:[#allocation0]]
  $region81: #{block_forward.5} parent=0
    _
  %s13 = ssub.s32 1, %s11
  %s14 = scalar_select 0, %s13, %s11
  $region1: #{block_forward.5} parent=0
    #allocation5 [shape = 'u8[8192]{0}', space=vmem, size = 0x2000, scoped, tag = 'output window, operand 0']
    #allocation6 [shape = 's32[2]{0}', space=sflag, size = 0x8, scoped, tag = 'scoped memory for block_forward.5']
    %15 = vsyncpa [#allocation6], 0
    %s16 = scalar_lea.sflag [#allocation6], 1
    %17 = vsyncpa %s16, 0
    loop: start=0, step=1, limit=6
    $region2: #{block_forward.5} parent=1 // loop_pre_header
      _
    $region3: #{block_forward.5} parent=1 // loop_header
      %s19 = sphi 0, %s23
      %p20 = scmp.ge.s32.totalorder %s19, 6
      %s26 = sphi 0, %s45
      %s27 = sphi 0, %s41
      %s28 = sphi 0, %s37
      %s29 = sphi 0, %s26
      %s30 = sphi 0, %s27
      %s31 = sphi 0, %s28
      %s32 = sphi 0, %s29
      %s33 = sphi 0, %s30
      %s34 = sphi 0, %s31
      %s50 = sphi 0, %s52
      %s53 = sphi 0, %s50
      %s54 = sphi 0, %s53
      %s70 = sphi 0, %s54
      %s78 = sphi 0, %s80
      %s81 = sphi 0, %s78
      %s82 = sphi 0, %s81
      %s98 = sphi 0, %s82
      %s102 = sphi 0, %s102
      %s104 = sphi 0, %s102
      %s105 = sphi 0, %s104
      %s119 = sphi 0, %s105
      %s123 = sphi 0, %s123
      %s125 = sphi 0, %s123
      %s126 = sphi 0, %s125
      %s140 = sphi 0, %s126
      %s144 = sphi 0, %s144
      %s146 = sphi 0, %s144
      %s147 = sphi 0, %s146
      %s161 = sphi 0, %s147
      %s165 = sphi 0, %s165
      %s167 = sphi 0, %s165
      %s168 = sphi 0, %s167
      %s182 = sphi 0, %s168
      %s188 = sphi 0, %s190
      %s191 = sphi 0, %s188
      %s192 = sphi 0, %s191
      %s208 = sphi 0, %s192
      %s214 = sphi 0, %s216
      %s217 = sphi 0, %s214
      %s218 = sphi 0, %s217
      %s234 = sphi 0, %s218
      %s240 = sphi 0, %s242
      %s243 = sphi 0, %s240
      %s244 = sphi 0, %s243
      %s260 = sphi 0, %s244
      %s264 = sphi 0, %s264
      %s266 = sphi 0, %s264
      %s267 = sphi 0, %s266
      %s281 = sphi 0, %s267
      %s289 = sphi 0, %s291
      %s292 = sphi 0, %s289
      %s293 = sphi 0, %s292
      %s309 = sphi 0, %s293
    $region4: #{block_forward.5} parent=1 // loop_header_branch
      %22 = sbr.rel (%p20) target = $region8
    $region5: #{block_forward.5} parent=1 // loop_body
      %s24 = ssub.s32 %s19, 1
      %s25 = ssub.s32 %s19, 2
      %s35 = sadd.s32 1, %s28
      %p36 = scmp.ge.s32.totalorder %s35, 1
      %s37 = scalar_select %p36, 0, %s35
      %s38 = sadd.s32 1, %s27
      %s39 = scalar_select %p36, %s38, %s27
      %p40 = scmp.ge.s32.totalorder %s39, 2
      %s41 = scalar_select %p40, 0, %s39
      %s42 = sadd.s32 1, %s26
      %s43 = scalar_select %p40, %s42, %s26
      %p44 = scmp.ge.s32.totalorder %s43, 2
      %s45 = scalar_select %p44, 0, %s43
      %s46 = ssub.s32 %s26, %s45
      %s47 = ssub.s32 %s27, %s41
      %s48 = sor.u32 %s46, %s47
      %p49 = scmp.eq.s32.totalorder %s48, 0
      %s51 = sadd.s32 %s50, 1
      %s52 = scalar_select %p49, %s50, %s51
      %p55 = pneg %p49
      %p56 = scmp.eq.s32.totalorder %s19, 3
      %p57 = por %p55, %p56
      %p58 = scmp.ne.s32.totalorder %s50, %s53
      %p59 = scmp.eq.s32.totalorder %s19, 0
      %p60 = por %p58, %p59
      %p61 = scmp.ne.s32.totalorder %s50, %s53
      %p62 = scmp.eq.s32.totalorder %s24, 3
      %p63 = por %p61, %p62
      %p64 = scmp.ne.s32.totalorder %s53, %s54
      %p65 = scmp.eq.s32.totalorder %s24, 0
      %p66 = por %p64, %p65
      %p67 = scmp.ne.s32.totalorder %s53, %s54
      %p68 = scmp.eq.s32.totalorder %s25, 3
      %p69 = por %p67, %p68
      %p71 = scmp.ne.s32.totalorder %s54, %s70
      %p72 = scmp.eq.s32.totalorder %s25, 0
      %p73 = por %p71, %p72
      %s74 = ssub.s32 %s26, %s45
      %s75 = ssub.s32 %s27, %s41
      %s76 = sor.u32 %s74, %s75
      %p77 = scmp.eq.s32.totalorder %s76, 0
      %s79 = sadd.s32 %s78, 1
      %s80 = scalar_select %p77, %s78, %s79
      %p83 = pneg %p77
      %p84 = scmp.eq.s32.totalorder %s19, 3
      %p85 = por %p83, %p84
      %p86 = scmp.ne.s32.totalorder %s78, %s81
      %p87 = scmp.eq.s32.totalorder %s19, 0
      %p88 = por %p86, %p87
      %p89 = scmp.ne.s32.totalorder %s78, %s81
      %p90 = scmp.eq.s32.totalorder %s24, 3
      %p91 = por %p89, %p90
      %p92 = scmp.ne.s32.totalorder %s81, %s82
      %p93 = scmp.eq.s32.totalorder %s24, 0
      %p94 = por %p92, %p93
      %p95 = scmp.ne.s32.totalorder %s81, %s82
      %p96 = scmp.eq.s32.totalorder %s25, 3
      %p97 = por %p95, %p96
      %p99 = scmp.ne.s32.totalorder %s82, %s98
      %p100 = scmp.eq.s32.totalorder %s25, 0
      %p101 = por %p99, %p100
      %s103 = sadd.s32 %s102, 1
      %p106 = scmp.eq.s32.totalorder %s19, 3
      %p107 = scmp.ne.s32.totalorder %s102, %s104
      %p108 = scmp.eq.s32.totalorder %s19, 0
      %p109 = por %p107, %p108
      %p110 = scmp.ne.s32.totalorder %s102, %s104
      %p111 = scmp.eq.s32.totalorder %s24, 3
      %p112 = por %p110, %p111
      %p113 = scmp.ne.s32.totalorder %s104, %s105
      %p114 = scmp.eq.s32.totalorder %s24, 0
      %p115 = por %p113, %p114
      %p116 = scmp.ne.s32.totalorder %s104, %s105
      %p117 = scmp.eq.s32.totalorder %s25, 3
      %p118 = por %p116, %p117
      %p120 = scmp.ne.s32.totalorder %s105, %s119
      %p121 = scmp.eq.s32.totalorder %s25, 0
      %p122 = por %p120, %p121
      %s124 = sadd.s32 %s123, 1
      %p127 = scmp.eq.s32.totalorder %s19, 3
      %p128 = scmp.ne.s32.totalorder %s123, %s125
      %p129 = scmp.eq.s32.totalorder %s19, 0
      %p130 = por %p128, %p129
      %p131 = scmp.ne.s32.totalorder %s123, %s125
      %p132 = scmp.eq.s32.totalorder %s24, 3
      %p133 = por %p131, %p132
      %p134 = scmp.ne.s32.totalorder %s125, %s126
      %p135 = scmp.eq.s32.totalorder %s24, 0
      %p136 = por %p134, %p135
      %p137 = scmp.ne.s32.totalorder %s125, %s126
      %p138 = scmp.eq.s32.totalorder %s25, 3
      %p139 = por %p137, %p138
      %p141 = scmp.ne.s32.totalorder %s126, %s140
      %p142 = scmp.eq.s32.totalorder %s25, 0
      %p143 = por %p141, %p142
      %s145 = sadd.s32 %s144, 1
      %p148 = scmp.eq.s32.totalorder %s19, 3
      %p149 = scmp.ne.s32.totalorder %s144, %s146
      %p150 = scmp.eq.s32.totalorder %s19, 0
      %p151 = por %p149, %p150
      %p152 = scmp.ne.s32.totalorder %s144, %s146
      %p153 = scmp.eq.s32.totalorder %s24, 3
      %p154 = por %p152, %p153
      %p155 = scmp.ne.s32.totalorder %s146, %s147
      %p156 = scmp.eq.s32.totalorder %s24, 0
      %p157 = por %p155, %p156
      %p158 = scmp.ne.s32.totalorder %s146, %s147
      %p159 = scmp.eq.s32.totalorder %s25, 3
      %p160 = por %p158, %p159
      %p162 = scmp.ne.s32.totalorder %s147, %s161
      %p163 = scmp.eq.s32.totalorder %s25, 0
      %p164 = por %p162, %p163
      %s166 = sadd.s32 %s165, 1
      %p169 = scmp.eq.s32.totalorder %s19, 3
      %p170 = scmp.ne.s32.totalorder %s165, %s167
      %p171 = scmp.eq.s32.totalorder %s19, 0
      %p172 = por %p170, %p171
      %p173 = scmp.ne.s32.totalorder %s165, %s167
      %p174 = scmp.eq.s32.totalorder %s24, 3
      %p175 = por %p173, %p174
      %p176 = scmp.ne.s32.totalorder %s167, %s168
      %p177 = scmp.eq.s32.totalorder %s24, 0
      %p178 = por %p176, %p177
      %p179 = scmp.ne.s32.totalorder %s167, %s168
      %p180 = scmp.eq.s32.totalorder %s25, 3
      %p181 = por %p179, %p180
      %p183 = scmp.ne.s32.totalorder %s168, %s182
      %p184 = scmp.eq.s32.totalorder %s25, 0
      %p185 = por %p183, %p184
      %s186 = ssub.s32 %s28, %s37
      %p187 = scmp.eq.s32.totalorder %s186, 0
      %s189 = sadd.s32 %s188, 1
      %s190 = scalar_select %p187, %s188, %s189
      %p193 = pneg %p187
      %p194 = scmp.eq.s32.totalorder %s19, 3
      %p195 = por %p193, %p194
      %p196 = scmp.ne.s32.totalorder %s188, %s191
      %p197 = scmp.eq.s32.totalorder %s19, 0
      %p198 = por %p196, %p197
      %p199 = scmp.ne.s32.totalorder %s188, %s191
      %p200 = scmp.eq.s32.totalorder %s24, 3
      %p201 = por %p199, %p200
      %p202 = scmp.ne.s32.totalorder %s191, %s192
      %p203 = scmp.eq.s32.totalorder %s24, 0
      %p204 = por %p202, %p203
      %p205 = scmp.ne.s32.totalorder %s191, %s192
      %p206 = scmp.eq.s32.totalorder %s25, 3
      %p207 = por %p205, %p206
      %p209 = scmp.ne.s32.totalorder %s192, %s208
      %p210 = scmp.eq.s32.totalorder %s25, 0
      %p211 = por %p209, %p210
      %s212 = ssub.s32 %s28, %s37
      %p213 = scmp.eq.s32.totalorder %s212, 0
      %s215 = sadd.s32 %s214, 1
      %s216 = scalar_select %p213, %s214, %s215
      %p219 = pneg %p213
      %p220 = scmp.eq.s32.totalorder %s19, 3
      %p221 = por %p219, %p220
      %p222 = scmp.ne.s32.totalorder %s214, %s217
      %p223 = scmp.eq.s32.totalorder %s19, 0
      %p224 = por %p222, %p223
      %p225 = scmp.ne.s32.totalorder %s214, %s217
      %p226 = scmp.eq.s32.totalorder %s24, 3
      %p227 = por %p225, %p226
      %p228 = scmp.ne.s32.totalorder %s217, %s218
      %p229 = scmp.eq.s32.totalorder %s24, 0
      %p230 = por %p228, %p229
      %p231 = scmp.ne.s32.totalorder %s217, %s218
      %p232 = scmp.eq.s32.totalorder %s25, 3
      %p233 = por %p231, %p232
      %p235 = scmp.ne.s32.totalorder %s218, %s234
      %p236 = scmp.eq.s32.totalorder %s25, 0
      %p237 = por %p235, %p236
      %s238 = ssub.s32 %s28, %s37
      %p239 = scmp.eq.s32.totalorder %s238, 0
      %s241 = sadd.s32 %s240, 1
      %s242 = scalar_select %p239, %s240, %s241
      %p245 = pneg %p239
      %p246 = scmp.eq.s32.totalorder %s19, 3
      %p247 = por %p245, %p246
      %p248 = scmp.ne.s32.totalorder %s240, %s243
      %p249 = scmp.eq.s32.totalorder %s19, 0
      %p250 = por %p248, %p249
      %p251 = scmp.ne.s32.totalorder %s240, %s243
      %p252 = scmp.eq.s32.totalorder %s24, 3
      %p253 = por %p251, %p252
      %p254 = scmp.ne.s32.totalorder %s243, %s244
      %p255 = scmp.eq.s32.totalorder %s24, 0
      %p256 = por %p254, %p255
      %p257 = scmp.ne.s32.totalorder %s243, %s244
      %p258 = scmp.eq.s32.totalorder %s25, 3
      %p259 = por %p257, %p258
      %p261 = scmp.ne.s32.totalorder %s244, %s260
      %p262 = scmp.eq.s32.totalorder %s25, 0
      %p263 = por %p261, %p262
      %s265 = sadd.s32 %s264, 1
      %p268 = scmp.eq.s32.totalorder %s19, 3
      %p269 = scmp.ne.s32.totalorder %s264, %s266
      %p270 = scmp.eq.s32.totalorder %s19, 0
      %p271 = por %p269, %p270
      %p272 = scmp.ne.s32.totalorder %s264, %s266
      %p273 = scmp.eq.s32.totalorder %s24, 3
      %p274 = por %p272, %p273
      %p275 = scmp.ne.s32.totalorder %s266, %s267
      %p276 = scmp.eq.s32.totalorder %s24, 0
      %p277 = por %p275, %p276
      %p278 = scmp.ne.s32.totalorder %s266, %s267
      %p279 = scmp.eq.s32.totalorder %s25, 3
      %p280 = por %p278, %p279
      %p282 = scmp.ne.s32.totalorder %s267, %s281
      %p283 = scmp.eq.s32.totalorder %s25, 0
      %p284 = por %p282, %p283
      %s285 = ssub.s32 %s26, %s45
      %s286 = ssub.s32 %s27, %s41
      %s287 = sor.u32 %s285, %s286
      %p288 = scmp.eq.s32.totalorder %s287, 0
      %s290 = sadd.s32 %s289, 1
      %s291 = scalar_select %p288, %s289, %s290
      %p294 = pneg %p288
      %p295 = scmp.eq.s32.totalorder %s19, 3
      %p296 = por %p294, %p295
      %p297 = scmp.ne.s32.totalorder %s289, %s292
      %p298 = scmp.eq.s32.totalorder %s19, 0
      %p299 = por %p297, %p298
      %p300 = scmp.ne.s32.totalorder %s289, %s292
      %p301 = scmp.eq.s32.totalorder %s24, 3
      %p302 = por %p300, %p301
      %p303 = scmp.ne.s32.totalorder %s292, %s293
      %p304 = scmp.eq.s32.totalorder %s24, 0
      %p305 = por %p303, %p304
      %p306 = scmp.ne.s32.totalorder %s292, %s293
      %p307 = scmp.eq.s32.totalorder %s25, 3
      %p308 = por %p306, %p307
      %p310 = scmp.ne.s32.totalorder %s293, %s309
      %p311 = scmp.eq.s32.totalorder %s25, 0
      %p312 = por %p310, %p311
      %p313 = scmp.le.s32.totalorder 1, %s19
      %p314 = scmp.lt.s32.totalorder %s19, 5
      %p315 = pnand %p313, %p314
      %p316 = pneg %p315
      // Predicated region
      $region9: #{block_forward.5} parent=5 // pred_check
        _
      $region10: #{block_forward.5} parent=5 // pred_check_branch
        %318 = sbr.rel (%p315) target = $region12
      $region11: #{block_forward.5} parent=5 // pred_region
        %s319 = ssub.s32 %s19, 1
        // Predicated region
        $region13: #{block_forward.5} parent=11 // pred_check
          %p320 = pneg %p115
        $region14: #{block_forward.5} parent=11 // pred_check_branch
          %322 = sbr.rel (%p320) target = $region16
        $region15: #{block_forward.5} parent=11 // pred_region
          _
        $region16: #{block_forward.5} parent=11 // pred_fallthru
          _
        // Predicated region
        $region17: #{block_forward.5} parent=11 // pred_check
          %p323 = pneg %p136
        $region18: #{block_forward.5} parent=11 // pred_check_branch
          %325 = sbr.rel (%p323) target = $region20
        $region19: #{block_forward.5} parent=11 // pred_region
          _
        $region20: #{block_forward.5} parent=11 // pred_fallthru
          _
        // Predicated region
        $region21: #{block_forward.5} parent=11 // pred_check
          %p326 = pneg %p157
        $region22: #{block_forward.5} parent=11 // pred_check_branch
          %328 = sbr.rel (%p326) target = $region24
        $region23: #{block_forward.5} parent=11 // pred_region
          _
        $region24: #{block_forward.5} parent=11 // pred_fallthru
          _
        // Predicated region
        $region25: #{block_forward.5} parent=11 // pred_check
          %p329 = pneg %p178
        $region26: #{block_forward.5} parent=11 // pred_check_branch
          %331 = sbr.rel (%p329) target = $region28
        $region27: #{block_forward.5} parent=11 // pred_region
          _
        $region28: #{block_forward.5} parent=11 // pred_fallthru
          _
        // Predicated region
        $region29: #{block_forward.5} parent=11 // pred_check
          %p332 = pneg %p204
        $region30: #{block_forward.5} parent=11 // pred_check_branch
          %334 = sbr.rel (%p332) target = $region32
        $region31: #{block_forward.5} parent=11 // pred_region
          %p335 = scmp.lt.s32.totalorder %s31, 0
          %s336 = scalar_select %p335, %s31, 0
          %s337 = smul.addr %s336, 8
          %s338 = scalar_lea.vmem %s6, %s337
        $region32: #{block_forward.5} parent=11 // pred_fallthru
          _
        // Predicated region
        $region33: #{block_forward.5} parent=11 // pred_check
          %p339 = pneg %p230
        $region34: #{block_forward.5} parent=11 // pred_check_branch
          %341 = sbr.rel (%p339) target = $region36
        $region35: #{block_forward.5} parent=11 // pred_region
          %p342 = scmp.lt.s32.totalorder %s31, 0
          %s343 = scalar_select %p342, %s31, 0
          %s344 = scalar_lea.vmem %s7, %s343
        $region36: #{block_forward.5} parent=11 // pred_fallthru
          _
        // Predicated region
        $region37: #{block_forward.5} parent=11 // pred_check
          %p345 = pneg %p256
        $region38: #{block_forward.5} parent=11 // pred_check_branch
          %347 = sbr.rel (%p345) target = $region40
        $region39: #{block_forward.5} parent=11 // pred_region
          %s348 = smul.u32 16, %s31
          %p349 = scmp.lt.s32.totalorder %s348, 15
          %s350 = scalar_select %p349, %s348, 15
          %s351 = smul.addr %s350, 8
          %s352 = scalar_lea.vmem %s8, %s351
          %s353 = smul.u32 16, %s31
        $region40: #{block_forward.5} parent=11 // pred_fallthru
          _
        // Predicated region
        $region41: #{block_forward.5} parent=11 // pred_check
          %p354 = pneg %p277
        $region42: #{block_forward.5} parent=11 // pred_check_branch
          %356 = sbr.rel (%p354) target = $region44
        $region43: #{block_forward.5} parent=11 // pred_region
          _
        $region44: #{block_forward.5} parent=11 // pred_fallthru
          _
      $region12: #{block_forward.5} parent=5 // pred_fallthru
        _
      %p357 = scmp.lt.s32.totalorder %s19, 4
      // Predicated region
      $region45: #{block_forward.5} parent=5 // pred_check
        %p358 = pneg %p357
      $region46: #{block_forward.5} parent=5 // pred_check_branch
        %360 = sbr.rel (%p358) target = $region48
      $region47: #{block_forward.5} parent=5 // pred_region
        // Predicated region
        $region49: #{block_forward.5} parent=47 // pred_check
          %p361 = pneg %p60
        $region50: #{block_forward.5} parent=47 // pred_check_branch
          %363 = sbr.rel (%p361) target = $region52
        $region51: #{block_forward.5} parent=47 // pred_region
          %p364 = scmp.lt.s32.totalorder %s26, 1
          %s365 = scalar_select %p364, %s26, 1
          %p366 = scmp.lt.s32.totalorder %s27, 1
          %s367 = scalar_select %p366, %s27, 1
          %s368 = smul.addr %s365, 2
          %s369 = sadd.s32 %s367, %s368
          %s370 = smul.addr %s369, 8
          %s371 = scalar_lea.vmem %s0, %s370
        $region52: #{block_forward.5} parent=47 // pred_fallthru
          _
        // Predicated region
        $region53: #{block_forward.5} parent=47 // pred_check
          %p372 = pneg %p88
        $region54: #{block_forward.5} parent=47 // pred_check_branch
          %374 = sbr.rel (%p372) target = $region56
        $region55: #{block_forward.5} parent=47 // pred_region
          %p375 = scmp.lt.s32.totalorder %s26, 1
          %s376 = scalar_select %p375, %s26, 1
          %p377 = scmp.lt.s32.totalorder %s27, 1
          %s378 = scalar_select %p377, %s27, 1
          %s379 = smul.addr %s376, 2
          %s380 = sadd.s32 %s378, %s379
          %s381 = smul.addr %s380, 8
          %s382 = scalar_lea.vmem %s1, %s381
        $region56: #{block_forward.5} parent=47 // pred_fallthru
          _
      $region48: #{block_forward.5} parent=5 // pred_fallthru
        _
      %p383 = scmp.le.s32.totalorder 1, %s19
      %p384 = scmp.lt.s32.totalorder %s19, 5
      %p385 = pnand %p383, %p384
      %p386 = pneg %p385
      // Predicated region
      $region57: #{block_forward.5} parent=5 // pred_check
        _
      $region58: #{block_forward.5} parent=5 // pred_check_branch
        %388 = sbr.rel (%p385) target = $region60
      $region59: #{block_forward.5} parent=5 // pred_region
        %s389 = ssub.s32 %s19, 1
        %p390 = scmp.lt.s32.totalorder %s29, 1
        %s391 = scalar_select %p390, %s29, 1
        %p392 = scmp.lt.s32.totalorder %s30, 1
        %s393 = scalar_select %p392, %s30, 1
        %s394 = smul.addr %s391, 2
        %s395 = sadd.s32 %s393, %s394
        %s396 = smul.addr %s395, 8
        %s397 = scalar_lea.vmem %s0, %s396
        %p398 = pneg %p66
        %p399 = pneg %p63
        %p400 = scmp.lt.s32.totalorder %s29, 1
        %s401 = scalar_select %p400, %s29, 1
        %p402 = scmp.lt.s32.totalorder %s30, 1
        %s403 = scalar_select %p402, %s30, 1
        %s404 = smul.addr %s401, 2
        %s405 = sadd.s32 %s403, %s404
        %s406 = smul.addr %s405, 8
        %s407 = scalar_lea.vmem %s1, %s406
        %p408 = pneg %p94
        %p409 = pneg %p91
        %p410 = pneg %p115
        %p411 = pneg %p112
        %p412 = pneg %p136
        %p413 = pneg %p133
        %p414 = pneg %p157
        %p415 = pneg %p154
        %p416 = pneg %p178
        %p417 = pneg %p175
        %p418 = scmp.lt.s32.totalorder %s31, 0
        %s419 = scalar_select %p418, %s31, 0
        %s420 = smul.addr %s419, 8
        %s421 = scalar_lea.vmem %s6, %s420
        %p422 = pneg %p204
        %p423 = pneg %p201
        %p424 = scmp.lt.s32.totalorder %s31, 0
        %s425 = scalar_select %p424, %s31, 0
        %s426 = scalar_lea.vmem %s7, %s425
        %p427 = pneg %p230
        %p428 = pneg %p227
        %s429 = smul.u32 16, %s31
        %p430 = scmp.lt.s32.totalorder %s429, 15
        %s431 = scalar_select %p430, %s429, 15
        %s432 = smul.addr %s431, 8
        %s433 = scalar_lea.vmem %s8, %s432
        %p434 = pneg %p256
        %p435 = pneg %p253
        %p436 = pneg %p277
        %p437 = pneg %p274
        %p438 = pneg %p305
        %p439 = pneg %p302
        %s440 = sand.u32 %s292, 1
        %s441 = scalar_lea.sflag [#allocation6], %s440
        %s442 = sand.u32 %s292, 1
        %s443 = smul.addr %s442, 8
        %s444 = scalar_lea.vmem [#allocation5], %s443
        %p445 = scmp.lt.s32.totalorder %s29, 1
        %s446 = scalar_select %p445, %s29, 1
        %p447 = scmp.lt.s32.totalorder %s30, 1
        %s448 = scalar_select %p447, %s30, 1
        %s449 = smul.addr %s446, 2
        %s450 = sadd.s32 %s448, %s449
        %s451 = smul.addr %s450, 8
        %s452 = scalar_lea.vmem %s0, %s451
        %p453 = scmp.lt.s32.totalorder %s29, 1
        %s454 = scalar_select %p453, %s29, 1
        %p455 = scmp.lt.s32.totalorder %s30, 1
        %s456 = scalar_select %p455, %s30, 1
        %s457 = smul.addr %s454, 2
        %s458 = sadd.s32 %s456, %s457
        %s459 = smul.addr %s458, 8
        %s460 = scalar_lea.vmem %s1, %s459
        %p461 = scmp.lt.s32.totalorder %s31, 0
        %s462 = scalar_select %p461, %s31, 0
        %s463 = smul.addr %s462, 8
        %s464 = scalar_lea.vmem %s6, %s463
        %p465 = scmp.lt.s32.totalorder %s31, 0
        %s466 = scalar_select %p465, %s31, 0
        %s467 = scalar_lea.vmem %s7, %s466
        %s468 = smul.u32 16, %s31
        %p469 = scmp.lt.s32.totalorder %s468, 15
        %s470 = scalar_select %p469, %s468, 15
        %s471 = smul.addr %s470, 8
        %s472 = scalar_lea.vmem %s8, %s471
        %s473 = smul.u32 16, %s31
        %p474 = scmp.eq.s32.totalorder %s31, 0
        // Predicated region
        $region61: #{block_forward.5} parent=59 // pred_check
          %p475 = pneg %p474
        $region62: #{block_forward.5} parent=59 // pred_check_branch
          %477 = sbr.rel (%p475) target = $region64
        $region63: #{block_forward.5} parent=59 // pred_region
          %v478 = vld [vmem:[%s452] sm:$0xff]
          %v479 = vld [vmem:[%s2] sm:$0xff]
          %v480 = vld [vmem:[%s2 + $0x8] sm:$0xff]
          %v481 = vld [vmem:[%s2 + $0x10] sm:$0xff]
          %v482 = vld [vmem:[%s2 + $0x18] sm:$0xff]
          %v483 = vld [vmem:[%s460] sm:$0xff]
          %vm484 = vcmask 261120
          %v486 = vsel %vm484, %v483, 0
          %488 = vmatprep.subr.mxu0 0.0
          %489 = vmatpush1.msra.mxu0 %v479
          %490 = vmatprep.subr.mxu0 0.0
          %491 = vmatpush1.msra.mxu0 %v480
          %492 = vmatprep.subr.mxu0 0.0
          %493 = vmatpush1.msra.mxu0 %v481
          %494 = vmatprep.subr.mxu0 0.0
          %495 = vmatpush1.msra.mxu0 %v482
          %496 = vmatprep.subr.mxu0 0.0
          %497 = vmatpush1.msra.mxu0 0.0
          %498 = vmatprep.subr.mxu0 0.0
          %499 = vmatpush1.msra.mxu0 0.0
          %500 = vmatprep.subr.mxu0 0.0
          %501 = vmatpush1.msra.mxu0 0.0
          %502 = vmatprep.subr.mxu0 0.0
          %503 = vmatpush1.msra.mxu0 0.0
          %504 = vmatprep.subr.mxu0 0.0
          %505 = vmatpush1.msra.mxu0 0.0
          %506 = vmatprep.subr.mxu0 0.0
          %507 = vmatpush1.msra.mxu0 0.0
          %508 = vmatprep.subr.mxu0 0.0
          %509 = vmatpush1.msra.mxu0 0.0
          %510 = vmatprep.subr.mxu0 0.0
          %511 = vmatpush1.msra.mxu0 0.0
          %512 = vmatprep.subr.mxu0 0.0
          %513 = vmatpush1.msra.mxu0 0.0
          %514 = vmatprep.subr.mxu0 0.0
          %515 = vmatpush1.msra.mxu0 0.0
          %516 = vmatprep.subr.mxu0 0.0
          %517 = vmatpush1.msra.mxu0 0.0
          %518 = vmatprep.subr.mxu0 0.0
          %519 = vmatpush1.msra.mxu0 0.0
          %520 = vmatprep.subr.mxu0 0.0
          %521 = vmatpush1.msra.mxu0 0.0
          %522 = vmatprep.subr.mxu0 0.0
          %523 = vmatpush1.msra.mxu0 0.0
          %524 = vmatprep.subr.mxu0 0.0
          %525 = vmatpush1.msra.mxu0 0.0
          %526 = vmatprep.subr.mxu0 0.0
          %527 = vmatpush1.msra.mxu0 0.0
          %528 = vmatprep.subr.mxu0 0.0
          %529 = vmatpush1.msra.mxu0 0.0
          %530 = vmatprep.subr.mxu0 0.0
          %531 = vmatpush1.msra.mxu0 0.0
          %532 = vmatprep.subr.mxu0 0.0
          %533 = vmatpush1.msra.mxu0 0.0
          %534 = vmatprep.subr.mxu0 0.0
          %535 = vmatpush1.msra.mxu0 0.0
          %536 = vmatprep.subr.mxu0 0.0
          %537 = vmatpush1.msra.mxu0 0.0
          %538 = vmatprep.subr.mxu0 0.0
          %539 = vmatpush1.msra.mxu0 0.0
          %540 = vmatprep.subr.mxu0 0.0
          %541 = vmatpush1.msra.mxu0 0.0
          %542 = vmatprep.subr.mxu0 0.0
          %543 = vmatpush1.msra.mxu0 0.0
          %544 = vmatprep.subr.mxu0 0.0
          %545 = vmatpush1.msra.mxu0 0.0
          %546 = vmatprep.subr.mxu0 0.0
          %547 = vmatpush1.msra.mxu0 0.0
          %548 = vmatprep.subr.mxu0 0.0
          %549 = vmatpush1.msra.mxu0 0.0
          %550 = vmatprep.subr.mxu0 0.0
          %551 = vmatpush1.msra.mxu0 0.0
          %552 = vmatprep.mubr.f32.mxu0 0.0
          %553 = vmatmul.mubr.f32.gmra.mrb[0].mxu0 %v486
          %v554 = vpop.f32.mrb[0].mxu0
          %v555 = vadd.f32 0.0, %v554
          %v556 = vpop.f32.mrb[0].mxu0
          %557 = vdwg.mxu0
          %v558 = vadd.f32 %v478, %v555
          %v559 = vld [vmem:[%s3] sm:$0x1]
          %v561 = vlaneseq
          %v562 = vshrl.u32 %v561, 7
          %v563 = vsub.s32 0, %v562
          %v564 = vrot.slane %v559, %v563
          %v566 = vadd.f32 %v558, %v564
          %567 = vst.msk [vmem:[#allocation2] sm:$0xff] %vm484, %v566
          %v568 = vld [vmem:[%s4] sm:$0x1]
          %v569 = vld [vmem:[%s5] sm:$0x1]
          %v570 = vsel %vm484, %v566, 0.0
          %571 = vadd.xlane.f32.xlu0 %v570
          %v572 = vpop.xlane.xlu0 %571
          %v573 = vrcp.pop 32.0
          %v574 = vmul.f32 %v572, %v573
          %v575 = vsub.f32 %v566, %v574
          %v576 = vmul.f32 %v575, %v575
          %v577 = vsel %vm484, %v576, 0.0
          %578 = vadd.xlane.f32.xlu0 %v577
          %v579 = vpop.xlane.xlu0 %578
          %v580 = vmul.f32 %v579, %v573
          %v581 = vadd.f32 %v580, 1e-05
          %v582 = vrsqrt.pop %v581
          %v583 = vmul.f32 %v575, %v582
          %v585 = vlaneseq
          %v586 = vshrl.u32 %v585, 7
          %v587 = vsub.s32 0, %v586
          %v588 = vrot.slane %v568, %v587
          %v590 = vmul.f32 %v583, %v588
          %v592 = vlaneseq
          %v593 = vshrl.u32 %v592, 7
          %v594 = vsub.s32 0, %v593
          %v595 = vrot.slane %v569, %v594
          %v597 = vadd.f32 %v590, %v595
          %598 = vst.msk [vmem:[#allocation3] sm:$0xff] %vm484, %v597
          %599 = vst.msk [vmem:[#allocation4] sm:$0xff] %vm484, 0.0
        $region64: #{block_forward.5} parent=59 // pred_fallthru
          _
        %v600 = vld [vmem:[%s464] sm:$0xff]
        %v601 = vld [vmem:[%s464 + $0x8] sm:$0xff]
        %v602 = vld [vmem:[%s464 + $0x10] sm:$0xff]
        %v603 = vld [vmem:[%s464 + $0x18] sm:$0xff]
        %v604 = vld [vmem:[#allocation3] sm:$0xff]
        %v605 = vld [vmem:[%s467] sm:$0x1]
        %v607 = vlaneseq
        %v608 = vshrl.u32 %v607, 7
        %v609 = vsub.s32 0, %v608
        %v610 = vrot.slane %v605, %v609
        %vm612 = vcmask 261120
        %v614 = vsel %vm612, %v604, 0
        %616 = vmatprep.subr.mxu0 0.0
        %617 = vmatpush1.msra.mxu0 %v600
        %618 = vmatprep.subr.mxu0 0.0
        %619 = vmatpush1.msra.mxu0 %v601
        %620 = vmatprep.subr.mxu0 0.0
        %621 = vmatpush1.msra.mxu0 %v602
        %622 = vmatprep.subr.mxu0 0.0
        %623 = vmatpush1.msra.mxu0 %v603
        %624 = vmatprep.subr.mxu0 0.0
        %625 = vmatpush1.msra.mxu0 0.0
        %626 = vmatprep.subr.mxu0 0.0
        %627 = vmatpush1.msra.mxu0 0.0
        %628 = vmatprep.subr.mxu0 0.0
        %629 = vmatpush1.msra.mxu0 0.0
        %630 = vmatprep.subr.mxu0 0.0
        %631 = vmatpush1.msra.mxu0 0.0
        %632 = vmatprep.subr.mxu0 0.0
        %633 = vmatpush1.msra.mxu0 0.0
        %634 = vmatprep.subr.mxu0 0.0
        %635 = vmatpush1.msra.mxu0 0.0
        %636 = vmatprep.subr.mxu0 0.0
        %637 = vmatpush1.msra.mxu0 0.0
        %638 = vmatprep.subr.mxu0 0.0
        %639 = vmatpush1.msra.mxu0 0.0
        %640 = vmatprep.subr.mxu0 0.0
        %641 = vmatpush1.msra.mxu0 0.0
        %642 = vmatprep.subr.mxu0 0.0
        %643 = vmatpush1.msra.mxu0 0.0
        %644 = vmatprep.subr.mxu0 0.0
        %645 = vmatpush1.msra.mxu0 0.0
        %646 = vmatprep.subr.mxu0 0.0
        %647 = vmatpush1.msra.mxu0 0.0
        %648 = vmatprep.subr.mxu0 0.0
        %649 = vmatpush1.msra.mxu0 0.0
        %650 = vmatprep.subr.mxu0 0.0
        %651 = vmatpush1.msra.mxu0 0.0
        %652 = vmatprep.subr.mxu0 0.0
        %653 = vmatpush1.msra.mxu0 0.0
        %654 = vmatprep.subr.mxu0 0.0
        %655 = vmatpush1.msra.mxu0 0.0
        %656 = vmatprep.subr.mxu0 0.0
        %657 = vmatpush1.msra.mxu0 0.0
        %658 = vmatprep.subr.mxu0 0.0
        %659 = vmatpush1.msra.mxu0 0.0
        %660 = vmatprep.subr.mxu0 0.0
        %661 = vmatpush1.msra.mxu0 0.0
        %662 = vmatprep.subr.mxu0 0.0
        %663 = vmatpush1.msra.mxu0 0.0
        %664 = vmatprep.subr.mxu0 0.0
        %665 = vmatpush1.msra.mxu0 0.0
        %666 = vmatprep.subr.mxu0 0.0
        %667 = vmatpush1.msra.mxu0 0.0
        %668 = vmatprep.subr.mxu0 0.0
        %669 = vmatpush1.msra.mxu0 0.0
        %670 = vmatprep.subr.mxu0 0.0
        %671 = vmatpush1.msra.mxu0 0.0
        %672 = vmatprep.subr.mxu0 0.0
        %673 = vmatpush1.msra.mxu0 0.0
        %674 = vmatprep.subr.mxu0 0.0
        %675 = vmatpush1.msra.mxu0 0.0
        %676 = vmatprep.subr.mxu0 0.0
        %677 = vmatpush1.msra.mxu0 0.0
        %678 = vmatprep.subr.mxu0 0.0
        %679 = vmatpush1.msra.mxu0 0.0
        %680 = vmatprep.mubr.f32.mxu0 0.0
        %681 = vmatmul.mubr.f32.gmra.mrb[0].mxu0 %v614
        %v682 = vpop.f32.mrb[0].mxu0
        %v683 = vadd.f32 %v610, %v682
        %v684 = vpop.f32.mrb[0].mxu0
        %685 = vdwg.mxu0
        %v686 = vmul.f32 %v683, 0.5
        %v687 = vmul.f32 %v683, 0.70710677
        %v688 = vand.u32 2147483647, %v687
        %v689 = vmul.f32 %v688, 0.3275911
        %v690 = vadd.f32 %v689, 1.0
        %v691 = vrcp.pop %v690
        %v692 = vmul.f32 1.0, %v691
        %v693 = vmul.f32 %v692, 1.0614054
        %v694 = vadd.f32 %v693, -1.4531521
        %v695 = vmul.f32 %v694, %v692
        %v696 = vadd.f32 %v695, 1.4214138
        %v697 = vmul.f32 %v696, %v692
        %v698 = vadd.f32 %v697, -0.28449672
        %v699 = vmul.f32 %v698, %v692
        %v700 = vadd.f32 %v699, 0.2548296
        %v701 = vmul.f32 %v700, %v692
        %v702 = vsub.f32 0.0, %v688
        %v703 = vmul.f32 %v702, %v688
        %v704 = vmul.f32 %v703, 1.442695
        %v705 = vpow.pop %v704
        %v706 = vmul.f32 %v701, %v705
        %v707 = vsub.f32 1.0, %v706
        %vm708 = vcmp.ge.f32.partialorder %v687, 0.0
        %v709 = vsub.f32 0.0, %v707
        %v710 = vsel %vm708, %v707, %v709
        %v711 = vadd.f32 %v710, 1.0
        %v712 = vmul.f32 %v686, %v711
        %v713 = vld [vmem:[%s472] sm:$0xff]
        %v714 = vld [vmem:[%s472 + $0x8] sm:$0xff]
        %v715 = vld [vmem:[%s472 + $0x10] sm:$0xff]
        %v716 = vld [vmem:[%s472 + $0x18] sm:$0xff]
        %v717 = vld [vmem:[%s472 + $0x20] sm:$0xff]
        %v718 = vld [vmem:[%s472 + $0x28] sm:$0xff]
        %v719 = vld [vmem:[%s472 + $0x30] sm:$0xff]
        %v720 = vld [vmem:[%s472 + $0x38] sm:$0xff]
        %v721 = vld [vmem:[%s472 + $0x40] sm:$0xff]
        %v722 = vld [vmem:[%s472 + $0x48] sm:$0xff]
        %v723 = vld [vmem:[%s472 + $0x50] sm:$0xff]
        %v724 = vld [vmem:[%s472 + $0x58] sm:$0xff]
        %v725 = vld [vmem:[%s472 + $0x60] sm:$0xff]
        %v726 = vld [vmem:[%s472 + $0x68] sm:$0xff]
        %v727 = vld [vmem:[%s472 + $0x70] sm:$0xff]
        %v728 = vld [vmem:[%s472 + $0x78] sm:$0xff]
        %v729 = vld [vmem:[#allocation4] sm:$0xff]
        %730 = vmatprep.subr.mxu0 0.0
        %731 = vmatpush1.msra.mxu0 %v713
        %732 = vmatprep.subr.mxu0 0.0
        %733 = vmatpush1.msra.mxu0 %v714
        %734 = vmatprep.subr.mxu0 0.0
        %735 = vmatpush1.msra.mxu0 %v715
        %736 = vmatprep.subr.mxu0 0.0
        %737 = vmatpush1.msra.mxu0 %v716
        %738 = vmatprep.subr.mxu0 0.0
        %739 = vmatpush1.msra.mxu0 %v717
        %740 = vmatprep.subr.mxu0 0.0
        %741 = vmatpush1.msra.mxu0 %v718
        %742 = vmatprep.subr.mxu0 0.0
        %743 = vmatpush1.msra.mxu0 %v719
        %744 = vmatprep.subr.mxu0 0.0
        %745 = vmatpush1.msra.mxu0 %v720
        %746 = vmatprep.subr.mxu0 0.0
        %747 = vmatpush1.msra.mxu0 %v721
        %748 = vmatprep.subr.mxu0 0.0
        %749 = vmatpush1.msra.mxu0 %v722
        %750 = vmatprep.subr.mxu0 0.0
        %751 = vmatpush1.msra.mxu0 %v723
        %752 = vmatprep.subr.mxu0 0.0
        %753 = vmatpush1.msra.mxu0 %v724
        %754 = vmatprep.subr.mxu0 0.0
        %755 = vmatpush1.msra.mxu0 %v725
        %756 = vmatprep.subr.mxu0 0.0
        %757 = vmatpush1.msra.mxu0 %v726
        %758 = vmatprep.subr.mxu0 0.0
        %759 = vmatpush1.msra.mxu0 %v727
        %760 = vmatprep.subr.mxu0 0.0
        %761 = vmatpush1.msra.mxu0 %v728
        %762 = vmatprep.subr.mxu0 0.0
        %763 = vmatpush1.msra.mxu0 0.0
        %764 = vmatprep.subr.mxu0 0.0
        %765 = vmatpush1.msra.mxu0 0.0
        %766 = vmatprep.subr.mxu0 0.0
        %767 = vmatpush1.msra.mxu0 0.0
        %768 = vmatprep.subr.mxu0 0.0
        %769 = vmatpush1.msra.mxu0 0.0
        %770 = vmatprep.subr.mxu0 0.0
        %771 = vmatpush1.msra.mxu0 0.0
        %772 = vmatprep.subr.mxu0 0.0
        %773 = vmatpush1.msra.mxu0 0.0
        %774 = vmatprep.subr.mxu0 0.0
        %775 = vmatpush1.msra.mxu0 0.0
        %776 = vmatprep.subr.mxu0 0.0
        %777 = vmatpush1.msra.mxu0 0.0
        %778 = vmatprep.subr.mxu0 0.0
        %779 = vmatpush1.msra.mxu0 0.0
        %780 = vmatprep.subr.mxu0 0.0
        %781 = vmatpush1.msra.mxu0 0.0
        %782 = vmatprep.subr.mxu0 0.0
        %783 = vmatpush1.msra.mxu0 0.0
        %784 = vmatprep.subr.mxu0 0.0
        %785 = vmatpush1.msra.mxu0 0.0
        %786 = vmatprep.subr.mxu0 0.0
        %787 = vmatpush1.msra.mxu0 0.0
        %788 = vmatprep.subr.mxu0 0.0
        %789 = vmatpush1.msra.mxu0 0.0
        %790 = vmatprep.subr.mxu0 0.0
        %791 = vmatpush1.msra.mxu0 0.0
        %792 = vmatprep.subr.mxu0 0.0
        %793 = vmatpush1.msra.mxu0 0.0
        %794 = vmatprep.mubr.f32.mxu0 0.0
        %795 = vmatmul.mubr.f32.gmra.mrb[0].mxu0 %v712
        %v796 = vpop.f32.mrb[0].mxu0
        %v797 = vadd.f32 0.0, %v796
        %v798 = vpop.f32.mrb[0].mxu0
        %799 = vdwg.mxu0
        %v800 = vadd.f32 %v729, %v797
        %801 = vst.msk [vmem:[#allocation4] sm:$0xff] %vm612, %v800
        // Predicated region
        $region65: #{block_forward.5} parent=59 // pred_check
          %p802 = pneg %p474
        $region66: #{block_forward.5} parent=59 // pred_check_branch
          %804 = sbr.rel (%p802) target = $region68
        $region67: #{block_forward.5} parent=59 // pred_region
          %v805 = vld [vmem:[#allocation2] sm:$0xff]
          %v806 = vld [vmem:[#allocation4] sm:$0xff]
          %v807 = vadd.f32 %v805, %v806
          %v808 = vld [vmem:[%s9] sm:$0x1]
          %v810 = vlaneseq
          %v811 = vshrl.u32 %v810, 7
          %v812 = vsub.s32 0, %v811
          %v813 = vrot.slane %v808, %v812
          %v815 = vadd.f32 %v807, %v813
          %816 = vst.msk [vmem:[%s444] sm:$0xff] %vm612, %v815
        $region68: #{block_forward.5} parent=59 // pred_fallthru
          _
        %s817 = sand.u32 %s292, 1
        %s818 = scalar_lea.sflag [#allocation6], %s817
        %s819 = sand.u32 %s292, 1
        %s820 = smul.addr %s819, 8
        %s821 = scalar_lea.vmem [#allocation5], %s820
        // Predicated region
        $region69: #{block_forward.5} parent=59 // pred_check
          %p822 = pneg %p302
        $region70: #{block_forward.5} parent=59 // pred_check_branch
          %824 = sbr.rel (%p822) target = $region72
        $region71: #{block_forward.5} parent=59 // pred_region
          %s826 = ssub.s32 128, 128
          %827 = vsyncadd %s818, %s826
          %s828 = smul.addr %s29, 2
          %s829 = sadd.s32 %s30, %s828
          %s830 = smul.addr %s829, 128
          %s831 = scalar_lea.hbm %s10, %s830
          %s833 = sshll.u32 %s821, 4
          %s834 = int_to_ptr.vmem [resolvable:$true] %s833
          %836 = dma.vmem_to_hbm [thread:$0]  %s834, 128, %s831, %s818
        $region72: #{block_forward.5} parent=59 // pred_fallthru
          _
      $region60: #{block_forward.5} parent=5 // pred_fallthru
        _
      %p837 = scmp.le.s32.totalorder 2, %s19
      // Predicated region
      $region73: #{block_forward.5} parent=5 // pred_check
        %p838 = pneg %p837
      $region74: #{block_forward.5} parent=5 // pred_check_branch
        %840 = sbr.rel (%p838) target = $region76
      $region75: #{block_forward.5} parent=5 // pred_region
        %s841 = ssub.s32 %s19, 2
        // Predicated region
        $region77: #{block_forward.5} parent=75 // pred_check
          %p842 = pneg %p308
        $region78: #{block_forward.5} parent=75 // pred_check_branch
          %844 = sbr.rel (%p842) target = $region80
        $region79: #{block_forward.5} parent=75 // pred_region
          %s845 = sand.u32 %s293, 1
          %s846 = scalar_lea.sflag [#allocation6], %s845
          %s847 = sand.u32 %s293, 1
          %s848 = smul.addr %s847, 8
          %s849 = scalar_lea.vmem [#allocation5], %s848
          %850 = dma.done %s846, 128
        $region80: #{block_forward.5} parent=75 // pred_fallthru
          _
      $region76: #{block_forward.5} parent=5 // pred_fallthru
        _
    $region6: #{block_forward.5} parent=1 // loop_footer
      %s23 = sadd.s32 1, %s19
    $region7: #{block_forward.5} parent=1 // loop_footer_branch
      %18 = sbr.rel target = $region3
    $region8: #{block_forward.5} parent=1 // loop_exit
      _
    %851 = vsyncpa [#allocation6], 1
    %s852 = scalar_lea.sflag [#allocation6], 1
    %853 = vsyncpa %s852, 1

</llo_original>
